<compile_context>
chip_gen: v7x
topology: tpu7x:2x2x1
jax: 0.10.0
libtpu: 0.0.40
codegen_flags: <defaults>
</compile_context>

<pallas_src>
import functools

import jax
import jax.numpy as jnp
import numpy as np
from jax.experimental import pallas as pl
from jax.experimental.pallas import tpu as pltpu


def _fused_conv_stack_kernel(*refs, n_layers, H, W, chans, n_scratch):
    """Fused [conv3x3(+ReLU)]*n_layers for one image; one im2col GEMM per layer.

    refs layout:
      refs[0]                 : (1, Lp, chans[0])        padded-flat input (bf16)
      refs[1+2i], refs[2+2i]  : (9*chans[i], chans[i+1]) bf16 im2col weights,
                                (1, chans[i+1]) f32 bias  for layer i
      refs[1+2*n_layers]      : (1, Lp, chans[-1])       f32 output (padded-flat)
      refs[2+2*n_layers:]     : n_scratch x VMEM (Lp, c_mid) f32 activation buffers
    """
    Wp = W + 2
    Hp = H + 2
    Lp = Hp * Wp
    start = Wp + 1          # flat index of interior position (r=1, c=1)
    L = H * Wp - 2          # contiguous slab covering (1,1) .. (H,W) in padded coords
    offsets = tuple((dy - 1) * Wp + (dx - 1) for dy in range(3) for dx in range(3))

    x_ref = refs[0]
    o_ref = refs[1 + 2 * n_layers]
    scratch = refs[2 + 2 * n_layers:]

    # Head/tail halo rows of the scratch buffers are never written by the slab store,
    # but ARE read by next-layer taps, so they must be zero.  Zeroing only these 2*start
    # rows per step (instead of the full buffer) is cheap and stays correct no matter
    # how grid steps are distributed across cores.
    for buf in scratch:
        buf[0:start, :] = jnp.zeros((start, buf.shape[1]), buf.dtype)
        buf[start + L:Lp, :] = jnp.zeros((Lp - start - L, buf.shape[1]), buf.dtype)

    # Slab rows whose padded-flat column is a real (non-halo) pixel: col in [1, W].
    col = (jax.lax.broadcasted_iota(jnp.int32, (L, 1), 0) + start) % Wp
    interior = jnp.logical_and(col >= 1, col <= W)

    def read_from_input(s):
        return x_ref[0, s:s + L, :]                       # already bf16

    read = read_from_input
    for i in range(n_layers):
        c_out = chans[i + 1]
        w_ref = refs[1 + 2 * i]                           # (9*c_in, c_out) bf16
        b_ref = refs[2 + 2 * i]                           # (1, c_out) f32

        # im2col over taps: 9 shifted contiguous slabs -> (L, 9*c_in) bf16, then a
        # single GEMM with K = 9*c_in (fills the MXU systolic depth; no VPU acc chain).
        patches = jnp.concatenate([read(start + off) for off in offsets], axis=-1)
        acc = jnp.dot(patches, w_ref[...],
                      preferred_element_type=jnp.float32) + b_ref[...]

        last = i == n_layers - 1
        if not last:
            acc = jnp.maximum(acc, 0.0)                   # ReLU
            acc = jnp.where(interior, acc, 0.0)           # keep halo columns exactly 0
            buf = scratch[i % n_scratch]
            buf[start:start + L, 0:c_out] = acc           # f32 scratch (no bf16 loss)

            def read_from_buf(s, _buf=buf, _c=c_out):
                return _buf[s:s + L, 0:_c].astype(jnp.bfloat16)   # cast at GEMM operand
            read = read_from_buf
        else:
            # Invariant: only the interior slab of the padded-flat output is written;
            # halo rows/cols hold unspecified data and MUST be discarded by the wrapper
            # slice [:, 1:H+1, 1:W+1, :].  Do not consume out_flat directly.
            o_ref[0, start:start + L, :] = acc.astype(o_ref.dtype)


def feature_fusion_forward(x_nchw: jax.Array, params) -> jax.Array:
    """Matches FeatureFusion.forward. Takes/returns NCHW; one fused Pallas kernel."""
    N, Cin, H, W = x_nchw.shape
    chans = [Cin] + [int(w.shape[-1]) for w, _ in params]
    n_layers = len(params)
    Hp, Wp = H + 2, W + 2
    Lp = Hp * Wp
    c_last = chans[-1]

    # TODO(synk): for production resolutions accept NHWC (or channel-major) directly and
    # do the halo pad via an in-kernel VMEM scratch instead of a wrapper jnp.pad (these
    # wrapper ops are extra full HBM passes); add an H-tile grid axis + vmem_limit_bytes
    # before scaling resolution (v7x has only 64 MiB VMEM).
    x_nhwc = jnp.transpose(x_nchw, (0, 2, 3, 1))
    xp = jnp.pad(x_nhwc, ((0, 0), (1, 1), (1, 1), (0, 0)))
    xp = xp.reshape(N, Lp, Cin).astype(jnp.bfloat16)

    inputs = [xp]
    in_specs = [pl.BlockSpec((1, Lp, Cin), lambda n: (n, 0, 0))]
    flops = 0
    weight_bytes = 0
    for w, b in params:
        cin, cout = int(w.shape[2]), int(w.shape[3])
        # Row order (dy*3+dx)*cin + ci matches the in-kernel tap concatenation order.
        w_im2col = w.reshape(9 * cin, cout).astype(jnp.bfloat16)
        b2 = b.reshape(1, cout).astype(jnp.float32)
        inputs += [w_im2col, b2]
        in_specs += [
            pl.BlockSpec((9 * cin, cout), lambda n: (0, 0)),   # VMEM-resident weights
            pl.BlockSpec((1, cout), lambda n: (0, 0)),
        ]
        flops += 2 * N * H * W * 9 * cin * cout
        weight_bytes += int(w_im2col.size) * 2 + int(b2.size) * 4

    n_scratch = min(2, n_layers - 1)   # 1 intermediate -> 1 buffer; >=2 -> ping-pong
    c_mid = max(chans[1:-1]) if n_layers > 1 else 1
    scratch_shapes = [pltpu.VMEM((Lp, c_mid), jnp.float32)] * n_scratch

    kernel = functools.partial(
        _fused_conv_stack_kernel,
        n_layers=n_layers, H=H, W=W, chans=tuple(chans),
        n_scratch=max(n_scratch, 1))

    cost = pl.CostEstimate(
        flops=flops,
        transcendentals=0,
        bytes_accessed=int(xp.size) * 2 + N * Lp * c_last * 4 + weight_bytes)

    out_flat = pl.pallas_call(
        kernel,
        out_shape=jax.ShapeDtypeStruct((N, Lp, c_last), jnp.float32),
        grid_spec=pltpu.PrefetchScalarGridSpec(
            num_scalar_prefetch=0,
            grid=(N,),
            in_specs=in_specs,
            out_specs=pl.BlockSpec((1, Lp, c_last), lambda n: (n, 0, 0)),
            scratch_shapes=scratch_shapes,
        ),
        compiler_params=pltpu.CompilerParams(
            dimension_semantics=("parallel",)),
        cost_estimate=cost,
    )(*inputs)

    # padded-flat -> (N, H, W, Cout) interior -> NCHW (halo contents are unspecified).
    out = out_flat.reshape(N, Hp, Wp, c_last)[:, 1:H + 1, 1:W + 1, :]
    return jnp.transpose(out, (0, 3, 1, 2))


def init_feature_fusion_params(key, in_channels, out_channels, layers):
    """Deterministic init of conv stack params (f32). Weights HWIO, bias (Cout,)."""
    channel_seq = [in_channels] + list(layers) + [out_channels]
    params = []
    for i in range(len(channel_seq) - 1):
        cin, cout = channel_seq[i], channel_seq[i + 1]
        key, kw, kb = jax.random.split(key, 3)
        fan_in = cin * 3 * 3
        bound = 1.0 / np.sqrt(fan_in)
        w = jax.random.uniform(kw, (3, 3, cin, cout), jnp.float32, -bound, bound)
        b = jax.random.uniform(kb, (cout,), jnp.float32, -bound, bound)
        params.append((w, b))
    return params


def _reference_forward(x_nchw, params):
    x = jnp.transpose(x_nchw, (0, 2, 3, 1))
    n_layers = len(params)
    for i, (w, b) in enumerate(params):
        x = jax.lax.conv_general_dilated(
            x, w, window_strides=(1, 1), padding="SAME",
            dimension_numbers=("NHWC", "HWIO", "NHWC")) + b
        if i < n_layers - 1:
            x = jnp.maximum(x, 0.0)
    return jnp.transpose(x, (0, 3, 1, 2))


if __name__ == "__main__":
    key = jax.random.PRNGKey(0)
    key, kx = jax.random.split(key)

    # Small shapes consistent with the module (NCHW input like PyTorch).
    N, Cin, Hh, Ww = 2, 4, 16, 16
    out_channels = 4
    layers = [8, 16]

    x = jax.random.normal(kx, (N, Cin, Hh, Ww), jnp.float32)
    params = init_feature_fusion_params(key, Cin, out_channels, layers)

    out = feature_fusion_forward(x, params)
    out = jax.block_until_ready(out)

    ref = jax.block_until_ready(_reference_forward(x, params))
    # bf16 MXU operands (f32 accumulation, f32 inter-layer scratch) vs f32 reference.
    np.testing.assert_allclose(np.asarray(out), np.asarray(ref), rtol=3e-2, atol=3e-2)
    assert out.shape == (N, out_channels, Hh, Ww)

    print("KERNEL_OK")
</pallas_src>

<mosaic_0001>
module attributes {stable_mosaic.version = 11 : i64} {
  func.func @_fused_conv_stack_kernel(%arg0: i32, %arg1: memref<1x324x4xbf16, #tpu.memory_space<vmem>>, %arg2: memref<36x8xbf16, #tpu.memory_space<vmem>>, %arg3: memref<1x8xf32, #tpu.memory_space<vmem>>, %arg4: memref<72x16xbf16, #tpu.memory_space<vmem>>, %arg5: memref<1x16xf32, #tpu.memory_space<vmem>>, %arg6: memref<144x4xbf16, #tpu.memory_space<vmem>>, %arg7: memref<1x4xf32, #tpu.memory_space<vmem>>, %arg8: memref<1x324x4xf32, #tpu.memory_space<vmem>>, %arg9: memref<324x16xf32, #tpu.memory_space<vmem>>, %arg10: memref<324x16xf32, #tpu.memory_space<vmem>>) attributes {dimension_semantics = [#tpu.dimension_semantics<parallel>], iteration_bounds = array<i64: 2>, scalar_prefetch = 0 : i64, scratch_operands = 2 : i64, tpu.core_type = #tpu.core_type<tc>, window_params = [{transform_indices = @transform_0, window_bounds = array<i64: 1, 324, 4>}, {pipeline_mode = #tpu.pipeline_mode<synchronous>, transform_indices = @transform_1, window_bounds = array<i64: 36, 8>}, {pipeline_mode = #tpu.pipeline_mode<synchronous>, transform_indices = @transform_2, window_bounds = array<i64: 1, 8>}, {pipeline_mode = #tpu.pipeline_mode<synchronous>, transform_indices = @transform_3, window_bounds = array<i64: 72, 16>}, {pipeline_mode = #tpu.pipeline_mode<synchronous>, transform_indices = @transform_4, window_bounds = array<i64: 1, 16>}, {pipeline_mode = #tpu.pipeline_mode<synchronous>, transform_indices = @transform_5, window_bounds = array<i64: 144, 4>}, {pipeline_mode = #tpu.pipeline_mode<synchronous>, transform_indices = @transform_6, window_bounds = array<i64: 1, 4>}, {transform_indices = @transform_7, window_bounds = array<i64: 1, 324, 4>}]} {
    %cst = arith.constant 0.000000e+00 : f32
    %0 = vector.broadcast %cst : f32 to vector<19x16xf32>
    %c0 = arith.constant 0 : index
    %c0_0 = arith.constant 0 : index
    %1 = vector.load %arg9[%c0, %c0_0] : memref<324x16xf32, #tpu.memory_space<vmem>>, vector<19x16xf32>
    tpu.vector_store %arg9[%c0, %c0_0], %0 {strides = array<i32>} : memref<324x16xf32, #tpu.memory_space<vmem>>, vector<19x16xf32>,
    %cst_1 = arith.constant 0.000000e+00 : f32
    %2 = vector.broadcast %cst_1 : f32 to vector<19x16xf32>
    %c305 = arith.constant 305 : index
    %c0_2 = arith.constant 0 : index
    %3 = vector.load %arg9[%c305, %c0_2] : memref<324x16xf32, #tpu.memory_space<vmem>>, vector<19x16xf32>
    tpu.vector_store %arg9[%c305, %c0_2], %2 {strides = array<i32>} : memref<324x16xf32, #tpu.memory_space<vmem>>, vector<19x16xf32>,
    %cst_3 = arith.constant 0.000000e+00 : f32
    %4 = vector.broadcast %cst_3 : f32 to vector<19x16xf32>
    %c0_4 = arith.constant 0 : index
    %c0_5 = arith.constant 0 : index
    %5 = vector.load %arg10[%c0_4, %c0_5] : memref<324x16xf32, #tpu.memory_space<vmem>>, vector<19x16xf32>
    tpu.vector_store %arg10[%c0_4, %c0_5], %4 {strides = array<i32>} : memref<324x16xf32, #tpu.memory_space<vmem>>, vector<19x16xf32>,
    %cst_6 = arith.constant 0.000000e+00 : f32
    %6 = vector.broadcast %cst_6 : f32 to vector<19x16xf32>
    %c305_7 = arith.constant 305 : index
    %c0_8 = arith.constant 0 : index
    %7 = vector.load %arg10[%c305_7, %c0_8] : memref<324x16xf32, #tpu.memory_space<vmem>>, vector<19x16xf32>
    tpu.vector_store %arg10[%c305_7, %c0_8], %6 {strides = array<i32>} : memref<324x16xf32, #tpu.memory_space<vmem>>, vector<19x16xf32>,
    %8 = tpu.iota {dimensions = array<i32: 0>} : vector<286x1xi32>
    %c19_i32 = arith.constant 19 : i32
    %9 = vector.broadcast %c19_i32 : i32 to vector<286x1xi32>
    %10 = arith.addi %8, %9 : vector<286x1xi32>
    %c18_i32 = arith.constant 18 : i32
    %c0_i32 = arith.constant 0 : i32
    %11 = arith.cmpi eq, %c18_i32, %c0_i32 : i32
    %c1_i32 = arith.constant 1 : i32
    %12 = arith.select %11, %c1_i32, %c18_i32 : i32
    %13 = vector.broadcast %12 : i32 to vector<286x1xi32>
    %14 = arith.remsi %10, %13 : vector<286x1xi32>
    %c0_i32_9 = arith.constant 0 : i32
    %15 = vector.broadcast %c0_i32_9 : i32 to vector<286x1xi32>
    %16 = arith.cmpi ne, %14, %15 : vector<286x1xi32>
    %c0_i32_10 = arith.constant 0 : i32
    %17 = vector.broadcast %c0_i32_10 : i32 to vector<286x1xi32>
    %18 = arith.cmpi slt, %14, %17 : vector<286x1xi32>
    %c0_i32_11 = arith.constant 0 : i32
    %19 = arith.cmpi slt, %12, %c0_i32_11 : i32
    %20 = vector.broadcast %19 : i1 to vector<286x1xi1>
    %21 = vector.broadcast %20 : vector<286x1xi1> to vector<286x1xi1>
    %22 = arith.xori %18, %21 : vector<286x1xi1>
    %23 = arith.andi %22, %16 : vector<286x1xi1>
    %24 = vector.broadcast %12 : i32 to vector<286x1xi32>
    %25 = arith.addi %14, %24 : vector<286x1xi32>
    %26 = arith.select %23, %25, %14 : vector<286x1xi1>, vector<286x1xi32>
    %c1_i32_12 = arith.constant 1 : i32
    %27 = vector.broadcast %c1_i32_12 : i32 to vector<286x1xi32>
    %28 = arith.cmpi sge, %26, %27 : vector<286x1xi32>
    %c16_i32 = arith.constant 16 : i32
    %29 = vector.broadcast %c16_i32 : i32 to vector<286x1xi32>
    %30 = arith.cmpi sle, %26, %29 : vector<286x1xi32>
    %31 = arith.andi %28, %30 : vector<286x1xi1>
    %c0_13 = arith.constant 0 : index
    %c0_14 = arith.constant 0 : index
    %c0_15 = arith.constant 0 : index
    %32 = vector.load %arg1[%c0_13, %c0_14, %c0_15] : memref<1x324x4xbf16, #tpu.memory_space<vmem>>, vector<1x286x4xbf16>
    %33 = vector.shape_cast %32 : vector<1x286x4xbf16> to vector<286x4xbf16>
    %c0_16 = arith.constant 0 : index
    %c1 = arith.constant 1 : index
    %c0_17 = arith.constant 0 : index
    %34 = vector.load %arg1[%c0_16, %c1, %c0_17] : memref<1x324x4xbf16, #tpu.memory_space<vmem>>, vector<1x286x4xbf16>
    %35 = vector.shape_cast %34 : vector<1x286x4xbf16> to vector<286x4xbf16>
    %c0_18 = arith.constant 0 : index
    %c2 = arith.constant 2 : index
    %c0_19 = arith.constant 0 : index
    %36 = vector.load %arg1[%c0_18, %c2, %c0_19] : memref<1x324x4xbf16, #tpu.memory_space<vmem>>, vector<1x286x4xbf16>
    %37 = vector.shape_cast %36 : vector<1x286x4xbf16> to vector<286x4xbf16>
    %c0_20 = arith.constant 0 : index
    %c18 = arith.constant 18 : index
    %c0_21 = arith.constant 0 : index
    %38 = vector.load %arg1[%c0_20, %c18, %c0_21] : memref<1x324x4xbf16, #tpu.memory_space<vmem>>, vector<1x286x4xbf16>
    %39 = vector.shape_cast %38 : vector<1x286x4xbf16> to vector<286x4xbf16>
    %c0_22 = arith.constant 0 : index
    %c19 = arith.constant 19 : index
    %c0_23 = arith.constant 0 : index
    %40 = vector.load %arg1[%c0_22, %c19, %c0_23] : memref<1x324x4xbf16, #tpu.memory_space<vmem>>, vector<1x286x4xbf16>
    %41 = vector.shape_cast %40 : vector<1x286x4xbf16> to vector<286x4xbf16>
    %c0_24 = arith.constant 0 : index
    %c20 = arith.constant 20 : index
    %c0_25 = arith.constant 0 : index
    %42 = vector.load %arg1[%c0_24, %c20, %c0_25] : memref<1x324x4xbf16, #tpu.memory_space<vmem>>, vector<1x286x4xbf16>
    %43 = vector.shape_cast %42 : vector<1x286x4xbf16> to vector<286x4xbf16>
    %c0_26 = arith.constant 0 : index
    %c36 = arith.constant 36 : index
    %c0_27 = arith.constant 0 : index
    %44 = vector.load %arg1[%c0_26, %c36, %c0_27] : memref<1x324x4xbf16, #tpu.memory_space<vmem>>, vector<1x286x4xbf16>
    %45 = vector.shape_cast %44 : vector<1x286x4xbf16> to vector<286x4xbf16>
    %c0_28 = arith.constant 0 : index
    %c37 = arith.constant 37 : index
    %c0_29 = arith.constant 0 : index
    %46 = vector.load %arg1[%c0_28, %c37, %c0_29] : memref<1x324x4xbf16, #tpu.memory_space<vmem>>, vector<1x286x4xbf16>
    %47 = vector.shape_cast %46 : vector<1x286x4xbf16> to vector<286x4xbf16>
    %c0_30 = arith.constant 0 : index
    %c38 = arith.constant 38 : index
    %c0_31 = arith.constant 0 : index
    %48 = vector.load %arg1[%c0_30, %c38, %c0_31] : memref<1x324x4xbf16, #tpu.memory_space<vmem>>, vector<1x286x4xbf16>
    %49 = vector.shape_cast %48 : vector<1x286x4xbf16> to vector<286x4xbf16>
    %50 = tpu.concatenate %33, %35, %37, %39, %41, %43, %45, %47, %49 in 1 : vector<286x4xbf16>, vector<286x4xbf16>, vector<286x4xbf16>, vector<286x4xbf16>, vector<286x4xbf16>, vector<286x4xbf16>, vector<286x4xbf16>, vector<286x4xbf16>, vector<286x4xbf16> -> vector<286x36xbf16>
    %c0_32 = arith.constant 0 : index
    %c0_33 = arith.constant 0 : index
    %51 = vector.load %arg2[%c0_32, %c0_33] : memref<36x8xbf16, #tpu.memory_space<vmem>>, vector<36x8xbf16>
    %cst_34 = arith.constant dense<0.000000e+00> : vector<286x8xf32>
    %52 = tpu.matmul %50, %51, %cst_34 {dimension_numbers = #tpu.dot_dimension_numbers<[1], [0], [0], [1], [0, 0, 1, 1], [], []>} : vector<286x36xbf16>, vector<36x8xbf16>, vector<286x8xf32> -> vector<286x8xf32>
    %c0_35 = arith.constant 0 : index
    %c0_36 = arith.constant 0 : index
    %53 = vector.load %arg3[%c0_35, %c0_36] : memref<1x8xf32, #tpu.memory_space<vmem>>, vector<1x8xf32>
    %54 = vector.broadcast %53 : vector<1x8xf32> to vector<286x8xf32>
    %55 = arith.addf %52, %54 : vector<286x8xf32>
    %cst_37 = arith.constant 0.000000e+00 : f32
    %56 = vector.broadcast %cst_37 : f32 to vector<286x8xf32>
    %57 = arith.maximumf %55, %56 : vector<286x8xf32>
    %cst_38 = arith.constant 0.000000e+00 : f32
    %58 = vector.shape_cast %31 : vector<286x1xi1> to vector<286x1xi1>
    %59 = vector.broadcast %58 : vector<286x1xi1> to vector<286x8xi1>
    %60 = vector.broadcast %cst_38 : f32 to vector<286x8xf32>
    %61 = arith.select %59, %57, %60 : vector<286x8xi1>, vector<286x8xf32>
    %c19_39 = arith.constant 19 : index
    %c0_40 = arith.constant 0 : index
    %62 = vector.load %arg9[%c19_39, %c0_40] : memref<324x16xf32, #tpu.memory_space<vmem>>, vector<286x8xf32>
    tpu.vector_store %arg9[%c19_39, %c0_40], %61 {strides = array<i32>} : memref<324x16xf32, #tpu.memory_space<vmem>>, vector<286x8xf32>,
    %c0_41 = arith.constant 0 : index
    %c0_42 = arith.constant 0 : index
    %63 = vector.load %arg9[%c0_41, %c0_42] : memref<324x16xf32, #tpu.memory_space<vmem>>, vector<286x8xf32>
    %64 = arith.truncf %63 : vector<286x8xf32> to vector<286x8xbf16>
    %c1_43 = arith.constant 1 : index
    %c0_44 = arith.constant 0 : index
    %65 = vector.load %arg9[%c1_43, %c0_44] : memref<324x16xf32, #tpu.memory_space<vmem>>, vector<286x8xf32>
    %66 = arith.truncf %65 : vector<286x8xf32> to vector<286x8xbf16>
    %c2_45 = arith.constant 2 : index
    %c0_46 = arith.constant 0 : index
    %67 = vector.load %arg9[%c2_45, %c0_46] : memref<324x16xf32, #tpu.memory_space<vmem>>, vector<286x8xf32>
    %68 = arith.truncf %67 : vector<286x8xf32> to vector<286x8xbf16>
    %c18_47 = arith.constant 18 : index
    %c0_48 = arith.constant 0 : index
    %69 = vector.load %arg9[%c18_47, %c0_48] : memref<324x16xf32, #tpu.memory_space<vmem>>, vector<286x8xf32>
    %70 = arith.truncf %69 : vector<286x8xf32> to vector<286x8xbf16>
    %c19_49 = arith.constant 19 : index
    %c0_50 = arith.constant 0 : index
    %71 = vector.load %arg9[%c19_49, %c0_50] : memref<324x16xf32, #tpu.memory_space<vmem>>, vector<286x8xf32>
    %72 = arith.truncf %71 : vector<286x8xf32> to vector<286x8xbf16>
    %c20_51 = arith.constant 20 : index
    %c0_52 = arith.constant 0 : index
    %73 = vector.load %arg9[%c20_51, %c0_52] : memref<324x16xf32, #tpu.memory_space<vmem>>, vector<286x8xf32>
    %74 = arith.truncf %73 : vector<286x8xf32> to vector<286x8xbf16>
    %c36_53 = arith.constant 36 : index
    %c0_54 = arith.constant 0 : index
    %75 = vector.load %arg9[%c36_53, %c0_54] : memref<324x16xf32, #tpu.memory_space<vmem>>, vector<286x8xf32>
    %76 = arith.truncf %75 : vector<286x8xf32> to vector<286x8xbf16>
    %c37_55 = arith.constant 37 : index
    %c0_56 = arith.constant 0 : index
    %77 = vector.load %arg9[%c37_55, %c0_56] : memref<324x16xf32, #tpu.memory_space<vmem>>, vector<286x8xf32>
    %78 = arith.truncf %77 : vector<286x8xf32> to vector<286x8xbf16>
    %c38_57 = arith.constant 38 : index
    %c0_58 = arith.constant 0 : index
    %79 = vector.load %arg9[%c38_57, %c0_58] : memref<324x16xf32, #tpu.memory_space<vmem>>, vector<286x8xf32>
    %80 = arith.truncf %79 : vector<286x8xf32> to vector<286x8xbf16>
    %81 = tpu.concatenate %64, %66, %68, %70, %72, %74, %76, %78, %80 in 1 : vector<286x8xbf16>, vector<286x8xbf16>, vector<286x8xbf16>, vector<286x8xbf16>, vector<286x8xbf16>, vector<286x8xbf16>, vector<286x8xbf16>, vector<286x8xbf16>, vector<286x8xbf16> -> vector<286x72xbf16>
    %c0_59 = arith.constant 0 : index
    %c0_60 = arith.constant 0 : index
    %82 = vector.load %arg4[%c0_59, %c0_60] : memref<72x16xbf16, #tpu.memory_space<vmem>>, vector<72x16xbf16>
    %cst_61 = arith.constant dense<0.000000e+00> : vector<286x16xf32>
    %83 = tpu.matmul %81, %82, %cst_61 {dimension_numbers = #tpu.dot_dimension_numbers<[1], [0], [0], [1], [0, 0, 1, 1], [], []>} : vector<286x72xbf16>, vector<72x16xbf16>, vector<286x16xf32> -> vector<286x16xf32>
    %c0_62 = arith.constant 0 : index
    %c0_63 = arith.constant 0 : index
    %84 = vector.load %arg5[%c0_62, %c0_63] : memref<1x16xf32, #tpu.memory_space<vmem>>, vector<1x16xf32>
    %85 = vector.broadcast %84 : vector<1x16xf32> to vector<286x16xf32>
    %86 = arith.addf %83, %85 : vector<286x16xf32>
    %cst_64 = arith.constant 0.000000e+00 : f32
    %87 = vector.broadcast %cst_64 : f32 to vector<286x16xf32>
    %88 = arith.maximumf %86, %87 : vector<286x16xf32>
    %cst_65 = arith.constant 0.000000e+00 : f32
    %89 = vector.shape_cast %31 : vector<286x1xi1> to vector<286x1xi1>
    %90 = vector.broadcast %89 : vector<286x1xi1> to vector<286x16xi1>
    %91 = vector.broadcast %cst_65 : f32 to vector<286x16xf32>
    %92 = arith.select %90, %88, %91 : vector<286x16xi1>, vector<286x16xf32>
    %c19_66 = arith.constant 19 : index
    %c0_67 = arith.constant 0 : index
    %93 = vector.load %arg10[%c19_66, %c0_67] : memref<324x16xf32, #tpu.memory_space<vmem>>, vector<286x16xf32>
    tpu.vector_store %arg10[%c19_66, %c0_67], %92 {strides = array<i32>} : memref<324x16xf32, #tpu.memory_space<vmem>>, vector<286x16xf32>,
    %c0_68 = arith.constant 0 : index
    %c0_69 = arith.constant 0 : index
    %94 = vector.load %arg10[%c0_68, %c0_69] : memref<324x16xf32, #tpu.memory_space<vmem>>, vector<286x16xf32>
    %95 = arith.truncf %94 : vector<286x16xf32> to vector<286x16xbf16>
    %c1_70 = arith.constant 1 : index
    %c0_71 = arith.constant 0 : index
    %96 = vector.load %arg10[%c1_70, %c0_71] : memref<324x16xf32, #tpu.memory_space<vmem>>, vector<286x16xf32>
    %97 = arith.truncf %96 : vector<286x16xf32> to vector<286x16xbf16>
    %c2_72 = arith.constant 2 : index
    %c0_73 = arith.constant 0 : index
    %98 = vector.load %arg10[%c2_72, %c0_73] : memref<324x16xf32, #tpu.memory_space<vmem>>, vector<286x16xf32>
    %99 = arith.truncf %98 : vector<286x16xf32> to vector<286x16xbf16>
    %c18_74 = arith.constant 18 : index
    %c0_75 = arith.constant 0 : index
    %100 = vector.load %arg10[%c18_74, %c0_75] : memref<324x16xf32, #tpu.memory_space<vmem>>, vector<286x16xf32>
    %101 = arith.truncf %100 : vector<286x16xf32> to vector<286x16xbf16>
    %c19_76 = arith.constant 19 : index
    %c0_77 = arith.constant 0 : index
    %102 = vector.load %arg10[%c19_76, %c0_77] : memref<324x16xf32, #tpu.memory_space<vmem>>, vector<286x16xf32>
    %103 = arith.truncf %102 : vector<286x16xf32> to vector<286x16xbf16>
    %c20_78 = arith.constant 20 : index
    %c0_79 = arith.constant 0 : index
    %104 = vector.load %arg10[%c20_78, %c0_79] : memref<324x16xf32, #tpu.memory_space<vmem>>, vector<286x16xf32>
    %105 = arith.truncf %104 : vector<286x16xf32> to vector<286x16xbf16>
    %c36_80 = arith.constant 36 : index
    %c0_81 = arith.constant 0 : index
    %106 = vector.load %arg10[%c36_80, %c0_81] : memref<324x16xf32, #tpu.memory_space<vmem>>, vector<286x16xf32>
    %107 = arith.truncf %106 : vector<286x16xf32> to vector<286x16xbf16>
    %c37_82 = arith.constant 37 : index
    %c0_83 = arith.constant 0 : index
    %108 = vector.load %arg10[%c37_82, %c0_83] : memref<324x16xf32, #tpu.memory_space<vmem>>, vector<286x16xf32>
    %109 = arith.truncf %108 : vector<286x16xf32> to vector<286x16xbf16>
    %c38_84 = arith.constant 38 : index
    %c0_85 = arith.constant 0 : index
    %110 = vector.load %arg10[%c38_84, %c0_85] : memref<324x16xf32, #tpu.memory_space<vmem>>, vector<286x16xf32>
    %111 = arith.truncf %110 : vector<286x16xf32> to vector<286x16xbf16>
    %112 = tpu.concatenate %95, %97, %99, %101, %103, %105, %107, %109, %111 in 1 : vector<286x16xbf16>, vector<286x16xbf16>, vector<286x16xbf16>, vector<286x16xbf16>, vector<286x16xbf16>, vector<286x16xbf16>, vector<286x16xbf16>, vector<286x16xbf16>, vector<286x16xbf16> -> vector<286x144xbf16>
    %c0_86 = arith.constant 0 : index
    %c0_87 = arith.constant 0 : index
    %113 = vector.load %arg6[%c0_86, %c0_87] : memref<144x4xbf16, #tpu.memory_space<vmem>>, vector<144x4xbf16>
    %cst_88 = arith.constant dense<0.000000e+00> : vector<286x4xf32>
    %114 = tpu.matmul %112, %113, %cst_88 {dimension_numbers = #tpu.dot_dimension_numbers<[1], [0], [0], [1], [0, 0, 1, 1], [], []>} : vector<286x144xbf16>, vector<144x4xbf16>, vector<286x4xf32> -> vector<286x4xf32>
    %c0_89 = arith.constant 0 : index
    %c0_90 = arith.constant 0 : index
    %115 = vector.load %arg7[%c0_89, %c0_90] : memref<1x4xf32, #tpu.memory_space<vmem>>, vector<1x4xf32>
    %116 = vector.broadcast %115 : vector<1x4xf32> to vector<286x4xf32>
    %117 = arith.addf %114, %116 : vector<286x4xf32>
    %c0_91 = arith.constant 0 : index
    %c19_92 = arith.constant 19 : index
    %c0_93 = arith.constant 0 : index
    %118 = vector.load %arg8[%c0_91, %c19_92, %c0_93] : memref<1x324x4xf32, #tpu.memory_space<vmem>>, vector<1x286x4xf32>
    %119 = vector.shape_cast %118 : vector<1x286x4xf32> to vector<286x4xf32>
    %120 = vector.shape_cast %117 : vector<286x4xf32> to vector<1x286x4xf32>
    tpu.vector_store %arg8[%c0_91, %c19_92, %c0_93], %120 {strides = array<i32>} : memref<1x324x4xf32, #tpu.memory_space<vmem>>, vector<1x286x4xf32>,
    return
  }
  func.func @transform_0(%arg0: i32) -> (i32, i32, i32) {
    %c0_i32 = arith.constant 0 : i32
    %c0_i32_0 = arith.constant 0 : i32
    %c0_i32_1 = arith.constant 0 : i32
    return %arg0, %c0_i32, %c0_i32_0 : i32, i32, i32
  }
  func.func @transform_1(%arg0: i32) -> (i32, i32) {
    %c0_i32 = arith.constant 0 : i32
    %c0_i32_0 = arith.constant 0 : i32
    %c0_i32_1 = arith.constant 0 : i32
    return %c0_i32, %c0_i32_0 : i32, i32
  }
  func.func @transform_2(%arg0: i32) -> (i32, i32) {
    %c0_i32 = arith.constant 0 : i32
    %c0_i32_0 = arith.constant 0 : i32
    %c0_i32_1 = arith.constant 0 : i32
    return %c0_i32, %c0_i32_0 : i32, i32
  }
  func.func @transform_3(%arg0: i32) -> (i32, i32) {
    %c0_i32 = arith.constant 0 : i32
    %c0_i32_0 = arith.constant 0 : i32
    %c0_i32_1 = arith.constant 0 : i32
    return %c0_i32, %c0_i32_0 : i32, i32
  }
  func.func @transform_4(%arg0: i32) -> (i32, i32) {
    %c0_i32 = arith.constant 0 : i32
    %c0_i32_0 = arith.constant 0 : i32
    %c0_i32_1 = arith.constant 0 : i32
    return %c0_i32, %c0_i32_0 : i32, i32
  }
  func.func @transform_5(%arg0: i32) -> (i32, i32) {
    %c0_i32 = arith.constant 0 : i32
    %c0_i32_0 = arith.constant 0 : i32
    %c0_i32_1 = arith.constant 0 : i32
    return %c0_i32, %c0_i32_0 : i32, i32
  }
  func.func @transform_6(%arg0: i32) -> (i32, i32) {
    %c0_i32 = arith.constant 0 : i32
    %c0_i32_0 = arith.constant 0 : i32
    %c0_i32_1 = arith.constant 0 : i32
    return %c0_i32, %c0_i32_0 : i32, i32
  }
  func.func @transform_7(%arg0: i32) -> (i32, i32, i32) {
    %c0_i32 = arith.constant 0 : i32
    %c0_i32_0 = arith.constant 0 : i32
    %c0_i32_1 = arith.constant 0 : i32
    return %arg0, %c0_i32, %c0_i32_0 : i32, i32, i32
  }
}

</mosaic_0001>

<llo_original>
// kernel: tpu_custom_call.1
$region0: #{tpu_custom_call.1}
  #allocation0 [shape = 'u32[]', space=smem, size = 0x4, offset = 0x4, fixed_abs, tag = 'smem constant byte address 0x4 - core index']
  #allocation1 [shape = 'u32[144,128]{1,0:T(1,128)}', space=vmem, size = 0x12000, scoped, tag = 'internal scratch']
  #allocation2 [shape = 'f32[324,16]{1,0:T(8,128)}', space=vmem, size = 0x29000, scoped, tag = 'scratch operand']
  #allocation3 [shape = 'f32[324,16]{1,0:T(8,128)}', space=vmem, size = 0x29000, scoped, tag = 'scratch operand']
  %s0 = inlined_call_operand.vmem [shape: bf16[2,324,4], index: 0, kind: input, shape index: {}]
  %s1 = inlined_call_operand.vmem [shape: bf16[36,8], index: 1, kind: input, shape index: {}]
  %s2 = inlined_call_operand.vmem [shape: f32[1,8], index: 2, kind: input, shape index: {}]
  %s3 = inlined_call_operand.vmem [shape: bf16[72,16], index: 3, kind: input, shape index: {}]
  %s4 = inlined_call_operand.vmem [shape: f32[1,16], index: 4, kind: input, shape index: {}]
  %s5 = inlined_call_operand.vmem [shape: bf16[144,4], index: 5, kind: input, shape index: {}]
  %s6 = inlined_call_operand.vmem [shape: f32[1,4], index: 6, kind: input, shape index: {}]
  %s7 = inlined_call_operand.vmem [shape: f32[2,324,4], index: 7, kind: output, shape index: {}]
  %s8 = sld [smem:[#allocation0]]
  $region61: #{tpu_custom_call.1} parent=0
    _
  %s10 = ssub.s32 1, %s8
  %s11 = scalar_select 0, %s10, %s8
  loop: start=0, step=1, limit=4
  $region2: #{tpu_custom_call.1} parent=0 // loop_pre_header
    _
  $region3: #{tpu_custom_call.1} parent=0 // loop_header
    %s13 = sphi 0, %s17
    %p14 = scmp.ge.s32.totalorder %s13, 4
    %s23 = sphi 0, %s25
    %s26 = sphi 0, %s23
    %s27 = sphi 0, %s26
    %s43 = sphi 0, %s27
    %s47 = sphi 0, %s47
    %s49 = sphi 0, %s47
    %s50 = sphi 0, %s49
    %s64 = sphi 0, %s50
    %s68 = sphi 0, %s68
    %s70 = sphi 0, %s68
    %s71 = sphi 0, %s70
    %s85 = sphi 0, %s71
    %s89 = sphi 0, %s89
    %s91 = sphi 0, %s89
    %s92 = sphi 0, %s91
    %s106 = sphi 0, %s92
    %s110 = sphi 0, %s110
    %s112 = sphi 0, %s110
    %s113 = sphi 0, %s112
    %s127 = sphi 0, %s113
    %s131 = sphi 0, %s131
    %s133 = sphi 0, %s131
    %s134 = sphi 0, %s133
    %s148 = sphi 0, %s134
    %s152 = sphi 0, %s152
    %s154 = sphi 0, %s152
    %s155 = sphi 0, %s154
    %s169 = sphi 0, %s155
    %s175 = sphi 0, %s177
    %s178 = sphi 0, %s175
    %s179 = sphi 0, %s178
    %s195 = sphi 0, %s179
  $region4: #{tpu_custom_call.1} parent=0 // loop_header_branch
    %16 = sbr.rel (%p14) target = $region8
  $region5: #{tpu_custom_call.1} parent=0 // loop_body
    %s18 = ssub.s32 %s13, 1
    %s19 = ssub.s32 %s13, 2
    %s20 = sadd.s32 %s13, 1
    %s21 = ssub.s32 %s13, %s20
    %p22 = scmp.eq.s32.totalorder %s21, 0
    %s24 = sadd.s32 %s23, 1
    %s25 = scalar_select %p22, %s23, %s24
    %p28 = pneg %p22
    %p29 = scmp.eq.s32.totalorder %s13, 1
    %p30 = por %p28, %p29
    %p31 = scmp.ne.s32.totalorder %s23, %s26
    %p32 = scmp.eq.s32.totalorder %s13, 0
    %p33 = por %p31, %p32
    %p34 = scmp.ne.s32.totalorder %s23, %s26
    %p35 = scmp.eq.s32.totalorder %s18, 1
    %p36 = por %p34, %p35
    %p37 = scmp.ne.s32.totalorder %s26, %s27
    %p38 = scmp.eq.s32.totalorder %s18, 0
    %p39 = por %p37, %p38
    %p40 = scmp.ne.s32.totalorder %s26, %s27
    %p41 = scmp.eq.s32.totalorder %s19, 1
    %p42 = por %p40, %p41
    %p44 = scmp.ne.s32.totalorder %s27, %s43
    %p45 = scmp.eq.s32.totalorder %s19, 0
    %p46 = por %p44, %p45
    %s48 = sadd.s32 %s47, 1
    %p51 = scmp.eq.s32.totalorder %s13, 1
    %p52 = scmp.ne.s32.totalorder %s47, %s49
    %p53 = scmp.eq.s32.totalorder %s13, 0
    %p54 = por %p52, %p53
    %p55 = scmp.ne.s32.totalorder %s47, %s49
    %p56 = scmp.eq.s32.totalorder %s18, 1
    %p57 = por %p55, %p56
    %p58 = scmp.ne.s32.totalorder %s49, %s50
    %p59 = scmp.eq.s32.totalorder %s18, 0
    %p60 = por %p58, %p59
    %p61 = scmp.ne.s32.totalorder %s49, %s50
    %p62 = scmp.eq.s32.totalorder %s19, 1
    %p63 = por %p61, %p62
    %p65 = scmp.ne.s32.totalorder %s50, %s64
    %p66 = scmp.eq.s32.totalorder %s19, 0
    %p67 = por %p65, %p66
    %s69 = sadd.s32 %s68, 1
    %p72 = scmp.eq.s32.totalorder %s13, 1
    %p73 = scmp.ne.s32.totalorder %s68, %s70
    %p74 = scmp.eq.s32.totalorder %s13, 0
    %p75 = por %p73, %p74
    %p76 = scmp.ne.s32.totalorder %s68, %s70
    %p77 = scmp.eq.s32.totalorder %s18, 1
    %p78 = por %p76, %p77
    %p79 = scmp.ne.s32.totalorder %s70, %s71
    %p80 = scmp.eq.s32.totalorder %s18, 0
    %p81 = por %p79, %p80
    %p82 = scmp.ne.s32.totalorder %s70, %s71
    %p83 = scmp.eq.s32.totalorder %s19, 1
    %p84 = por %p82, %p83
    %p86 = scmp.ne.s32.totalorder %s71, %s85
    %p87 = scmp.eq.s32.totalorder %s19, 0
    %p88 = por %p86, %p87
    %s90 = sadd.s32 %s89, 1
    %p93 = scmp.eq.s32.totalorder %s13, 1
    %p94 = scmp.ne.s32.totalorder %s89, %s91
    %p95 = scmp.eq.s32.totalorder %s13, 0
    %p96 = por %p94, %p95
    %p97 = scmp.ne.s32.totalorder %s89, %s91
    %p98 = scmp.eq.s32.totalorder %s18, 1
    %p99 = por %p97, %p98
    %p100 = scmp.ne.s32.totalorder %s91, %s92
    %p101 = scmp.eq.s32.totalorder %s18, 0
    %p102 = por %p100, %p101
    %p103 = scmp.ne.s32.totalorder %s91, %s92
    %p104 = scmp.eq.s32.totalorder %s19, 1
    %p105 = por %p103, %p104
    %p107 = scmp.ne.s32.totalorder %s92, %s106
    %p108 = scmp.eq.s32.totalorder %s19, 0
    %p109 = por %p107, %p108
    %s111 = sadd.s32 %s110, 1
    %p114 = scmp.eq.s32.totalorder %s13, 1
    %p115 = scmp.ne.s32.totalorder %s110, %s112
    %p116 = scmp.eq.s32.totalorder %s13, 0
    %p117 = por %p115, %p116
    %p118 = scmp.ne.s32.totalorder %s110, %s112
    %p119 = scmp.eq.s32.totalorder %s18, 1
    %p120 = por %p118, %p119
    %p121 = scmp.ne.s32.totalorder %s112, %s113
    %p122 = scmp.eq.s32.totalorder %s18, 0
    %p123 = por %p121, %p122
    %p124 = scmp.ne.s32.totalorder %s112, %s113
    %p125 = scmp.eq.s32.totalorder %s19, 1
    %p126 = por %p124, %p125
    %p128 = scmp.ne.s32.totalorder %s113, %s127
    %p129 = scmp.eq.s32.totalorder %s19, 0
    %p130 = por %p128, %p129
    %s132 = sadd.s32 %s131, 1
    %p135 = scmp.eq.s32.totalorder %s13, 1
    %p136 = scmp.ne.s32.totalorder %s131, %s133
    %p137 = scmp.eq.s32.totalorder %s13, 0
    %p138 = por %p136, %p137
    %p139 = scmp.ne.s32.totalorder %s131, %s133
    %p140 = scmp.eq.s32.totalorder %s18, 1
    %p141 = por %p139, %p140
    %p142 = scmp.ne.s32.totalorder %s133, %s134
    %p143 = scmp.eq.s32.totalorder %s18, 0
    %p144 = por %p142, %p143
    %p145 = scmp.ne.s32.totalorder %s133, %s134
    %p146 = scmp.eq.s32.totalorder %s19, 1
    %p147 = por %p145, %p146
    %p149 = scmp.ne.s32.totalorder %s134, %s148
    %p150 = scmp.eq.s32.totalorder %s19, 0
    %p151 = por %p149, %p150
    %s153 = sadd.s32 %s152, 1
    %p156 = scmp.eq.s32.totalorder %s13, 1
    %p157 = scmp.ne.s32.totalorder %s152, %s154
    %p158 = scmp.eq.s32.totalorder %s13, 0
    %p159 = por %p157, %p158
    %p160 = scmp.ne.s32.totalorder %s152, %s154
    %p161 = scmp.eq.s32.totalorder %s18, 1
    %p162 = por %p160, %p161
    %p163 = scmp.ne.s32.totalorder %s154, %s155
    %p164 = scmp.eq.s32.totalorder %s18, 0
    %p165 = por %p163, %p164
    %p166 = scmp.ne.s32.totalorder %s154, %s155
    %p167 = scmp.eq.s32.totalorder %s19, 1
    %p168 = por %p166, %p167
    %p170 = scmp.ne.s32.totalorder %s155, %s169
    %p171 = scmp.eq.s32.totalorder %s19, 0
    %p172 = por %p170, %p171
    %s173 = ssub.s32 %s13, %s20
    %p174 = scmp.eq.s32.totalorder %s173, 0
    %s176 = sadd.s32 %s175, 1
    %s177 = scalar_select %p174, %s175, %s176
    %p180 = pneg %p174
    %p181 = scmp.eq.s32.totalorder %s13, 1
    %p182 = por %p180, %p181
    %p183 = scmp.ne.s32.totalorder %s175, %s178
    %p184 = scmp.eq.s32.totalorder %s13, 0
    %p185 = por %p183, %p184
    %p186 = scmp.ne.s32.totalorder %s175, %s178
    %p187 = scmp.eq.s32.totalorder %s18, 1
    %p188 = por %p186, %p187
    %p189 = scmp.ne.s32.totalorder %s178, %s179
    %p190 = scmp.eq.s32.totalorder %s18, 0
    %p191 = por %p189, %p190
    %p192 = scmp.ne.s32.totalorder %s178, %s179
    %p193 = scmp.eq.s32.totalorder %s19, 1
    %p194 = por %p192, %p193
    %p196 = scmp.ne.s32.totalorder %s179, %s195
    %p197 = scmp.eq.s32.totalorder %s19, 0
    %p198 = por %p196, %p197
    %p199 = scmp.le.s32.totalorder 1, %s13
    %p200 = scmp.lt.s32.totalorder %s13, 3
    %p201 = pnand %p199, %p200
    %p202 = pneg %p201
    // Predicated region
    $region9: #{tpu_custom_call.1} parent=5 // pred_check
      _
    $region10: #{tpu_custom_call.1} parent=5 // pred_check_branch
      %204 = sbr.rel (%p201) target = $region12
    $region11: #{tpu_custom_call.1} parent=5 // pred_region
      %s205 = ssub.s32 %s13, 1
      // Predicated region
      $region13: #{tpu_custom_call.1} parent=11 // pred_check
        %p206 = pneg %p60
      $region14: #{tpu_custom_call.1} parent=11 // pred_check_branch
        %208 = sbr.rel (%p206) target = $region16
      $region15: #{tpu_custom_call.1} parent=11 // pred_region
        _
      $region16: #{tpu_custom_call.1} parent=11 // pred_fallthru
        _
      // Predicated region
      $region17: #{tpu_custom_call.1} parent=11 // pred_check
        %p209 = pneg %p81
      $region18: #{tpu_custom_call.1} parent=11 // pred_check_branch
        %211 = sbr.rel (%p209) target = $region20
      $region19: #{tpu_custom_call.1} parent=11 // pred_region
        _
      $region20: #{tpu_custom_call.1} parent=11 // pred_fallthru
        _
      // Predicated region
      $region21: #{tpu_custom_call.1} parent=11 // pred_check
        %p212 = pneg %p102
      $region22: #{tpu_custom_call.1} parent=11 // pred_check_branch
        %214 = sbr.rel (%p212) target = $region24
      $region23: #{tpu_custom_call.1} parent=11 // pred_region
        _
      $region24: #{tpu_custom_call.1} parent=11 // pred_fallthru
        _
      // Predicated region
      $region25: #{tpu_custom_call.1} parent=11 // pred_check
        %p215 = pneg %p123
      $region26: #{tpu_custom_call.1} parent=11 // pred_check_branch
        %217 = sbr.rel (%p215) target = $region28
      $region27: #{tpu_custom_call.1} parent=11 // pred_region
        _
      $region28: #{tpu_custom_call.1} parent=11 // pred_fallthru
        _
      // Predicated region
      $region29: #{tpu_custom_call.1} parent=11 // pred_check
        %p218 = pneg %p144
      $region30: #{tpu_custom_call.1} parent=11 // pred_check_branch
        %220 = sbr.rel (%p218) target = $region32
      $region31: #{tpu_custom_call.1} parent=11 // pred_region
        _
      $region32: #{tpu_custom_call.1} parent=11 // pred_fallthru
        _
      // Predicated region
      $region33: #{tpu_custom_call.1} parent=11 // pred_check
        %p221 = pneg %p165
      $region34: #{tpu_custom_call.1} parent=11 // pred_check_branch
        %223 = sbr.rel (%p221) target = $region36
      $region35: #{tpu_custom_call.1} parent=11 // pred_region
        _
      $region36: #{tpu_custom_call.1} parent=11 // pred_fallthru
        _
    $region12: #{tpu_custom_call.1} parent=5 // pred_fallthru
      _
    %p224 = scmp.lt.s32.totalorder %s13, 2
    // Predicated region
    $region37: #{tpu_custom_call.1} parent=5 // pred_check
      %p225 = pneg %p224
    $region38: #{tpu_custom_call.1} parent=5 // pred_check_branch
      %227 = sbr.rel (%p225) target = $region40
    $region39: #{tpu_custom_call.1} parent=5 // pred_region
      // Predicated region
      $region41: #{tpu_custom_call.1} parent=39 // pred_check
        %p228 = pneg %p33
      $region42: #{tpu_custom_call.1} parent=39 // pred_check_branch
        %230 = sbr.rel (%p228) target = $region44
      $region43: #{tpu_custom_call.1} parent=39 // pred_region
        %p231 = scmp.lt.s32.totalorder %s13, 1
        %s232 = scalar_select %p231, %s13, 1
        %s233 = smul.addr %s232, 41
        %s234 = smul.addr %s233, 4
        %s235 = scalar_lea.vmem %s0, %s234
      $region44: #{tpu_custom_call.1} parent=39 // pred_fallthru
        _
    $region40: #{tpu_custom_call.1} parent=5 // pred_fallthru
      _
    %p236 = scmp.le.s32.totalorder 1, %s13
    %p237 = scmp.lt.s32.totalorder %s13, 3
    %p238 = pnand %p236, %p237
    %p239 = pneg %p238
    // Predicated region
    $region45: #{tpu_custom_call.1} parent=5 // pred_check
      _
    $region46: #{tpu_custom_call.1} parent=5 // pred_check_branch
      %241 = sbr.rel (%p238) target = $region48
    $region47: #{tpu_custom_call.1} parent=5 // pred_region
      %s242 = ssub.s32 %s13, 1
      %p243 = scmp.lt.s32.totalorder %s18, 1
      %s244 = scalar_select %p243, %s18, 1
      %s245 = smul.addr %s244, 41
      %s246 = smul.addr %s245, 4
      %s247 = scalar_lea.vmem %s0, %s246
      %p248 = pneg %p39
      %p249 = pneg %p36
      %p250 = pneg %p60
      %p251 = pneg %p57
      %p252 = pneg %p81
      %p253 = pneg %p78
      %p254 = pneg %p102
      %p255 = pneg %p99
      %p256 = pneg %p123
      %p257 = pneg %p120
      %p258 = pneg %p144
      %p259 = pneg %p141
      %p260 = pneg %p165
      %p261 = pneg %p162
      %p262 = pneg %p191
      %p263 = pneg %p188
      %p264 = scmp.lt.s32.totalorder %s18, 1
      %s265 = scalar_select %p264, %s18, 1
      %s266 = smul.addr %s265, 41
      %s267 = smul.addr %s266, 8
      %s268 = scalar_lea.vmem %s7, %s267
      %p269 = scmp.lt.s32.totalorder %s18, 1
      %s270 = scalar_select %p269, %s18, 1
      %s271 = smul.addr %s270, 41
      %s272 = smul.addr %s271, 4
      %s273 = scalar_lea.vmem %s0, %s272
      %p274 = scmp.lt.s32.totalorder %s18, 1
      %s275 = scalar_select %p274, %s18, 1
      %s276 = smul.addr %s275, 41
      %s277 = smul.addr %s276, 8
      %s278 = scalar_lea.vmem %s7, %s277
      %vm280 = vcmask 130048
      %281 = vst.msk [vmem:[#allocation2] sm:$0xff] %vm280, 0.0
      %282 = vst.msk [vmem:[#allocation2 + $0x8] sm:$0xff] %vm280, 0.0
      %vm283 = vcmask 124928
      %284 = vst.msk [vmem:[#allocation2 + $0x10] sm:$0x7] %vm283, 0.0
      %285 = vst.msk [vmem:[#allocation2 + $0x131] sm:$0xff] %vm280, 0.0
      %286 = vst.msk [vmem:[#allocation2 + $0x139] sm:$0xff] %vm280, 0.0
      %287 = vst.msk [vmem:[#allocation2 + $0x141] sm:$0x7] %vm283, 0.0
      %288 = vst.msk [vmem:[#allocation3] sm:$0xff] %vm280, 0.0
      %289 = vst.msk [vmem:[#allocation3 + $0x8] sm:$0xff] %vm280, 0.0
      %290 = vst.msk [vmem:[#allocation3 + $0x10] sm:$0x7] %vm283, 0.0
      %291 = vst.msk [vmem:[#allocation3 + $0x131] sm:$0xff] %vm280, 0.0
      %292 = vst.msk [vmem:[#allocation3 + $0x139] sm:$0xff] %vm280, 0.0
      %293 = vst.msk [vmem:[#allocation3 + $0x141] sm:$0x7] %vm283, 0.0
      %v294 = vlaneseq
      %v295 = vshrl.u32 %v294, 7
      %v296 = vadd.s32 %v295, 8
      %v297 = vadd.s32 %v295, 16
      %v298 = vadd.s32 %v295, 24
      %v299 = vadd.s32 %v295, 32
      %v300 = vadd.s32 %v295, 40
      %v301 = vadd.s32 %v295, 48
      %v302 = vadd.s32 %v295, 56
      %v303 = vadd.s32 %v295, 64
      %v304 = vadd.s32 %v295, 72
      %v305 = vadd.s32 %v295, 80
      %v306 = vadd.s32 %v295, 88
      %v307 = vadd.s32 %v295, 96
      %v308 = vadd.s32 %v295, 104
      %v309 = vadd.s32 %v295, 112
      %v310 = vadd.s32 %v295, 120
      %v311 = vadd.s32 %v295, 128
      %v312 = vadd.s32 %v295, 136
      %v313 = vadd.s32 %v295, 144
      %v314 = vadd.s32 %v295, 152
      %v315 = vadd.s32 %v295, 160
      %v316 = vadd.s32 %v295, 168
      %v317 = vadd.s32 %v295, 176
      %v318 = vadd.s32 %v295, 184
      %v319 = vadd.s32 %v295, 192
      %v320 = vadd.s32 %v295, 200
      %v321 = vadd.s32 %v295, 208
      %v322 = vadd.s32 %v295, 216
      %v323 = vadd.s32 %v295, 224
      %v324 = vadd.s32 %v295, 232
      %v325 = vadd.s32 %v295, 240
      %v326 = vadd.s32 %v295, 248
      %v327 = vadd.s32 %v295, 256
      %v328 = vadd.s32 %v295, 264
      %v329 = vadd.s32 %v295, 272
      %v330 = vadd.s32 %v295, 280
      %v331 = vadd.s32 %v295, 19
      %v332 = vadd.s32 %v296, 19
      %v333 = vadd.s32 %v297, 19
      %v334 = vadd.s32 %v298, 19
      %v335 = vadd.s32 %v299, 19
      %v336 = vadd.s32 %v300, 19
      %v337 = vadd.s32 %v301, 19
      %v338 = vadd.s32 %v302, 19
      %v339 = vadd.s32 %v303, 19
      %v340 = vadd.s32 %v304, 19
      %v341 = vadd.s32 %v305, 19
      %v342 = vadd.s32 %v306, 19
      %v343 = vadd.s32 %v307, 19
      %v344 = vadd.s32 %v308, 19
      %v345 = vadd.s32 %v309, 19
      %v346 = vadd.s32 %v310, 19
      %v347 = vadd.s32 %v311, 19
      %v348 = vadd.s32 %v312, 19
      %v349 = vadd.s32 %v313, 19
      %v350 = vadd.s32 %v314, 19
      %v351 = vadd.s32 %v315, 19
      %v352 = vadd.s32 %v316, 19
      %v353 = vadd.s32 %v317, 19
      %v354 = vadd.s32 %v318, 19
      %v355 = vadd.s32 %v319, 19
      %v356 = vadd.s32 %v320, 19
      %v357 = vadd.s32 %v321, 19
      %v358 = vadd.s32 %v322, 19
      %v359 = vadd.s32 %v323, 19
      %v360 = vadd.s32 %v324, 19
      %v361 = vadd.s32 %v325, 19
      %v362 = vadd.s32 %v326, 19
      %v363 = vadd.s32 %v327, 19
      %v364 = vadd.s32 %v328, 19
      %v365 = vadd.s32 %v329, 19
      %v366 = vadd.s32 %v330, 19
      %vm367 = vcmp.lt.s32.totalorder %v331, 0
      %v368 = vsub.s32 0, %v331
      %v369 = vsel %vm367, %v368, %v331
      %v370 = vmul.u32.u64.compose %v369, 3817748708
      %v371 = vextract.low.u32 %v370
      %v372 = vextract.high.u32 %v370
      %v373 = vshrl.u32 %v372, 4
      %v374 = vmul.u32 %v373, 18
      %v375 = vsub.s32 %v369, %v374
      %v376 = vsub.s32 0, %v375
      %v377 = vsel %vm367, %v376, %v375
      %vm378 = vcmp.lt.s32.totalorder %v332, 0
      %v379 = vsub.s32 0, %v332
      %v380 = vsel %vm378, %v379, %v332
      %v381 = vmul.u32.u64.compose %v380, 3817748708
      %v382 = vextract.low.u32 %v381
      %v383 = vextract.high.u32 %v381
      %v384 = vshrl.u32 %v383, 4
      %v385 = vmul.u32 %v384, 18
      %v386 = vsub.s32 %v380, %v385
      %v387 = vsub.s32 0, %v386
      %v388 = vsel %vm378, %v387, %v386
      %vm389 = vcmp.lt.s32.totalorder %v333, 0
      %v390 = vsub.s32 0, %v333
      %v391 = vsel %vm389, %v390, %v333
      %v392 = vmul.u32.u64.compose %v391, 3817748708
      %v393 = vextract.low.u32 %v392
      %v394 = vextract.high.u32 %v392
      %v395 = vshrl.u32 %v394, 4
      %v396 = vmul.u32 %v395, 18
      %v397 = vsub.s32 %v391, %v396
      %v398 = vsub.s32 0, %v397
      %v399 = vsel %vm389, %v398, %v397
      %vm400 = vcmp.lt.s32.totalorder %v334, 0
      %v401 = vsub.s32 0, %v334
      %v402 = vsel %vm400, %v401, %v334
      %v403 = vmul.u32.u64.compose %v402, 3817748708
      %v404 = vextract.low.u32 %v403
      %v405 = vextract.high.u32 %v403
      %v406 = vshrl.u32 %v405, 4
      %v407 = vmul.u32 %v406, 18
      %v408 = vsub.s32 %v402, %v407
      %v409 = vsub.s32 0, %v408
      %v410 = vsel %vm400, %v409, %v408
      %vm411 = vcmp.lt.s32.totalorder %v335, 0
      %v412 = vsub.s32 0, %v335
      %v413 = vsel %vm411, %v412, %v335
      %v414 = vmul.u32.u64.compose %v413, 3817748708
      %v415 = vextract.low.u32 %v414
      %v416 = vextract.high.u32 %v414
      %v417 = vshrl.u32 %v416, 4
      %v418 = vmul.u32 %v417, 18
      %v419 = vsub.s32 %v413, %v418
      %v420 = vsub.s32 0, %v419
      %v421 = vsel %vm411, %v420, %v419
      %vm422 = vcmp.lt.s32.totalorder %v336, 0
      %v423 = vsub.s32 0, %v336
      %v424 = vsel %vm422, %v423, %v336
      %v425 = vmul.u32.u64.compose %v424, 3817748708
      %v426 = vextract.low.u32 %v425
      %v427 = vextract.high.u32 %v425
      %v428 = vshrl.u32 %v427, 4
      %v429 = vmul.u32 %v428, 18
      %v430 = vsub.s32 %v424, %v429
      %v431 = vsub.s32 0, %v430
      %v432 = vsel %vm422, %v431, %v430
      %vm433 = vcmp.lt.s32.totalorder %v337, 0
      %v434 = vsub.s32 0, %v337
      %v435 = vsel %vm433, %v434, %v337
      %v436 = vmul.u32.u64.compose %v435, 3817748708
      %v437 = vextract.low.u32 %v436
      %v438 = vextract.high.u32 %v436
      %v439 = vshrl.u32 %v438, 4
      %v440 = vmul.u32 %v439, 18
      %v441 = vsub.s32 %v435, %v440
      %v442 = vsub.s32 0, %v441
      %v443 = vsel %vm433, %v442, %v441
      %vm444 = vcmp.lt.s32.totalorder %v338, 0
      %v445 = vsub.s32 0, %v338
      %v446 = vsel %vm444, %v445, %v338
      %v447 = vmul.u32.u64.compose %v446, 3817748708
      %v448 = vextract.low.u32 %v447
      %v449 = vextract.high.u32 %v447
      %v450 = vshrl.u32 %v449, 4
      %v451 = vmul.u32 %v450, 18
      %v452 = vsub.s32 %v446, %v451
      %v453 = vsub.s32 0, %v452
      %v454 = vsel %vm444, %v453, %v452
      %vm455 = vcmp.lt.s32.totalorder %v339, 0
      %v456 = vsub.s32 0, %v339
      %v457 = vsel %vm455, %v456, %v339
      %v458 = vmul.u32.u64.compose %v457, 3817748708
      %v459 = vextract.low.u32 %v458
      %v460 = vextract.high.u32 %v458
      %v461 = vshrl.u32 %v460, 4
      %v462 = vmul.u32 %v461, 18
      %v463 = vsub.s32 %v457, %v462
      %v464 = vsub.s32 0, %v463
      %v465 = vsel %vm455, %v464, %v463
      %vm466 = vcmp.lt.s32.totalorder %v340, 0
      %v467 = vsub.s32 0, %v340
      %v468 = vsel %vm466, %v467, %v340
      %v469 = vmul.u32.u64.compose %v468, 3817748708
      %v470 = vextract.low.u32 %v469
      %v471 = vextract.high.u32 %v469
      %v472 = vshrl.u32 %v471, 4
      %v473 = vmul.u32 %v472, 18
      %v474 = vsub.s32 %v468, %v473
      %v475 = vsub.s32 0, %v474
      %v476 = vsel %vm466, %v475, %v474
      %vm477 = vcmp.lt.s32.totalorder %v341, 0
      %v478 = vsub.s32 0, %v341
      %v479 = vsel %vm477, %v478, %v341
      %v480 = vmul.u32.u64.compose %v479, 3817748708
      %v481 = vextract.low.u32 %v480
      %v482 = vextract.high.u32 %v480
      %v483 = vshrl.u32 %v482, 4
      %v484 = vmul.u32 %v483, 18
      %v485 = vsub.s32 %v479, %v484
      %v486 = vsub.s32 0, %v485
      %v487 = vsel %vm477, %v486, %v485
      %vm488 = vcmp.lt.s32.totalorder %v342, 0
      %v489 = vsub.s32 0, %v342
      %v490 = vsel %vm488, %v489, %v342
      %v491 = vmul.u32.u64.compose %v490, 3817748708
      %v492 = vextract.low.u32 %v491
      %v493 = vextract.high.u32 %v491
      %v494 = vshrl.u32 %v493, 4
      %v495 = vmul.u32 %v494, 18
      %v496 = vsub.s32 %v490, %v495
      %v497 = vsub.s32 0, %v496
      %v498 = vsel %vm488, %v497, %v496
      %vm499 = vcmp.lt.s32.totalorder %v343, 0
      %v500 = vsub.s32 0, %v343
      %v501 = vsel %vm499, %v500, %v343
      %v502 = vmul.u32.u64.compose %v501, 3817748708
      %v503 = vextract.low.u32 %v502
      %v504 = vextract.high.u32 %v502
      %v505 = vshrl.u32 %v504, 4
      %v506 = vmul.u32 %v505, 18
      %v507 = vsub.s32 %v501, %v506
      %v508 = vsub.s32 0, %v507
      %v509 = vsel %vm499, %v508, %v507
      %vm510 = vcmp.lt.s32.totalorder %v344, 0
      %v511 = vsub.s32 0, %v344
      %v512 = vsel %vm510, %v511, %v344
      %v513 = vmul.u32.u64.compose %v512, 3817748708
      %v514 = vextract.low.u32 %v513
      %v515 = vextract.high.u32 %v513
      %v516 = vshrl.u32 %v515, 4
      %v517 = vmul.u32 %v516, 18
      %v518 = vsub.s32 %v512, %v517
      %v519 = vsub.s32 0, %v518
      %v520 = vsel %vm510, %v519, %v518
      %vm521 = vcmp.lt.s32.totalorder %v345, 0
      %v522 = vsub.s32 0, %v345
      %v523 = vsel %vm521, %v522, %v345
      %v524 = vmul.u32.u64.compose %v523, 3817748708
      %v525 = vextract.low.u32 %v524
      %v526 = vextract.high.u32 %v524
      %v527 = vshrl.u32 %v526, 4
      %v528 = vmul.u32 %v527, 18
      %v529 = vsub.s32 %v523, %v528
      %v530 = vsub.s32 0, %v529
      %v531 = vsel %vm521, %v530, %v529
      %vm532 = vcmp.lt.s32.totalorder %v346, 0
      %v533 = vsub.s32 0, %v346
      %v534 = vsel %vm532, %v533, %v346
      %v535 = vmul.u32.u64.compose %v534, 3817748708
      %v536 = vextract.low.u32 %v535
      %v537 = vextract.high.u32 %v535
      %v538 = vshrl.u32 %v537, 4
      %v539 = vmul.u32 %v538, 18
      %v540 = vsub.s32 %v534, %v539
      %v541 = vsub.s32 0, %v540
      %v542 = vsel %vm532, %v541, %v540
      %vm543 = vcmp.lt.s32.totalorder %v347, 0
      %v544 = vsub.s32 0, %v347
      %v545 = vsel %vm543, %v544, %v347
      %v546 = vmul.u32.u64.compose %v545, 3817748708
      %v547 = vextract.low.u32 %v546
      %v548 = vextract.high.u32 %v546
      %v549 = vshrl.u32 %v548, 4
      %v550 = vmul.u32 %v549, 18
      %v551 = vsub.s32 %v545, %v550
      %v552 = vsub.s32 0, %v551
      %v553 = vsel %vm543, %v552, %v551
      %vm554 = vcmp.lt.s32.totalorder %v348, 0
      %v555 = vsub.s32 0, %v348
      %v556 = vsel %vm554, %v555, %v348
      %v557 = vmul.u32.u64.compose %v556, 3817748708
      %v558 = vextract.low.u32 %v557
      %v559 = vextract.high.u32 %v557
      %v560 = vshrl.u32 %v559, 4
      %v561 = vmul.u32 %v560, 18
      %v562 = vsub.s32 %v556, %v561
      %v563 = vsub.s32 0, %v562
      %v564 = vsel %vm554, %v563, %v562
      %vm565 = vcmp.lt.s32.totalorder %v349, 0
      %v566 = vsub.s32 0, %v349
      %v567 = vsel %vm565, %v566, %v349
      %v568 = vmul.u32.u64.compose %v567, 3817748708
      %v569 = vextract.low.u32 %v568
      %v570 = vextract.high.u32 %v568
      %v571 = vshrl.u32 %v570, 4
      %v572 = vmul.u32 %v571, 18
      %v573 = vsub.s32 %v567, %v572
      %v574 = vsub.s32 0, %v573
      %v575 = vsel %vm565, %v574, %v573
      %vm576 = vcmp.lt.s32.totalorder %v350, 0
      %v577 = vsub.s32 0, %v350
      %v578 = vsel %vm576, %v577, %v350
      %v579 = vmul.u32.u64.compose %v578, 3817748708
      %v580 = vextract.low.u32 %v579
      %v581 = vextract.high.u32 %v579
      %v582 = vshrl.u32 %v581, 4
      %v583 = vmul.u32 %v582, 18
      %v584 = vsub.s32 %v578, %v583
      %v585 = vsub.s32 0, %v584
      %v586 = vsel %vm576, %v585, %v584
      %vm587 = vcmp.lt.s32.totalorder %v351, 0
      %v588 = vsub.s32 0, %v351
      %v589 = vsel %vm587, %v588, %v351
      %v590 = vmul.u32.u64.compose %v589, 3817748708
      %v591 = vextract.low.u32 %v590
      %v592 = vextract.high.u32 %v590
      %v593 = vshrl.u32 %v592, 4
      %v594 = vmul.u32 %v593, 18
      %v595 = vsub.s32 %v589, %v594
      %v596 = vsub.s32 0, %v595
      %v597 = vsel %vm587, %v596, %v595
      %vm598 = vcmp.lt.s32.totalorder %v352, 0
      %v599 = vsub.s32 0, %v352
      %v600 = vsel %vm598, %v599, %v352
      %v601 = vmul.u32.u64.compose %v600, 3817748708
      %v602 = vextract.low.u32 %v601
      %v603 = vextract.high.u32 %v601
      %v604 = vshrl.u32 %v603, 4
      %v605 = vmul.u32 %v604, 18
      %v606 = vsub.s32 %v600, %v605
      %v607 = vsub.s32 0, %v606
      %v608 = vsel %vm598, %v607, %v606
      %vm609 = vcmp.lt.s32.totalorder %v353, 0
      %v610 = vsub.s32 0, %v353
      %v611 = vsel %vm609, %v610, %v353
      %v612 = vmul.u32.u64.compose %v611, 3817748708
      %v613 = vextract.low.u32 %v612
      %v614 = vextract.high.u32 %v612
      %v615 = vshrl.u32 %v614, 4
      %v616 = vmul.u32 %v615, 18
      %v617 = vsub.s32 %v611, %v616
      %v618 = vsub.s32 0, %v617
      %v619 = vsel %vm609, %v618, %v617
      %vm620 = vcmp.lt.s32.totalorder %v354, 0
      %v621 = vsub.s32 0, %v354
      %v622 = vsel %vm620, %v621, %v354
      %v623 = vmul.u32.u64.compose %v622, 3817748708
      %v624 = vextract.low.u32 %v623
      %v625 = vextract.high.u32 %v623
      %v626 = vshrl.u32 %v625, 4
      %v627 = vmul.u32 %v626, 18
      %v628 = vsub.s32 %v622, %v627
      %v629 = vsub.s32 0, %v628
      %v630 = vsel %vm620, %v629, %v628
      %vm631 = vcmp.lt.s32.totalorder %v355, 0
      %v632 = vsub.s32 0, %v355
      %v633 = vsel %vm631, %v632, %v355
      %v634 = vmul.u32.u64.compose %v633, 3817748708
      %v635 = vextract.low.u32 %v634
      %v636 = vextract.high.u32 %v634
      %v637 = vshrl.u32 %v636, 4
      %v638 = vmul.u32 %v637, 18
      %v639 = vsub.s32 %v633, %v638
      %v640 = vsub.s32 0, %v639
      %v641 = vsel %vm631, %v640, %v639
      %vm642 = vcmp.lt.s32.totalorder %v356, 0
      %v643 = vsub.s32 0, %v356
      %v644 = vsel %vm642, %v643, %v356
      %v645 = vmul.u32.u64.compose %v644, 3817748708
      %v646 = vextract.low.u32 %v645
      %v647 = vextract.high.u32 %v645
      %v648 = vshrl.u32 %v647, 4
      %v649 = vmul.u32 %v648, 18
      %v650 = vsub.s32 %v644, %v649
      %v651 = vsub.s32 0, %v650
      %v652 = vsel %vm642, %v651, %v650
      %vm653 = vcmp.lt.s32.totalorder %v357, 0
      %v654 = vsub.s32 0, %v357
      %v655 = vsel %vm653, %v654, %v357
      %v656 = vmul.u32.u64.compose %v655, 3817748708
      %v657 = vextract.low.u32 %v656
      %v658 = vextract.high.u32 %v656
      %v659 = vshrl.u32 %v658, 4
      %v660 = vmul.u32 %v659, 18
      %v661 = vsub.s32 %v655, %v660
      %v662 = vsub.s32 0, %v661
      %v663 = vsel %vm653, %v662, %v661
      %vm664 = vcmp.lt.s32.totalorder %v358, 0
      %v665 = vsub.s32 0, %v358
      %v666 = vsel %vm664, %v665, %v358
      %v667 = vmul.u32.u64.compose %v666, 3817748708
      %v668 = vextract.low.u32 %v667
      %v669 = vextract.high.u32 %v667
      %v670 = vshrl.u32 %v669, 4
      %v671 = vmul.u32 %v670, 18
      %v672 = vsub.s32 %v666, %v671
      %v673 = vsub.s32 0, %v672
      %v674 = vsel %vm664, %v673, %v672
      %vm675 = vcmp.lt.s32.totalorder %v359, 0
      %v676 = vsub.s32 0, %v359
      %v677 = vsel %vm675, %v676, %v359
      %v678 = vmul.u32.u64.compose %v677, 3817748708
      %v679 = vextract.low.u32 %v678
      %v680 = vextract.high.u32 %v678
      %v681 = vshrl.u32 %v680, 4
      %v682 = vmul.u32 %v681, 18
      %v683 = vsub.s32 %v677, %v682
      %v684 = vsub.s32 0, %v683
      %v685 = vsel %vm675, %v684, %v683
      %vm686 = vcmp.lt.s32.totalorder %v360, 0
      %v687 = vsub.s32 0, %v360
      %v688 = vsel %vm686, %v687, %v360
      %v689 = vmul.u32.u64.compose %v688, 3817748708
      %v690 = vextract.low.u32 %v689
      %v691 = vextract.high.u32 %v689
      %v692 = vshrl.u32 %v691, 4
      %v693 = vmul.u32 %v692, 18
      %v694 = vsub.s32 %v688, %v693
      %v695 = vsub.s32 0, %v694
      %v696 = vsel %vm686, %v695, %v694
      %vm697 = vcmp.lt.s32.totalorder %v361, 0
      %v698 = vsub.s32 0, %v361
      %v699 = vsel %vm697, %v698, %v361
      %v700 = vmul.u32.u64.compose %v699, 3817748708
      %v701 = vextract.low.u32 %v700
      %v702 = vextract.high.u32 %v700
      %v703 = vshrl.u32 %v702, 4
      %v704 = vmul.u32 %v703, 18
      %v705 = vsub.s32 %v699, %v704
      %v706 = vsub.s32 0, %v705
      %v707 = vsel %vm697, %v706, %v705
      %vm708 = vcmp.lt.s32.totalorder %v362, 0
      %v709 = vsub.s32 0, %v362
      %v710 = vsel %vm708, %v709, %v362
      %v711 = vmul.u32.u64.compose %v710, 3817748708
      %v712 = vextract.low.u32 %v711
      %v713 = vextract.high.u32 %v711
      %v714 = vshrl.u32 %v713, 4
      %v715 = vmul.u32 %v714, 18
      %v716 = vsub.s32 %v710, %v715
      %v717 = vsub.s32 0, %v716
      %v718 = vsel %vm708, %v717, %v716
      %vm719 = vcmp.lt.s32.totalorder %v363, 0
      %v720 = vsub.s32 0, %v363
      %v721 = vsel %vm719, %v720, %v363
      %v722 = vmul.u32.u64.compose %v721, 3817748708
      %v723 = vextract.low.u32 %v722
      %v724 = vextract.high.u32 %v722
      %v725 = vshrl.u32 %v724, 4
      %v726 = vmul.u32 %v725, 18
      %v727 = vsub.s32 %v721, %v726
      %v728 = vsub.s32 0, %v727
      %v729 = vsel %vm719, %v728, %v727
      %vm730 = vcmp.lt.s32.totalorder %v364, 0
      %v731 = vsub.s32 0, %v364
      %v732 = vsel %vm730, %v731, %v364
      %v733 = vmul.u32.u64.compose %v732, 3817748708
      %v734 = vextract.low.u32 %v733
      %v735 = vextract.high.u32 %v733
      %v736 = vshrl.u32 %v735, 4
      %v737 = vmul.u32 %v736, 18
      %v738 = vsub.s32 %v732, %v737
      %v739 = vsub.s32 0, %v738
      %v740 = vsel %vm730, %v739, %v738
      %vm741 = vcmp.lt.s32.totalorder %v365, 0
      %v742 = vsub.s32 0, %v365
      %v743 = vsel %vm741, %v742, %v365
      %v744 = vmul.u32.u64.compose %v743, 3817748708
      %v745 = vextract.low.u32 %v744
      %v746 = vextract.high.u32 %v744
      %v747 = vshrl.u32 %v746, 4
      %v748 = vmul.u32 %v747, 18
      %v749 = vsub.s32 %v743, %v748
      %v750 = vsub.s32 0, %v749
      %v751 = vsel %vm741, %v750, %v749
      %vm752 = vcmp.lt.s32.totalorder %v366, 0
      %v753 = vsub.s32 0, %v366
      %v754 = vsel %vm752, %v753, %v366
      %v755 = vmul.u32.u64.compose %v754, 3817748708
      %v756 = vextract.low.u32 %v755
      %v757 = vextract.high.u32 %v755
      %v758 = vshrl.u32 %v757, 4
      %v759 = vmul.u32 %v758, 18
      %v760 = vsub.s32 %v754, %v759
      %v761 = vsub.s32 0, %v760
      %v762 = vsel %vm752, %v761, %v760
      %vm763 = vcmp.ne.s32.totalorder %v377, 0
      %vm764 = vcmp.ne.s32.totalorder %v388, 0
      %vm765 = vcmp.ne.s32.totalorder %v399, 0
      %vm766 = vcmp.ne.s32.totalorder %v410, 0
      %vm767 = vcmp.ne.s32.totalorder %v421, 0
      %vm768 = vcmp.ne.s32.totalorder %v432, 0
      %vm769 = vcmp.ne.s32.totalorder %v443, 0
      %vm770 = vcmp.ne.s32.totalorder %v454, 0
      %vm771 = vcmp.ne.s32.totalorder %v465, 0
      %vm772 = vcmp.ne.s32.totalorder %v476, 0
      %vm773 = vcmp.ne.s32.totalorder %v487, 0
      %vm774 = vcmp.ne.s32.totalorder %v498, 0
      %vm775 = vcmp.ne.s32.totalorder %v509, 0
      %vm776 = vcmp.ne.s32.totalorder %v520, 0
      %vm777 = vcmp.ne.s32.totalorder %v531, 0
      %vm778 = vcmp.ne.s32.totalorder %v542, 0
      %vm779 = vcmp.ne.s32.totalorder %v553, 0
      %vm780 = vcmp.ne.s32.totalorder %v564, 0
      %vm781 = vcmp.ne.s32.totalorder %v575, 0
      %vm782 = vcmp.ne.s32.totalorder %v586, 0
      %vm783 = vcmp.ne.s32.totalorder %v597, 0
      %vm784 = vcmp.ne.s32.totalorder %v608, 0
      %vm785 = vcmp.ne.s32.totalorder %v619, 0
      %vm786 = vcmp.ne.s32.totalorder %v630, 0
      %vm787 = vcmp.ne.s32.totalorder %v641, 0
      %vm788 = vcmp.ne.s32.totalorder %v652, 0
      %vm789 = vcmp.ne.s32.totalorder %v663, 0
      %vm790 = vcmp.ne.s32.totalorder %v674, 0
      %vm791 = vcmp.ne.s32.totalorder %v685, 0
      %vm792 = vcmp.ne.s32.totalorder %v696, 0
      %vm793 = vcmp.ne.s32.totalorder %v707, 0
      %vm794 = vcmp.ne.s32.totalorder %v718, 0
      %vm795 = vcmp.ne.s32.totalorder %v729, 0
      %vm796 = vcmp.ne.s32.totalorder %v740, 0
      %vm797 = vcmp.ne.s32.totalorder %v751, 0
      %vm798 = vcmp.ne.s32.totalorder %v762, 0
      %vm799 = vcmp.lt.s32.totalorder %v377, 0
      %vm800 = vcmp.lt.s32.totalorder %v388, 0
      %vm801 = vcmp.lt.s32.totalorder %v399, 0
      %vm802 = vcmp.lt.s32.totalorder %v410, 0
      %vm803 = vcmp.lt.s32.totalorder %v421, 0
      %vm804 = vcmp.lt.s32.totalorder %v432, 0
      %vm805 = vcmp.lt.s32.totalorder %v443, 0
      %vm806 = vcmp.lt.s32.totalorder %v454, 0
      %vm807 = vcmp.lt.s32.totalorder %v465, 0
      %vm808 = vcmp.lt.s32.totalorder %v476, 0
      %vm809 = vcmp.lt.s32.totalorder %v487, 0
      %vm810 = vcmp.lt.s32.totalorder %v498, 0
      %vm811 = vcmp.lt.s32.totalorder %v509, 0
      %vm812 = vcmp.lt.s32.totalorder %v520, 0
      %vm813 = vcmp.lt.s32.totalorder %v531, 0
      %vm814 = vcmp.lt.s32.totalorder %v542, 0
      %vm815 = vcmp.lt.s32.totalorder %v553, 0
      %vm816 = vcmp.lt.s32.totalorder %v564, 0
      %vm817 = vcmp.lt.s32.totalorder %v575, 0
      %vm818 = vcmp.lt.s32.totalorder %v586, 0
      %vm819 = vcmp.lt.s32.totalorder %v597, 0
      %vm820 = vcmp.lt.s32.totalorder %v608, 0
      %vm821 = vcmp.lt.s32.totalorder %v619, 0
      %vm822 = vcmp.lt.s32.totalorder %v630, 0
      %vm823 = vcmp.lt.s32.totalorder %v641, 0
      %vm824 = vcmp.lt.s32.totalorder %v652, 0
      %vm825 = vcmp.lt.s32.totalorder %v663, 0
      %vm826 = vcmp.lt.s32.totalorder %v674, 0
      %vm827 = vcmp.lt.s32.totalorder %v685, 0
      %vm828 = vcmp.lt.s32.totalorder %v696, 0
      %vm829 = vcmp.lt.s32.totalorder %v707, 0
      %vm830 = vcmp.lt.s32.totalorder %v718, 0
      %vm831 = vcmp.lt.s32.totalorder %v729, 0
      %vm832 = vcmp.lt.s32.totalorder %v740, 0
      %vm833 = vcmp.lt.s32.totalorder %v751, 0
      %vm834 = vcmp.lt.s32.totalorder %v762, 0
      %vm835 = vmand %vm799, %vm763
      %vm836 = vmand %vm800, %vm764
      %vm837 = vmand %vm801, %vm765
      %vm838 = vmand %vm802, %vm766
      %vm839 = vmand %vm803, %vm767
      %vm840 = vmand %vm804, %vm768
      %vm841 = vmand %vm805, %vm769
      %vm842 = vmand %vm806, %vm770
      %vm843 = vmand %vm807, %vm771
      %vm844 = vmand %vm808, %vm772
      %vm845 = vmand %vm809, %vm773
      %vm846 = vmand %vm810, %vm774
      %vm847 = vmand %vm811, %vm775
      %vm848 = vmand %vm812, %vm776
      %vm849 = vmand %vm813, %vm777
      %vm850 = vmand %vm814, %vm778
      %vm851 = vmand %vm815, %vm779
      %vm852 = vmand %vm816, %vm780
      %vm853 = vmand %vm817, %vm781
      %vm854 = vmand %vm818, %vm782
      %vm855 = vmand %vm819, %vm783
      %vm856 = vmand %vm820, %vm784
      %vm857 = vmand %vm821, %vm785
      %vm858 = vmand %vm822, %vm786
      %vm859 = vmand %vm823, %vm787
      %vm860 = vmand %vm824, %vm788
      %vm861 = vmand %vm825, %vm789
      %vm862 = vmand %vm826, %vm790
      %vm863 = vmand %vm827, %vm791
      %vm864 = vmand %vm828, %vm792
      %vm865 = vmand %vm829, %vm793
      %vm866 = vmand %vm830, %vm794
      %vm867 = vmand %vm831, %vm795
      %vm868 = vmand %vm832, %vm796
      %vm869 = vmand %vm833, %vm797
      %vm870 = vmand %vm834, %vm798
      %v871 = vadd.s32 %v377, 18
      %v872 = vadd.s32 %v388, 18
      %v873 = vadd.s32 %v399, 18
      %v874 = vadd.s32 %v410, 18
      %v875 = vadd.s32 %v421, 18
      %v876 = vadd.s32 %v432, 18
      %v877 = vadd.s32 %v443, 18
      %v878 = vadd.s32 %v454, 18
      %v879 = vadd.s32 %v465, 18
      %v880 = vadd.s32 %v476, 18
      %v881 = vadd.s32 %v487, 18
      %v882 = vadd.s32 %v498, 18
      %v883 = vadd.s32 %v509, 18
      %v884 = vadd.s32 %v520, 18
      %v885 = vadd.s32 %v531, 18
      %v886 = vadd.s32 %v542, 18
      %v887 = vadd.s32 %v553, 18
      %v888 = vadd.s32 %v564, 18
      %v889 = vadd.s32 %v575, 18
      %v890 = vadd.s32 %v586, 18
      %v891 = vadd.s32 %v597, 18
      %v892 = vadd.s32 %v608, 18
      %v893 = vadd.s32 %v619, 18
      %v894 = vadd.s32 %v630, 18
      %v895 = vadd.s32 %v641, 18
      %v896 = vadd.s32 %v652, 18
      %v897 = vadd.s32 %v663, 18
      %v898 = vadd.s32 %v674, 18
      %v899 = vadd.s32 %v685, 18
      %v900 = vadd.s32 %v696, 18
      %v901 = vadd.s32 %v707, 18
      %v902 = vadd.s32 %v718, 18
      %v903 = vadd.s32 %v729, 18
      %v904 = vadd.s32 %v740, 18
      %v905 = vadd.s32 %v751, 18
      %v906 = vadd.s32 %v762, 18
      %v907 = vsel %vm835, %v871, %v377
      %v908 = vsel %vm836, %v872, %v388
      %v909 = vsel %vm837, %v873, %v399
      %v910 = vsel %vm838, %v874, %v410
      %v911 = vsel %vm839, %v875, %v421
      %v912 = vsel %vm840, %v876, %v432
      %v913 = vsel %vm841, %v877, %v443
      %v914 = vsel %vm842, %v878, %v454
      %v915 = vsel %vm843, %v879, %v465
      %v916 = vsel %vm844, %v880, %v476
      %v917 = vsel %vm845, %v881, %v487
      %v918 = vsel %vm846, %v882, %v498
      %v919 = vsel %vm847, %v883, %v509
      %v920 = vsel %vm848, %v884, %v520
      %v921 = vsel %vm849, %v885, %v531
      %v922 = vsel %vm850, %v886, %v542
      %v923 = vsel %vm851, %v887, %v553
      %v924 = vsel %vm852, %v888, %v564
      %v925 = vsel %vm853, %v889, %v575
      %v926 = vsel %vm854, %v890, %v586
      %v927 = vsel %vm855, %v891, %v597
      %v928 = vsel %vm856, %v892, %v608
      %v929 = vsel %vm857, %v893, %v619
      %v930 = vsel %vm858, %v894, %v630
      %v931 = vsel %vm859, %v895, %v641
      %v932 = vsel %vm860, %v896, %v652
      %v933 = vsel %vm861, %v897, %v663
      %v934 = vsel %vm862, %v898, %v674
      %v935 = vsel %vm863, %v899, %v685
      %v936 = vsel %vm864, %v900, %v696
      %v937 = vsel %vm865, %v901, %v707
      %v938 = vsel %vm866, %v902, %v718
      %v939 = vsel %vm867, %v903, %v729
      %v940 = vsel %vm868, %v904, %v740
      %v941 = vsel %vm869, %v905, %v751
      %v942 = vsel %vm870, %v906, %v762
      %vm943 = vcmp.ge.s32.totalorder %v907, 1
      %vm944 = vcmp.ge.s32.totalorder %v908, 1
      %vm945 = vcmp.ge.s32.totalorder %v909, 1
      %vm946 = vcmp.ge.s32.totalorder %v910, 1
      %vm947 = vcmp.ge.s32.totalorder %v911, 1
      %vm948 = vcmp.ge.s32.totalorder %v912, 1
      %vm949 = vcmp.ge.s32.totalorder %v913, 1
      %vm950 = vcmp.ge.s32.totalorder %v914, 1
      %vm951 = vcmp.ge.s32.totalorder %v915, 1
      %vm952 = vcmp.ge.s32.totalorder %v916, 1
      %vm953 = vcmp.ge.s32.totalorder %v917, 1
      %vm954 = vcmp.ge.s32.totalorder %v918, 1
      %vm955 = vcmp.ge.s32.totalorder %v919, 1
      %vm956 = vcmp.ge.s32.totalorder %v920, 1
      %vm957 = vcmp.ge.s32.totalorder %v921, 1
      %vm958 = vcmp.ge.s32.totalorder %v922, 1
      %vm959 = vcmp.ge.s32.totalorder %v923, 1
      %vm960 = vcmp.ge.s32.totalorder %v924, 1
      %vm961 = vcmp.ge.s32.totalorder %v925, 1
      %vm962 = vcmp.ge.s32.totalorder %v926, 1
      %vm963 = vcmp.ge.s32.totalorder %v927, 1
      %vm964 = vcmp.ge.s32.totalorder %v928, 1
      %vm965 = vcmp.ge.s32.totalorder %v929, 1
      %vm966 = vcmp.ge.s32.totalorder %v930, 1
      %vm967 = vcmp.ge.s32.totalorder %v931, 1
      %vm968 = vcmp.ge.s32.totalorder %v932, 1
      %vm969 = vcmp.ge.s32.totalorder %v933, 1
      %vm970 = vcmp.ge.s32.totalorder %v934, 1
      %vm971 = vcmp.ge.s32.totalorder %v935, 1
      %vm972 = vcmp.ge.s32.totalorder %v936, 1
      %vm973 = vcmp.ge.s32.totalorder %v937, 1
      %vm974 = vcmp.ge.s32.totalorder %v938, 1
      %vm975 = vcmp.ge.s32.totalorder %v939, 1
      %vm976 = vcmp.ge.s32.totalorder %v940, 1
      %vm977 = vcmp.ge.s32.totalorder %v941, 1
      %vm978 = vcmp.ge.s32.totalorder %v942, 1
      %vm979 = vcmp.le.s32.totalorder %v907, 16
      %vm980 = vcmp.le.s32.totalorder %v908, 16
      %vm981 = vcmp.le.s32.totalorder %v909, 16
      %vm982 = vcmp.le.s32.totalorder %v910, 16
      %vm983 = vcmp.le.s32.totalorder %v911, 16
      %vm984 = vcmp.le.s32.totalorder %v912, 16
      %vm985 = vcmp.le.s32.totalorder %v913, 16
      %vm986 = vcmp.le.s32.totalorder %v914, 16
      %vm987 = vcmp.le.s32.totalorder %v915, 16
      %vm988 = vcmp.le.s32.totalorder %v916, 16
      %vm989 = vcmp.le.s32.totalorder %v917, 16
      %vm990 = vcmp.le.s32.totalorder %v918, 16
      %vm991 = vcmp.le.s32.totalorder %v919, 16
      %vm992 = vcmp.le.s32.totalorder %v920, 16
      %vm993 = vcmp.le.s32.totalorder %v921, 16
      %vm994 = vcmp.le.s32.totalorder %v922, 16
      %vm995 = vcmp.le.s32.totalorder %v923, 16
      %vm996 = vcmp.le.s32.totalorder %v924, 16
      %vm997 = vcmp.le.s32.totalorder %v925, 16
      %vm998 = vcmp.le.s32.totalorder %v926, 16
      %vm999 = vcmp.le.s32.totalorder %v927, 16
      %vm1000 = vcmp.le.s32.totalorder %v928, 16
      %vm1001 = vcmp.le.s32.totalorder %v929, 16
      %vm1002 = vcmp.le.s32.totalorder %v930, 16
      %vm1003 = vcmp.le.s32.totalorder %v931, 16
      %vm1004 = vcmp.le.s32.totalorder %v932, 16
      %vm1005 = vcmp.le.s32.totalorder %v933, 16
      %vm1006 = vcmp.le.s32.totalorder %v934, 16
      %vm1007 = vcmp.le.s32.totalorder %v935, 16
      %vm1008 = vcmp.le.s32.totalorder %v936, 16
      %vm1009 = vcmp.le.s32.totalorder %v937, 16
      %vm1010 = vcmp.le.s32.totalorder %v938, 16
      %vm1011 = vcmp.le.s32.totalorder %v939, 16
      %vm1012 = vcmp.le.s32.totalorder %v940, 16
      %vm1013 = vcmp.le.s32.totalorder %v941, 16
      %vm1014 = vcmp.le.s32.totalorder %v942, 16
      %vm1015 = vmand %vm943, %vm979
      %vm1016 = vmand %vm944, %vm980
      %vm1017 = vmand %vm945, %vm981
      %vm1018 = vmand %vm946, %vm982
      %vm1019 = vmand %vm947, %vm983
      %vm1020 = vmand %vm948, %vm984
      %vm1021 = vmand %vm949, %vm985
      %vm1022 = vmand %vm950, %vm986
      %vm1023 = vmand %vm951, %vm987
      %vm1024 = vmand %vm952, %vm988
      %vm1025 = vmand %vm953, %vm989
      %vm1026 = vmand %vm954, %vm990
      %vm1027 = vmand %vm955, %vm991
      %vm1028 = vmand %vm956, %vm992
      %vm1029 = vmand %vm957, %vm993
      %vm1030 = vmand %vm958, %vm994
      %vm1031 = vmand %vm959, %vm995
      %vm1032 = vmand %vm960, %vm996
      %vm1033 = vmand %vm961, %vm997
      %vm1034 = vmand %vm962, %vm998
      %vm1035 = vmand %vm963, %vm999
      %vm1036 = vmand %vm964, %vm1000
      %vm1037 = vmand %vm965, %vm1001
      %vm1038 = vmand %vm966, %vm1002
      %vm1039 = vmand %vm967, %vm1003
      %vm1040 = vmand %vm968, %vm1004
      %vm1041 = vmand %vm969, %vm1005
      %vm1042 = vmand %vm970, %vm1006
      %vm1043 = vmand %vm971, %vm1007
      %vm1044 = vmand %vm972, %vm1008
      %vm1045 = vmand %vm973, %vm1009
      %vm1046 = vmand %vm974, %vm1010
      %vm1047 = vmand %vm975, %vm1011
      %vm1048 = vmand %vm976, %vm1012
      %vm1049 = vmand %vm977, %vm1013
      %vm1050 = vmand %vm978, %vm1014
      %v1051 = vld [vmem:[%s273] sm:$0xf]
      %v1052 = vld [vmem:[%s273 + $0x4] sm:$0xf]
      %v1053 = vld [vmem:[%s273 + $0x8] sm:$0xf]
      %v1054 = vld [vmem:[%s273 + $0xc] sm:$0xf]
      %v1055 = vld [vmem:[%s273 + $0x10] sm:$0xf]
      %v1056 = vld [vmem:[%s273 + $0x14] sm:$0xf]
      %v1057 = vld [vmem:[%s273 + $0x18] sm:$0xf]
      %v1058 = vld [vmem:[%s273 + $0x1c] sm:$0xf]
      %v1059 = vld [vmem:[%s273 + $0x20] sm:$0xf]
      %v1060 = vld [vmem:[%s273 + $0x24] sm:$0xf]
      %v1061 = vld [vmem:[%s273 + $0x28] sm:$0xf]
      %v1062 = vld [vmem:[%s273 + $0x2c] sm:$0xf]
      %v1063 = vld [vmem:[%s273 + $0x30] sm:$0xf]
      %v1064 = vld [vmem:[%s273 + $0x34] sm:$0xf]
      %v1065 = vld [vmem:[%s273 + $0x38] sm:$0xf]
      %v1066 = vld [vmem:[%s273 + $0x3c] sm:$0xf]
      %v1067 = vld [vmem:[%s273 + $0x40] sm:$0xf]
      %v1068 = vld [vmem:[%s273 + $0x44] sm:$0xf]
      %v1069 = vld [vmem:[%s273 + $0x48] sm:$0xf]
      %v1070 = vld [vmem:[%s273 + $0x4c] sm:$0xf]
      %v1071 = vld [vmem:[%s273 + $0x50] sm:$0xf]
      %v1072 = vld [vmem:[%s273 + $0x54] sm:$0xf]
      %v1073 = vld [vmem:[%s273 + $0x58] sm:$0xf]
      %v1074 = vld [vmem:[%s273 + $0x5c] sm:$0xf]
      %v1075 = vld [vmem:[%s273 + $0x60] sm:$0xf]
      %v1076 = vld [vmem:[%s273 + $0x64] sm:$0xf]
      %v1077 = vld [vmem:[%s273 + $0x68] sm:$0xf]
      %v1078 = vld [vmem:[%s273 + $0x6c] sm:$0xf]
      %v1079 = vld [vmem:[%s273 + $0x70] sm:$0xf]
      %v1080 = vld [vmem:[%s273 + $0x74] sm:$0xf]
      %v1081 = vld [vmem:[%s273 + $0x78] sm:$0xf]
      %v1082 = vld [vmem:[%s273 + $0x7c] sm:$0xf]
      %v1083 = vld [vmem:[%s273 + $0x80] sm:$0xf]
      %v1084 = vld [vmem:[%s273 + $0x84] sm:$0xf]
      %v1085 = vld [vmem:[%s273 + $0x88] sm:$0xf]
      %v1086 = vld [vmem:[%s273 + $0x8c] sm:$0x7]
      %v1087 = vld [vmem:[%s273 + $0x8c] sm:$0xf]
      %v1088 = vld [vmem:[%s273] sm:$0xe]
      %v1089 = vld [vmem:[%s273 + $0x8] sm:$0xe]
      %v1090 = vld [vmem:[%s273 + $0x90] sm:$0xf]
      %v1091 = vld [vmem:[%s273 + $0x94] sm:$0xf]
      %v1092 = vld [vmem:[%s273 + $0x98] sm:$0x1]
      %v1093 = vld [vmem:[%s273 + $0x8] sm:$0xc]
      %v1094 = vld [vmem:[%s273 + $0x10] sm:$0xc]
      %v1095 = vld [vmem:[%s273 + $0x98] sm:$0xf]
      %v1096 = vld [vmem:[%s273 + $0x9c] sm:$0xf]
      %v1097 = vld [vmem:[%s273 + $0xa0] sm:$0x1]
      %v1098 = vld [vmem:[%s273 + $0xa0] sm:$0x3]
      %v1099 = vld [vmem:[%s273 + $0x10] sm:$0x8]
      %v1136 = vunpack.c.l.b16 %v1051
      %v1137 = vunpack.c.l.b16 %v1052
      %v1138 = vunpack.c.l.b16 %v1053
      %v1139 = vunpack.c.l.b16 %v1054
      %v1140 = vunpack.c.l.b16 %v1055
      %v1141 = vunpack.c.l.b16 %v1056
      %v1142 = vunpack.c.l.b16 %v1057
      %v1143 = vunpack.c.l.b16 %v1058
      %v1144 = vunpack.c.l.b16 %v1059
      %v1145 = vunpack.c.l.b16 %v1060
      %v1146 = vunpack.c.l.b16 %v1061
      %v1147 = vunpack.c.l.b16 %v1062
      %v1148 = vunpack.c.l.b16 %v1063
      %v1149 = vunpack.c.l.b16 %v1064
      %v1150 = vunpack.c.l.b16 %v1065
      %v1151 = vunpack.c.l.b16 %v1066
      %v1152 = vunpack.c.l.b16 %v1067
      %v1153 = vunpack.c.l.b16 %v1068
      %v1154 = vunpack.c.l.b16 %v1069
      %v1155 = vunpack.c.l.b16 %v1070
      %v1156 = vunpack.c.l.b16 %v1071
      %v1157 = vunpack.c.l.b16 %v1072
      %v1158 = vunpack.c.l.b16 %v1073
      %v1159 = vunpack.c.l.b16 %v1074
      %v1160 = vunpack.c.l.b16 %v1075
      %v1161 = vunpack.c.l.b16 %v1076
      %v1162 = vunpack.c.l.b16 %v1077
      %v1163 = vunpack.c.l.b16 %v1078
      %v1164 = vunpack.c.l.b16 %v1079
      %v1165 = vunpack.c.l.b16 %v1080
      %v1166 = vunpack.c.l.b16 %v1081
      %v1167 = vunpack.c.l.b16 %v1082
      %v1168 = vunpack.c.l.b16 %v1083
      %v1169 = vunpack.c.l.b16 %v1084
      %v1170 = vunpack.c.l.b16 %v1085
      %v1171 = vunpack.c.l.b16 %v1086
      %v1172 = vpack.c.b16 %v1137, %v1136
      %v1173 = vpack.c.b16 %v1139, %v1138
      %v1174 = vpack.c.b16 %v1141, %v1140
      %v1175 = vpack.c.b16 %v1143, %v1142
      %v1176 = vpack.c.b16 %v1145, %v1144
      %v1177 = vpack.c.b16 %v1147, %v1146
      %v1178 = vpack.c.b16 %v1149, %v1148
      %v1179 = vpack.c.b16 %v1151, %v1150
      %v1180 = vpack.c.b16 %v1153, %v1152
      %v1181 = vpack.c.b16 %v1155, %v1154
      %v1182 = vpack.c.b16 %v1157, %v1156
      %v1183 = vpack.c.b16 %v1159, %v1158
      %v1184 = vpack.c.b16 %v1161, %v1160
      %v1185 = vpack.c.b16 %v1163, %v1162
      %v1186 = vpack.c.b16 %v1165, %v1164
      %v1187 = vpack.c.b16 %v1167, %v1166
      %v1188 = vpack.c.b16 %v1169, %v1168
      %v1189 = vpack.c.b16 %v1171, %v1170
      %v1191 = vunpack.c.l.b16 %v1087
      %v1192 = vpack.c.b16 %v1191, %v1170
      %vm1193 = vsmask.f32 7424
      %v1195 = vshrl.u32 %v1172, 16
      %v1197 = vshll.u32 %v1172, 16
      %v1199 = vrot.slane %v1197, 1
      %v1200 = vor.u32 %v1195, %v1199
      %v1202 = vshll.u32 %v1173, 16
      %v1204 = vrot.slane %v1202, 1
      %v1205 = vsel %vm1193, %v1200, %v1204
      %v1206 = vshrl.u32 %v1173, 16
      %v1208 = vor.u32 %v1206, %v1204
      %v1210 = vshll.u32 %v1174, 16
      %v1212 = vrot.slane %v1210, 1
      %v1213 = vsel %vm1193, %v1208, %v1212
      %v1214 = vshrl.u32 %v1174, 16
      %v1216 = vor.u32 %v1214, %v1212
      %v1218 = vshll.u32 %v1175, 16
      %v1220 = vrot.slane %v1218, 1
      %v1221 = vsel %vm1193, %v1216, %v1220
      %v1222 = vshrl.u32 %v1175, 16
      %v1224 = vor.u32 %v1222, %v1220
      %v1226 = vshll.u32 %v1176, 16
      %v1228 = vrot.slane %v1226, 1
      %v1229 = vsel %vm1193, %v1224, %v1228
      %v1230 = vshrl.u32 %v1176, 16
      %v1232 = vor.u32 %v1230, %v1228
      %v1234 = vshll.u32 %v1177, 16
      %v1236 = vrot.slane %v1234, 1
      %v1237 = vsel %vm1193, %v1232, %v1236
      %v1238 = vshrl.u32 %v1177, 16
      %v1240 = vor.u32 %v1238, %v1236
      %v1242 = vshll.u32 %v1178, 16
      %v1244 = vrot.slane %v1242, 1
      %v1245 = vsel %vm1193, %v1240, %v1244
      %v1246 = vshrl.u32 %v1178, 16
      %v1248 = vor.u32 %v1246, %v1244
      %v1250 = vshll.u32 %v1179, 16
      %v1252 = vrot.slane %v1250, 1
      %v1253 = vsel %vm1193, %v1248, %v1252
      %v1254 = vshrl.u32 %v1179, 16
      %v1256 = vor.u32 %v1254, %v1252
      %v1258 = vshll.u32 %v1180, 16
      %v1260 = vrot.slane %v1258, 1
      %v1261 = vsel %vm1193, %v1256, %v1260
      %v1262 = vshrl.u32 %v1180, 16
      %v1264 = vor.u32 %v1262, %v1260
      %v1266 = vshll.u32 %v1181, 16
      %v1268 = vrot.slane %v1266, 1
      %v1269 = vsel %vm1193, %v1264, %v1268
      %v1270 = vshrl.u32 %v1181, 16
      %v1272 = vor.u32 %v1270, %v1268
      %v1274 = vshll.u32 %v1182, 16
      %v1276 = vrot.slane %v1274, 1
      %v1277 = vsel %vm1193, %v1272, %v1276
      %v1278 = vshrl.u32 %v1182, 16
      %v1280 = vor.u32 %v1278, %v1276
      %v1282 = vshll.u32 %v1183, 16
      %v1284 = vrot.slane %v1282, 1
      %v1285 = vsel %vm1193, %v1280, %v1284
      %v1286 = vshrl.u32 %v1183, 16
      %v1288 = vor.u32 %v1286, %v1284
      %v1290 = vshll.u32 %v1184, 16
      %v1292 = vrot.slane %v1290, 1
      %v1293 = vsel %vm1193, %v1288, %v1292
      %v1294 = vshrl.u32 %v1184, 16
      %v1296 = vor.u32 %v1294, %v1292
      %v1298 = vshll.u32 %v1185, 16
      %v1300 = vrot.slane %v1298, 1
      %v1301 = vsel %vm1193, %v1296, %v1300
      %v1302 = vshrl.u32 %v1185, 16
      %v1304 = vor.u32 %v1302, %v1300
      %v1306 = vshll.u32 %v1186, 16
      %v1308 = vrot.slane %v1306, 1
      %v1309 = vsel %vm1193, %v1304, %v1308
      %v1310 = vshrl.u32 %v1186, 16
      %v1312 = vor.u32 %v1310, %v1308
      %v1314 = vshll.u32 %v1187, 16
      %v1316 = vrot.slane %v1314, 1
      %v1317 = vsel %vm1193, %v1312, %v1316
      %v1318 = vshrl.u32 %v1187, 16
      %v1320 = vor.u32 %v1318, %v1316
      %v1322 = vshll.u32 %v1188, 16
      %v1324 = vrot.slane %v1322, 1
      %v1325 = vsel %vm1193, %v1320, %v1324
      %v1326 = vshrl.u32 %v1188, 16
      %v1328 = vor.u32 %v1326, %v1324
      %v1330 = vshll.u32 %v1192, 16
      %v1332 = vrot.slane %v1330, 1
      %v1333 = vsel %vm1193, %v1328, %v1332
      %v1334 = vshrl.u32 %v1192, 16
      %v1336 = vor.u32 %v1334, %v1332
      %1337 = vrot.lane.b32.xlu0 %v1205, 4
      %v1338 = vpop.permute.xlu0 %1337
      %1339 = vrot.lane.b32.xlu0 %v1213, 4
      %v1340 = vpop.permute.xlu0 %1339
      %1341 = vrot.lane.b32.xlu0 %v1221, 4
      %v1342 = vpop.permute.xlu0 %1341
      %1343 = vrot.lane.b32.xlu0 %v1229, 4
      %v1344 = vpop.permute.xlu0 %1343
      %1345 = vrot.lane.b32.xlu0 %v1237, 4
      %v1346 = vpop.permute.xlu0 %1345
      %1347 = vrot.lane.b32.xlu0 %v1245, 4
      %v1348 = vpop.permute.xlu0 %1347
      %1349 = vrot.lane.b32.xlu0 %v1253, 4
      %v1350 = vpop.permute.xlu0 %1349
      %1351 = vrot.lane.b32.xlu0 %v1261, 4
      %v1352 = vpop.permute.xlu0 %1351
      %1353 = vrot.lane.b32.xlu0 %v1269, 4
      %v1354 = vpop.permute.xlu0 %1353
      %1355 = vrot.lane.b32.xlu0 %v1277, 4
      %v1356 = vpop.permute.xlu0 %1355
      %1357 = vrot.lane.b32.xlu0 %v1285, 4
      %v1358 = vpop.permute.xlu0 %1357
      %1359 = vrot.lane.b32.xlu0 %v1293, 4
      %v1360 = vpop.permute.xlu0 %1359
      %1361 = vrot.lane.b32.xlu0 %v1301, 4
      %v1362 = vpop.permute.xlu0 %1361
      %1363 = vrot.lane.b32.xlu0 %v1309, 4
      %v1364 = vpop.permute.xlu0 %1363
      %1365 = vrot.lane.b32.xlu0 %v1317, 4
      %v1366 = vpop.permute.xlu0 %1365
      %1367 = vrot.lane.b32.xlu0 %v1325, 4
      %v1368 = vpop.permute.xlu0 %1367
      %1369 = vrot.lane.b32.xlu0 %v1333, 4
      %v1370 = vpop.permute.xlu0 %1369
      %1371 = vrot.lane.b32.xlu0 %v1336, 4
      %v1372 = vpop.permute.xlu0 %1371
      %v1374 = vunpack.c.l.b16 %v1088
      %v1375 = vpack.c.b16 %v1137, %v1374
      %vm1376 = vcmask 1046528
      %v1377 = vrot.slane %v1375, 1
      %v1378 = vrot.slane %v1173, 1
      %v1379 = vsel %vm1376, %v1377, %v1378
      %v1380 = vrot.slane %v1174, 1
      %v1381 = vsel %vm1376, %v1378, %v1380
      %v1382 = vrot.slane %v1175, 1
      %v1383 = vsel %vm1376, %v1380, %v1382
      %v1384 = vrot.slane %v1176, 1
      %v1385 = vsel %vm1376, %v1382, %v1384
      %v1386 = vrot.slane %v1177, 1
      %v1387 = vsel %vm1376, %v1384, %v1386
      %v1388 = vrot.slane %v1178, 1
      %v1389 = vsel %vm1376, %v1386, %v1388
      %v1390 = vrot.slane %v1179, 1
      %v1391 = vsel %vm1376, %v1388, %v1390
      %v1392 = vrot.slane %v1180, 1
      %v1393 = vsel %vm1376, %v1390, %v1392
      %v1394 = vrot.slane %v1181, 1
      %v1395 = vsel %vm1376, %v1392, %v1394
      %v1396 = vrot.slane %v1182, 1
      %v1397 = vsel %vm1376, %v1394, %v1396
      %v1398 = vrot.slane %v1183, 1
      %v1399 = vsel %vm1376, %v1396, %v1398
      %v1400 = vrot.slane %v1184, 1
      %v1401 = vsel %vm1376, %v1398, %v1400
      %v1402 = vrot.slane %v1185, 1
      %v1403 = vsel %vm1376, %v1400, %v1402
      %v1404 = vrot.slane %v1186, 1
      %v1405 = vsel %vm1376, %v1402, %v1404
      %v1406 = vrot.slane %v1187, 1
      %v1407 = vsel %vm1376, %v1404, %v1406
      %v1408 = vrot.slane %v1188, 1
      %v1409 = vsel %vm1376, %v1406, %v1408
      %v1410 = vrot.slane %v1192, 1
      %v1411 = vsel %vm1376, %v1408, %v1410
      %1412 = vrot.lane.b32.xlu0 %v1379, 8
      %v1413 = vpop.permute.xlu0 %1412
      %1414 = vrot.lane.b32.xlu0 %v1381, 8
      %v1415 = vpop.permute.xlu0 %1414
      %1416 = vrot.lane.b32.xlu0 %v1383, 8
      %v1417 = vpop.permute.xlu0 %1416
      %1418 = vrot.lane.b32.xlu0 %v1385, 8
      %v1419 = vpop.permute.xlu0 %1418
      %1420 = vrot.lane.b32.xlu0 %v1387, 8
      %v1421 = vpop.permute.xlu0 %1420
      %1422 = vrot.lane.b32.xlu0 %v1389, 8
      %v1423 = vpop.permute.xlu0 %1422
      %1424 = vrot.lane.b32.xlu0 %v1391, 8
      %v1425 = vpop.permute.xlu0 %1424
      %1426 = vrot.lane.b32.xlu0 %v1393, 8
      %v1427 = vpop.permute.xlu0 %1426
      %1428 = vrot.lane.b32.xlu0 %v1395, 8
      %v1429 = vpop.permute.xlu0 %1428
      %1430 = vrot.lane.b32.xlu0 %v1397, 8
      %v1431 = vpop.permute.xlu0 %1430
      %1432 = vrot.lane.b32.xlu0 %v1399, 8
      %v1433 = vpop.permute.xlu0 %1432
      %1434 = vrot.lane.b32.xlu0 %v1401, 8
      %v1435 = vpop.permute.xlu0 %1434
      %1436 = vrot.lane.b32.xlu0 %v1403, 8
      %v1437 = vpop.permute.xlu0 %1436
      %1438 = vrot.lane.b32.xlu0 %v1405, 8
      %v1439 = vpop.permute.xlu0 %1438
      %1440 = vrot.lane.b32.xlu0 %v1407, 8
      %v1441 = vpop.permute.xlu0 %1440
      %1442 = vrot.lane.b32.xlu0 %v1409, 8
      %v1443 = vpop.permute.xlu0 %1442
      %1444 = vrot.lane.b32.xlu0 %v1411, 8
      %v1445 = vpop.permute.xlu0 %1444
      %1446 = vrot.lane.b32.xlu0 %v1410, 8
      %v1447 = vpop.permute.xlu0 %1446
      %v1451 = vunpack.c.l.b16 %v1089
      %v1452 = vunpack.c.l.b16 %v1090
      %v1453 = vunpack.c.l.b16 %v1091
      %v1454 = vpack.c.b16 %v1139, %v1451
      %v1455 = vpack.c.b16 %v1453, %v1452
      %v1456 = vrot.slane %v1454, 1
      %v1457 = vsel %vm1376, %v1456, %v1380
      %v1458 = vrot.slane %v1455, 1
      %v1459 = vsel %vm1376, %v1410, %v1458
      %1460 = vrot.lane.b32.xlu0 %v1457, 12
      %v1461 = vpop.permute.xlu0 %1460
      %1462 = vrot.lane.b32.xlu0 %v1383, 12
      %v1463 = vpop.permute.xlu0 %1462
      %1464 = vrot.lane.b32.xlu0 %v1385, 12
      %v1465 = vpop.permute.xlu0 %1464
      %1466 = vrot.lane.b32.xlu0 %v1387, 12
      %v1467 = vpop.permute.xlu0 %1466
      %1468 = vrot.lane.b32.xlu0 %v1389, 12
      %v1469 = vpop.permute.xlu0 %1468
      %1470 = vrot.lane.b32.xlu0 %v1391, 12
      %v1471 = vpop.permute.xlu0 %1470
      %1472 = vrot.lane.b32.xlu0 %v1393, 12
      %v1473 = vpop.permute.xlu0 %1472
      %1474 = vrot.lane.b32.xlu0 %v1395, 12
      %v1475 = vpop.permute.xlu0 %1474
      %1476 = vrot.lane.b32.xlu0 %v1397, 12
      %v1477 = vpop.permute.xlu0 %1476
      %1478 = vrot.lane.b32.xlu0 %v1399, 12
      %v1479 = vpop.permute.xlu0 %1478
      %1480 = vrot.lane.b32.xlu0 %v1401, 12
      %v1481 = vpop.permute.xlu0 %1480
      %1482 = vrot.lane.b32.xlu0 %v1403, 12
      %v1483 = vpop.permute.xlu0 %1482
      %1484 = vrot.lane.b32.xlu0 %v1405, 12
      %v1485 = vpop.permute.xlu0 %1484
      %1486 = vrot.lane.b32.xlu0 %v1407, 12
      %v1487 = vpop.permute.xlu0 %1486
      %1488 = vrot.lane.b32.xlu0 %v1409, 12
      %v1489 = vpop.permute.xlu0 %1488
      %1490 = vrot.lane.b32.xlu0 %v1411, 12
      %v1491 = vpop.permute.xlu0 %1490
      %1492 = vrot.lane.b32.xlu0 %v1459, 12
      %v1493 = vpop.permute.xlu0 %1492
      %1494 = vrot.lane.b32.xlu0 %v1458, 12
      %v1495 = vpop.permute.xlu0 %1494
      %v1497 = vunpack.c.l.b16 %v1092
      %v1498 = vpack.c.b16 %v1497, %v1497
      %vm1499 = vsmask.f32 6400
      %v1501 = vshrl.u32 %v1454, 16
      %v1503 = vrot.slane %v1501, 1
      %v1504 = vshll.u32 %v1454, 16
      %v1506 = vrot.slane %v1504, 2
      %v1507 = vor.u32 %v1503, %v1506
      %v1508 = vrot.slane %v1214, 1
      %v1509 = vrot.slane %v1210, 2
      %v1510 = vor.u32 %v1508, %v1509
      %v1511 = vsel %vm1499, %v1507, %v1510
      %v1512 = vrot.slane %v1222, 1
      %v1513 = vrot.slane %v1218, 2
      %v1514 = vor.u32 %v1512, %v1513
      %v1515 = vsel %vm1499, %v1510, %v1514
      %v1516 = vrot.slane %v1230, 1
      %v1517 = vrot.slane %v1226, 2
      %v1518 = vor.u32 %v1516, %v1517
      %v1519 = vsel %vm1499, %v1514, %v1518
      %v1520 = vrot.slane %v1238, 1
      %v1521 = vrot.slane %v1234, 2
      %v1522 = vor.u32 %v1520, %v1521
      %v1523 = vsel %vm1499, %v1518, %v1522
      %v1524 = vrot.slane %v1246, 1
      %v1525 = vrot.slane %v1242, 2
      %v1526 = vor.u32 %v1524, %v1525
      %v1527 = vsel %vm1499, %v1522, %v1526
      %v1528 = vrot.slane %v1254, 1
      %v1529 = vrot.slane %v1250, 2
      %v1530 = vor.u32 %v1528, %v1529
      %v1531 = vsel %vm1499, %v1526, %v1530
      %v1532 = vrot.slane %v1262, 1
      %v1533 = vrot.slane %v1258, 2
      %v1534 = vor.u32 %v1532, %v1533
      %v1535 = vsel %vm1499, %v1530, %v1534
      %v1536 = vrot.slane %v1270, 1
      %v1537 = vrot.slane %v1266, 2
      %v1538 = vor.u32 %v1536, %v1537
      %v1539 = vsel %vm1499, %v1534, %v1538
      %v1540 = vrot.slane %v1278, 1
      %v1541 = vrot.slane %v1274, 2
      %v1542 = vor.u32 %v1540, %v1541
      %v1543 = vsel %vm1499, %v1538, %v1542
      %v1544 = vrot.slane %v1286, 1
      %v1545 = vrot.slane %v1282, 2
      %v1546 = vor.u32 %v1544, %v1545
      %v1547 = vsel %vm1499, %v1542, %v1546
      %v1548 = vrot.slane %v1294, 1
      %v1549 = vrot.slane %v1290, 2
      %v1550 = vor.u32 %v1548, %v1549
      %v1551 = vsel %vm1499, %v1546, %v1550
      %v1552 = vrot.slane %v1302, 1
      %v1553 = vrot.slane %v1298, 2
      %v1554 = vor.u32 %v1552, %v1553
      %v1555 = vsel %vm1499, %v1550, %v1554
      %v1556 = vrot.slane %v1310, 1
      %v1557 = vrot.slane %v1306, 2
      %v1558 = vor.u32 %v1556, %v1557
      %v1559 = vsel %vm1499, %v1554, %v1558
      %v1560 = vrot.slane %v1318, 1
      %v1561 = vrot.slane %v1314, 2
      %v1562 = vor.u32 %v1560, %v1561
      %v1563 = vsel %vm1499, %v1558, %v1562
      %v1564 = vrot.slane %v1326, 1
      %v1565 = vrot.slane %v1322, 2
      %v1566 = vor.u32 %v1564, %v1565
      %v1567 = vsel %vm1499, %v1562, %v1566
      %v1568 = vrot.slane %v1334, 1
      %v1569 = vrot.slane %v1330, 2
      %v1570 = vor.u32 %v1568, %v1569
      %v1571 = vsel %vm1499, %v1566, %v1570
      %v1573 = vshrl.u32 %v1455, 16
      %v1575 = vrot.slane %v1573, 1
      %v1576 = vshll.u32 %v1455, 16
      %v1578 = vrot.slane %v1576, 2
      %v1579 = vor.u32 %v1575, %v1578
      %v1580 = vsel %vm1499, %v1570, %v1579
      %v1582 = vshll.u32 %v1498, 16
      %v1584 = vrot.slane %v1582, 2
      %v1585 = vsel %vm1499, %v1579, %v1584
      %1586 = vrot.lane.b32.xlu0 %v1511, 16
      %v1587 = vpop.permute.xlu0 %1586
      %1588 = vrot.lane.b32.xlu0 %v1515, 16
      %v1589 = vpop.permute.xlu0 %1588
      %1590 = vrot.lane.b32.xlu0 %v1519, 16
      %v1591 = vpop.permute.xlu0 %1590
      %1592 = vrot.lane.b32.xlu0 %v1523, 16
      %v1593 = vpop.permute.xlu0 %1592
      %1594 = vrot.lane.b32.xlu0 %v1527, 16
      %v1595 = vpop.permute.xlu0 %1594
      %1596 = vrot.lane.b32.xlu0 %v1531, 16
      %v1597 = vpop.permute.xlu0 %1596
      %1598 = vrot.lane.b32.xlu0 %v1535, 16
      %v1599 = vpop.permute.xlu0 %1598
      %1600 = vrot.lane.b32.xlu0 %v1539, 16
      %v1601 = vpop.permute.xlu0 %1600
      %1602 = vrot.lane.b32.xlu0 %v1543, 16
      %v1603 = vpop.permute.xlu0 %1602
      %1604 = vrot.lane.b32.xlu0 %v1547, 16
      %v1605 = vpop.permute.xlu0 %1604
      %1606 = vrot.lane.b32.xlu0 %v1551, 16
      %v1607 = vpop.permute.xlu0 %1606
      %1608 = vrot.lane.b32.xlu0 %v1555, 16
      %v1609 = vpop.permute.xlu0 %1608
      %1610 = vrot.lane.b32.xlu0 %v1559, 16
      %v1611 = vpop.permute.xlu0 %1610
      %1612 = vrot.lane.b32.xlu0 %v1563, 16
      %v1613 = vpop.permute.xlu0 %1612
      %1614 = vrot.lane.b32.xlu0 %v1567, 16
      %v1615 = vpop.permute.xlu0 %1614
      %1616 = vrot.lane.b32.xlu0 %v1571, 16
      %v1617 = vpop.permute.xlu0 %1616
      %1618 = vrot.lane.b32.xlu0 %v1580, 16
      %v1619 = vpop.permute.xlu0 %1618
      %1620 = vrot.lane.b32.xlu0 %v1585, 16
      %v1621 = vpop.permute.xlu0 %1620
      %v1623 = vunpack.c.l.b16 %v1093
      %v1624 = vpack.c.b16 %v1139, %v1623
      %vm1625 = vcmask 1045504
      %v1626 = vrot.slane %v1624, 2
      %v1627 = vrot.slane %v1174, 2
      %v1628 = vsel %vm1625, %v1626, %v1627
      %v1629 = vrot.slane %v1175, 2
      %v1630 = vsel %vm1625, %v1627, %v1629
      %v1631 = vrot.slane %v1176, 2
      %v1632 = vsel %vm1625, %v1629, %v1631
      %v1633 = vrot.slane %v1177, 2
      %v1634 = vsel %vm1625, %v1631, %v1633
      %v1635 = vrot.slane %v1178, 2
      %v1636 = vsel %vm1625, %v1633, %v1635
      %v1637 = vrot.slane %v1179, 2
      %v1638 = vsel %vm1625, %v1635, %v1637
      %v1639 = vrot.slane %v1180, 2
      %v1640 = vsel %vm1625, %v1637, %v1639
      %v1641 = vrot.slane %v1181, 2
      %v1642 = vsel %vm1625, %v1639, %v1641
      %v1643 = vrot.slane %v1182, 2
      %v1644 = vsel %vm1625, %v1641, %v1643
      %v1645 = vrot.slane %v1183, 2
      %v1646 = vsel %vm1625, %v1643, %v1645
      %v1647 = vrot.slane %v1184, 2
      %v1648 = vsel %vm1625, %v1645, %v1647
      %v1649 = vrot.slane %v1185, 2
      %v1650 = vsel %vm1625, %v1647, %v1649
      %v1651 = vrot.slane %v1186, 2
      %v1652 = vsel %vm1625, %v1649, %v1651
      %v1653 = vrot.slane %v1187, 2
      %v1654 = vsel %vm1625, %v1651, %v1653
      %v1655 = vrot.slane %v1188, 2
      %v1656 = vsel %vm1625, %v1653, %v1655
      %v1657 = vrot.slane %v1192, 2
      %v1658 = vsel %vm1625, %v1655, %v1657
      %v1659 = vrot.slane %v1455, 2
      %v1660 = vsel %vm1625, %v1657, %v1659
      %v1661 = vrot.slane %v1498, 2
      %v1662 = vsel %vm1625, %v1659, %v1661
      %1663 = vrot.lane.b32.xlu0 %v1628, 20
      %v1664 = vpop.permute.xlu0 %1663
      %1665 = vrot.lane.b32.xlu0 %v1630, 20
      %v1666 = vpop.permute.xlu0 %1665
      %1667 = vrot.lane.b32.xlu0 %v1632, 20
      %v1668 = vpop.permute.xlu0 %1667
      %1669 = vrot.lane.b32.xlu0 %v1634, 20
      %v1670 = vpop.permute.xlu0 %1669
      %1671 = vrot.lane.b32.xlu0 %v1636, 20
      %v1672 = vpop.permute.xlu0 %1671
      %1673 = vrot.lane.b32.xlu0 %v1638, 20
      %v1674 = vpop.permute.xlu0 %1673
      %1675 = vrot.lane.b32.xlu0 %v1640, 20
      %v1676 = vpop.permute.xlu0 %1675
      %1677 = vrot.lane.b32.xlu0 %v1642, 20
      %v1678 = vpop.permute.xlu0 %1677
      %1679 = vrot.lane.b32.xlu0 %v1644, 20
      %v1680 = vpop.permute.xlu0 %1679
      %1681 = vrot.lane.b32.xlu0 %v1646, 20
      %v1682 = vpop.permute.xlu0 %1681
      %1683 = vrot.lane.b32.xlu0 %v1648, 20
      %v1684 = vpop.permute.xlu0 %1683
      %1685 = vrot.lane.b32.xlu0 %v1650, 20
      %v1686 = vpop.permute.xlu0 %1685
      %1687 = vrot.lane.b32.xlu0 %v1652, 20
      %v1688 = vpop.permute.xlu0 %1687
      %1689 = vrot.lane.b32.xlu0 %v1654, 20
      %v1690 = vpop.permute.xlu0 %1689
      %1691 = vrot.lane.b32.xlu0 %v1656, 20
      %v1692 = vpop.permute.xlu0 %1691
      %1693 = vrot.lane.b32.xlu0 %v1658, 20
      %v1694 = vpop.permute.xlu0 %1693
      %1695 = vrot.lane.b32.xlu0 %v1660, 20
      %v1696 = vpop.permute.xlu0 %1695
      %1697 = vrot.lane.b32.xlu0 %v1662, 20
      %v1698 = vpop.permute.xlu0 %1697
      %v1703 = vunpack.c.l.b16 %v1094
      %v1704 = vunpack.c.l.b16 %v1095
      %v1705 = vunpack.c.l.b16 %v1096
      %v1706 = vunpack.c.l.b16 %v1097
      %v1707 = vpack.c.b16 %v1141, %v1703
      %v1708 = vpack.c.b16 %v1705, %v1704
      %v1709 = vpack.c.b16 %v1706, %v1706
      %v1710 = vrot.slane %v1707, 2
      %v1711 = vsel %vm1625, %v1710, %v1629
      %v1712 = vrot.slane %v1708, 2
      %v1713 = vsel %vm1625, %v1659, %v1712
      %v1714 = vrot.slane %v1709, 2
      %v1715 = vsel %vm1625, %v1712, %v1714
      %1716 = vrot.lane.b32.xlu0 %v1711, 24
      %v1717 = vpop.permute.xlu0 %1716
      %1718 = vrot.lane.b32.xlu0 %v1632, 24
      %v1719 = vpop.permute.xlu0 %1718
      %1720 = vrot.lane.b32.xlu0 %v1634, 24
      %v1721 = vpop.permute.xlu0 %1720
      %1722 = vrot.lane.b32.xlu0 %v1636, 24
      %v1723 = vpop.permute.xlu0 %1722
      %1724 = vrot.lane.b32.xlu0 %v1638, 24
      %v1725 = vpop.permute.xlu0 %1724
      %1726 = vrot.lane.b32.xlu0 %v1640, 24
      %v1727 = vpop.permute.xlu0 %1726
      %1728 = vrot.lane.b32.xlu0 %v1642, 24
      %v1729 = vpop.permute.xlu0 %1728
      %1730 = vrot.lane.b32.xlu0 %v1644, 24
      %v1731 = vpop.permute.xlu0 %1730
      %1732 = vrot.lane.b32.xlu0 %v1646, 24
      %v1733 = vpop.permute.xlu0 %1732
      %1734 = vrot.lane.b32.xlu0 %v1648, 24
      %v1735 = vpop.permute.xlu0 %1734
      %1736 = vrot.lane.b32.xlu0 %v1650, 24
      %v1737 = vpop.permute.xlu0 %1736
      %1738 = vrot.lane.b32.xlu0 %v1652, 24
      %v1739 = vpop.permute.xlu0 %1738
      %1740 = vrot.lane.b32.xlu0 %v1654, 24
      %v1741 = vpop.permute.xlu0 %1740
      %1742 = vrot.lane.b32.xlu0 %v1656, 24
      %v1743 = vpop.permute.xlu0 %1742
      %1744 = vrot.lane.b32.xlu0 %v1658, 24
      %v1745 = vpop.permute.xlu0 %1744
      %1746 = vrot.lane.b32.xlu0 %v1660, 24
      %v1747 = vpop.permute.xlu0 %1746
      %1748 = vrot.lane.b32.xlu0 %v1713, 24
      %v1749 = vpop.permute.xlu0 %1748
      %1750 = vrot.lane.b32.xlu0 %v1715, 24
      %v1751 = vpop.permute.xlu0 %1750
      %v1753 = vunpack.c.l.b16 %v1098
      %v1754 = vpack.c.b16 %v1753, %v1753
      %vm1755 = vsmask.f32 5376
      %v1757 = vshrl.u32 %v1707, 16
      %v1759 = vrot.slane %v1757, 2
      %v1760 = vshll.u32 %v1707, 16
      %v1762 = vrot.slane %v1760, 3
      %v1763 = vor.u32 %v1759, %v1762
      %v1764 = vrot.slane %v1222, 2
      %v1765 = vrot.slane %v1218, 3
      %v1766 = vor.u32 %v1764, %v1765
      %v1767 = vsel %vm1755, %v1763, %v1766
      %v1768 = vrot.slane %v1230, 2
      %v1769 = vrot.slane %v1226, 3
      %v1770 = vor.u32 %v1768, %v1769
      %v1771 = vsel %vm1755, %v1766, %v1770
      %v1772 = vrot.slane %v1238, 2
      %v1773 = vrot.slane %v1234, 3
      %v1774 = vor.u32 %v1772, %v1773
      %v1775 = vsel %vm1755, %v1770, %v1774
      %v1776 = vrot.slane %v1246, 2
      %v1777 = vrot.slane %v1242, 3
      %v1778 = vor.u32 %v1776, %v1777
      %v1779 = vsel %vm1755, %v1774, %v1778
      %v1780 = vrot.slane %v1254, 2
      %v1781 = vrot.slane %v1250, 3
      %v1782 = vor.u32 %v1780, %v1781
      %v1783 = vsel %vm1755, %v1778, %v1782
      %v1784 = vrot.slane %v1262, 2
      %v1785 = vrot.slane %v1258, 3
      %v1786 = vor.u32 %v1784, %v1785
      %v1787 = vsel %vm1755, %v1782, %v1786
      %v1788 = vrot.slane %v1270, 2
      %v1789 = vrot.slane %v1266, 3
      %v1790 = vor.u32 %v1788, %v1789
      %v1791 = vsel %vm1755, %v1786, %v1790
      %v1792 = vrot.slane %v1278, 2
      %v1793 = vrot.slane %v1274, 3
      %v1794 = vor.u32 %v1792, %v1793
      %v1795 = vsel %vm1755, %v1790, %v1794
      %v1796 = vrot.slane %v1286, 2
      %v1797 = vrot.slane %v1282, 3
      %v1798 = vor.u32 %v1796, %v1797
      %v1799 = vsel %vm1755, %v1794, %v1798
      %v1800 = vrot.slane %v1294, 2
      %v1801 = vrot.slane %v1290, 3
      %v1802 = vor.u32 %v1800, %v1801
      %v1803 = vsel %vm1755, %v1798, %v1802
      %v1804 = vrot.slane %v1302, 2
      %v1805 = vrot.slane %v1298, 3
      %v1806 = vor.u32 %v1804, %v1805
      %v1807 = vsel %vm1755, %v1802, %v1806
      %v1808 = vrot.slane %v1310, 2
      %v1809 = vrot.slane %v1306, 3
      %v1810 = vor.u32 %v1808, %v1809
      %v1811 = vsel %vm1755, %v1806, %v1810
      %v1812 = vrot.slane %v1318, 2
      %v1813 = vrot.slane %v1314, 3
      %v1814 = vor.u32 %v1812, %v1813
      %v1815 = vsel %vm1755, %v1810, %v1814
      %v1816 = vrot.slane %v1326, 2
      %v1817 = vrot.slane %v1322, 3
      %v1818 = vor.u32 %v1816, %v1817
      %v1819 = vsel %vm1755, %v1814, %v1818
      %v1820 = vrot.slane %v1334, 2
      %v1821 = vrot.slane %v1330, 3
      %v1822 = vor.u32 %v1820, %v1821
      %v1823 = vsel %vm1755, %v1818, %v1822
      %v1824 = vrot.slane %v1573, 2
      %v1825 = vrot.slane %v1576, 3
      %v1826 = vor.u32 %v1824, %v1825
      %v1827 = vsel %vm1755, %v1822, %v1826
      %v1829 = vshrl.u32 %v1708, 16
      %v1831 = vrot.slane %v1829, 2
      %v1832 = vshll.u32 %v1708, 16
      %v1834 = vrot.slane %v1832, 3
      %v1835 = vor.u32 %v1831, %v1834
      %v1836 = vsel %vm1755, %v1826, %v1835
      %v1838 = vshrl.u32 %v1754, 16
      %v1840 = vrot.slane %v1838, 2
      %v1841 = vshll.u32 %v1754, 16
      %v1843 = vrot.slane %v1841, 3
      %v1844 = vor.u32 %v1840, %v1843
      %v1845 = vsel %vm1755, %v1835, %v1844
      %1846 = vrot.lane.b32.xlu0 %v1767, 28
      %v1847 = vpop.permute.xlu0 %1846
      %1848 = vrot.lane.b32.xlu0 %v1771, 28
      %v1849 = vpop.permute.xlu0 %1848
      %1850 = vrot.lane.b32.xlu0 %v1775, 28
      %v1851 = vpop.permute.xlu0 %1850
      %1852 = vrot.lane.b32.xlu0 %v1779, 28
      %v1853 = vpop.permute.xlu0 %1852
      %1854 = vrot.lane.b32.xlu0 %v1783, 28
      %v1855 = vpop.permute.xlu0 %1854
      %1856 = vrot.lane.b32.xlu0 %v1787, 28
      %v1857 = vpop.permute.xlu0 %1856
      %1858 = vrot.lane.b32.xlu0 %v1791, 28
      %v1859 = vpop.permute.xlu0 %1858
      %1860 = vrot.lane.b32.xlu0 %v1795, 28
      %v1861 = vpop.permute.xlu0 %1860
      %1862 = vrot.lane.b32.xlu0 %v1799, 28
      %v1863 = vpop.permute.xlu0 %1862
      %1864 = vrot.lane.b32.xlu0 %v1803, 28
      %v1865 = vpop.permute.xlu0 %1864
      %1866 = vrot.lane.b32.xlu0 %v1807, 28
      %v1867 = vpop.permute.xlu0 %1866
      %1868 = vrot.lane.b32.xlu0 %v1811, 28
      %v1869 = vpop.permute.xlu0 %1868
      %1870 = vrot.lane.b32.xlu0 %v1815, 28
      %v1871 = vpop.permute.xlu0 %1870
      %1872 = vrot.lane.b32.xlu0 %v1819, 28
      %v1873 = vpop.permute.xlu0 %1872
      %1874 = vrot.lane.b32.xlu0 %v1823, 28
      %v1875 = vpop.permute.xlu0 %1874
      %1876 = vrot.lane.b32.xlu0 %v1827, 28
      %v1877 = vpop.permute.xlu0 %1876
      %1878 = vrot.lane.b32.xlu0 %v1836, 28
      %v1879 = vpop.permute.xlu0 %1878
      %1880 = vrot.lane.b32.xlu0 %v1845, 28
      %v1881 = vpop.permute.xlu0 %1880
      %v1883 = vunpack.c.l.b16 %v1099
      %v1884 = vpack.c.b16 %v1141, %v1883
      %vm1885 = vcmask 1044480
      %v1886 = vrot.slane %v1884, 3
      %v1887 = vrot.slane %v1175, 3
      %v1888 = vsel %vm1885, %v1886, %v1887
      %v1889 = vrot.slane %v1176, 3
      %v1890 = vsel %vm1885, %v1887, %v1889
      %v1891 = vrot.slane %v1177, 3
      %v1892 = vsel %vm1885, %v1889, %v1891
      %v1893 = vrot.slane %v1178, 3
      %v1894 = vsel %vm1885, %v1891, %v1893
      %v1895 = vrot.slane %v1179, 3
      %v1896 = vsel %vm1885, %v1893, %v1895
      %v1897 = vrot.slane %v1180, 3
      %v1898 = vsel %vm1885, %v1895, %v1897
      %v1899 = vrot.slane %v1181, 3
      %v1900 = vsel %vm1885, %v1897, %v1899
      %v1901 = vrot.slane %v1182, 3
      %v1902 = vsel %vm1885, %v1899, %v1901
      %v1903 = vrot.slane %v1183, 3
      %v1904 = vsel %vm1885, %v1901, %v1903
      %v1905 = vrot.slane %v1184, 3
      %v1906 = vsel %vm1885, %v1903, %v1905
      %v1907 = vrot.slane %v1185, 3
      %v1908 = vsel %vm1885, %v1905, %v1907
      %v1909 = vrot.slane %v1186, 3
      %v1910 = vsel %vm1885, %v1907, %v1909
      %v1911 = vrot.slane %v1187, 3
      %v1912 = vsel %vm1885, %v1909, %v1911
      %v1913 = vrot.slane %v1188, 3
      %v1914 = vsel %vm1885, %v1911, %v1913
      %v1915 = vrot.slane %v1192, 3
      %v1916 = vsel %vm1885, %v1913, %v1915
      %v1917 = vrot.slane %v1455, 3
      %v1918 = vsel %vm1885, %v1915, %v1917
      %v1919 = vrot.slane %v1708, 3
      %v1920 = vsel %vm1885, %v1917, %v1919
      %v1921 = vrot.slane %v1754, 3
      %v1922 = vsel %vm1885, %v1919, %v1921
      %1923 = vrot.lane.b32.xlu0 %v1888, 32
      %v1924 = vpop.permute.xlu0 %1923
      %1925 = vrot.lane.b32.xlu0 %v1890, 32
      %v1926 = vpop.permute.xlu0 %1925
      %1927 = vrot.lane.b32.xlu0 %v1892, 32
      %v1928 = vpop.permute.xlu0 %1927
      %1929 = vrot.lane.b32.xlu0 %v1894, 32
      %v1930 = vpop.permute.xlu0 %1929
      %1931 = vrot.lane.b32.xlu0 %v1896, 32
      %v1932 = vpop.permute.xlu0 %1931
      %1933 = vrot.lane.b32.xlu0 %v1898, 32
      %v1934 = vpop.permute.xlu0 %1933
      %1935 = vrot.lane.b32.xlu0 %v1900, 32
      %v1936 = vpop.permute.xlu0 %1935
      %1937 = vrot.lane.b32.xlu0 %v1902, 32
      %v1938 = vpop.permute.xlu0 %1937
      %1939 = vrot.lane.b32.xlu0 %v1904, 32
      %v1940 = vpop.permute.xlu0 %1939
      %1941 = vrot.lane.b32.xlu0 %v1906, 32
      %v1942 = vpop.permute.xlu0 %1941
      %1943 = vrot.lane.b32.xlu0 %v1908, 32
      %v1944 = vpop.permute.xlu0 %1943
      %1945 = vrot.lane.b32.xlu0 %v1910, 32
      %v1946 = vpop.permute.xlu0 %1945
      %1947 = vrot.lane.b32.xlu0 %v1912, 32
      %v1948 = vpop.permute.xlu0 %1947
      %1949 = vrot.lane.b32.xlu0 %v1914, 32
      %v1950 = vpop.permute.xlu0 %1949
      %1951 = vrot.lane.b32.xlu0 %v1916, 32
      %v1952 = vpop.permute.xlu0 %1951
      %1953 = vrot.lane.b32.xlu0 %v1918, 32
      %v1954 = vpop.permute.xlu0 %1953
      %1955 = vrot.lane.b32.xlu0 %v1920, 32
      %v1956 = vpop.permute.xlu0 %1955
      %1957 = vrot.lane.b32.xlu0 %v1922, 32
      %v1958 = vpop.permute.xlu0 %1957
      %vm1959 = vcmask 31744
      %v1961 = vsel %vm1959, %v1172, %v1338
      %v1963 = vsel %vm1959, %v1173, %v1340
      %v1965 = vsel %vm1959, %v1174, %v1342
      %v1967 = vsel %vm1959, %v1175, %v1344
      %v1969 = vsel %vm1959, %v1176, %v1346
      %v1971 = vsel %vm1959, %v1177, %v1348
      %v1973 = vsel %vm1959, %v1178, %v1350
      %v1975 = vsel %vm1959, %v1179, %v1352
      %v1977 = vsel %vm1959, %v1180, %v1354
      %v1979 = vsel %vm1959, %v1181, %v1356
      %v1981 = vsel %vm1959, %v1182, %v1358
      %v1983 = vsel %vm1959, %v1183, %v1360
      %v1985 = vsel %vm1959, %v1184, %v1362
      %v1987 = vsel %vm1959, %v1185, %v1364
      %v1989 = vsel %vm1959, %v1186, %v1366
      %v1991 = vsel %vm1959, %v1187, %v1368
      %v1993 = vsel %vm1959, %v1188, %v1370
      %v1996 = vsel %vm1959, %v1189, %v1372
      %vm1997 = vcmask 64512
      %v1999 = vsel %vm1997, %v1961, %v1413
      %v2001 = vsel %vm1997, %v1963, %v1415
      %v2003 = vsel %vm1997, %v1965, %v1417
      %v2005 = vsel %vm1997, %v1967, %v1419
      %v2007 = vsel %vm1997, %v1969, %v1421
      %v2009 = vsel %vm1997, %v1971, %v1423
      %v2011 = vsel %vm1997, %v1973, %v1425
      %v2013 = vsel %vm1997, %v1975, %v1427
      %v2015 = vsel %vm1997, %v1977, %v1429
      %v2017 = vsel %vm1997, %v1979, %v1431
      %v2019 = vsel %vm1997, %v1981, %v1433
      %v2021 = vsel %vm1997, %v1983, %v1435
      %v2023 = vsel %vm1997, %v1985, %v1437
      %v2025 = vsel %vm1997, %v1987, %v1439
      %v2027 = vsel %vm1997, %v1989, %v1441
      %v2029 = vsel %vm1997, %v1991, %v1443
      %v2031 = vsel %vm1997, %v1993, %v1445
      %v2033 = vsel %vm1997, %v1996, %v1447
      %vm2034 = vcmask 97280
      %v2036 = vsel %vm2034, %v1999, %v1461
      %v2038 = vsel %vm2034, %v2001, %v1463
      %v2040 = vsel %vm2034, %v2003, %v1465
      %v2042 = vsel %vm2034, %v2005, %v1467
      %v2044 = vsel %vm2034, %v2007, %v1469
      %v2046 = vsel %vm2034, %v2009, %v1471
      %v2048 = vsel %vm2034, %v2011, %v1473
      %v2050 = vsel %vm2034, %v2013, %v1475
      %v2052 = vsel %vm2034, %v2015, %v1477
      %v2054 = vsel %vm2034, %v2017, %v1479
      %v2056 = vsel %vm2034, %v2019, %v1481
      %v2058 = vsel %vm2034, %v2021, %v1483
      %v2060 = vsel %vm2034, %v2023, %v1485
      %v2062 = vsel %vm2034, %v2025, %v1487
      %v2064 = vsel %vm2034, %v2027, %v1489
      %v2066 = vsel %vm2034, %v2029, %v1491
      %v2068 = vsel %vm2034, %v2031, %v1493
      %v2070 = vsel %vm2034, %v2033, %v1495
      %v2072 = vsel %vm280, %v2036, %v1587
      %v2074 = vsel %vm280, %v2038, %v1589
      %v2076 = vsel %vm280, %v2040, %v1591
      %v2078 = vsel %vm280, %v2042, %v1593
      %v2080 = vsel %vm280, %v2044, %v1595
      %v2082 = vsel %vm280, %v2046, %v1597
      %v2084 = vsel %vm280, %v2048, %v1599
      %v2086 = vsel %vm280, %v2050, %v1601
      %v2088 = vsel %vm280, %v2052, %v1603
      %v2090 = vsel %vm280, %v2054, %v1605
      %v2092 = vsel %vm280, %v2056, %v1607
      %v2094 = vsel %vm280, %v2058, %v1609
      %v2096 = vsel %vm280, %v2060, %v1611
      %v2098 = vsel %vm280, %v2062, %v1613
      %v2100 = vsel %vm280, %v2064, %v1615
      %v2102 = vsel %vm280, %v2066, %v1617
      %v2104 = vsel %vm280, %v2068, %v1619
      %v2106 = vsel %vm280, %v2070, %v1621
      %vm2107 = vcmask 162816
      %v2109 = vsel %vm2107, %v2072, %v1664
      %v2111 = vsel %vm2107, %v2074, %v1666
      %v2113 = vsel %vm2107, %v2076, %v1668
      %v2115 = vsel %vm2107, %v2078, %v1670
      %v2117 = vsel %vm2107, %v2080, %v1672
      %v2119 = vsel %vm2107, %v2082, %v1674
      %v2121 = vsel %vm2107, %v2084, %v1676
      %v2123 = vsel %vm2107, %v2086, %v1678
      %v2125 = vsel %vm2107, %v2088, %v1680
      %v2127 = vsel %vm2107, %v2090, %v1682
      %v2129 = vsel %vm2107, %v2092, %v1684
      %v2131 = vsel %vm2107, %v2094, %v1686
      %v2133 = vsel %vm2107, %v2096, %v1688
      %v2135 = vsel %vm2107, %v2098, %v1690
      %v2137 = vsel %vm2107, %v2100, %v1692
      %v2139 = vsel %vm2107, %v2102, %v1694
      %v2141 = vsel %vm2107, %v2104, %v1696
      %v2143 = vsel %vm2107, %v2106, %v1698
      %vm2144 = vcmask 195584
      %v2146 = vsel %vm2144, %v2109, %v1717
      %v2148 = vsel %vm2144, %v2111, %v1719
      %v2150 = vsel %vm2144, %v2113, %v1721
      %v2152 = vsel %vm2144, %v2115, %v1723
      %v2154 = vsel %vm2144, %v2117, %v1725
      %v2156 = vsel %vm2144, %v2119, %v1727
      %v2158 = vsel %vm2144, %v2121, %v1729
      %v2160 = vsel %vm2144, %v2123, %v1731
      %v2162 = vsel %vm2144, %v2125, %v1733
      %v2164 = vsel %vm2144, %v2127, %v1735
      %v2166 = vsel %vm2144, %v2129, %v1737
      %v2168 = vsel %vm2144, %v2131, %v1739
      %v2170 = vsel %vm2144, %v2133, %v1741
      %v2172 = vsel %vm2144, %v2135, %v1743
      %v2174 = vsel %vm2144, %v2137, %v1745
      %v2176 = vsel %vm2144, %v2139, %v1747
      %v2178 = vsel %vm2144, %v2141, %v1749
      %v2180 = vsel %vm2144, %v2143, %v1751
      %vm2181 = vcmask 228352
      %v2183 = vsel %vm2181, %v2146, %v1847
      %v2185 = vsel %vm2181, %v2148, %v1849
      %v2187 = vsel %vm2181, %v2150, %v1851
      %v2189 = vsel %vm2181, %v2152, %v1853
      %v2191 = vsel %vm2181, %v2154, %v1855
      %v2193 = vsel %vm2181, %v2156, %v1857
      %v2195 = vsel %vm2181, %v2158, %v1859
      %v2197 = vsel %vm2181, %v2160, %v1861
      %v2199 = vsel %vm2181, %v2162, %v1863
      %v2201 = vsel %vm2181, %v2164, %v1865
      %v2203 = vsel %vm2181, %v2166, %v1867
      %v2205 = vsel %vm2181, %v2168, %v1869
      %v2207 = vsel %vm2181, %v2170, %v1871
      %v2209 = vsel %vm2181, %v2172, %v1873
      %v2211 = vsel %vm2181, %v2174, %v1875
      %v2213 = vsel %vm2181, %v2176, %v1877
      %v2215 = vsel %vm2181, %v2178, %v1879
      %v2217 = vsel %vm2181, %v2180, %v1881
      %vm2218 = vcmask 261120
      %v2220 = vsel %vm2218, %v2183, %v1924
      %v2222 = vsel %vm2218, %v2185, %v1926
      %v2224 = vsel %vm2218, %v2187, %v1928
      %v2226 = vsel %vm2218, %v2189, %v1930
      %v2228 = vsel %vm2218, %v2191, %v1932
      %v2230 = vsel %vm2218, %v2193, %v1934
      %v2232 = vsel %vm2218, %v2195, %v1936
      %v2234 = vsel %vm2218, %v2197, %v1938
      %v2236 = vsel %vm2218, %v2199, %v1940
      %v2238 = vsel %vm2218, %v2201, %v1942
      %v2240 = vsel %vm2218, %v2203, %v1944
      %v2242 = vsel %vm2218, %v2205, %v1946
      %v2244 = vsel %vm2218, %v2207, %v1948
      %v2246 = vsel %vm2218, %v2209, %v1950
      %v2248 = vsel %vm2218, %v2211, %v1952
      %v2250 = vsel %vm2218, %v2213, %v1954
      %v2252 = vsel %vm2218, %v2215, %v1956
      %v2254 = vsel %vm2218, %v2217, %v1958
      %v2255 = vld [vmem:[%s1] sm:$0xf]
      %v2256 = vld [vmem:[%s1 + $0x4] sm:$0xf]
      %v2257 = vld [vmem:[%s1 + $0x8] sm:$0xf]
      %v2258 = vld [vmem:[%s1 + $0xc] sm:$0xf]
      %v2259 = vld [vmem:[%s1 + $0x10] sm:$0x3]
      %v2260 = vld [vmem:[%s2] sm:$0x1]
      %v2262 = vlaneseq
      %v2263 = vshrl.u32 %v2262, 7
      %v2264 = vsub.s32 0, %v2263
      %v2265 = vrot.slane %v2260, %v2264
      %v2272 = vunpack.c.l.b16 %v2255
      %v2273 = vunpack.c.l.b16 %v2256
      %v2274 = vunpack.c.l.b16 %v2257
      %v2275 = vunpack.c.l.b16 %v2258
      %v2276 = vunpack.c.l.b16 %v2259
      %v2277 = vpack.c.b16 %v2273, %v2272
      %v2278 = vpack.c.b16 %v2275, %v2274
      %v2279 = vpack.c.b16 %v2276, %v2276
      %vm2282 = vcmask 293888
      %v2283 = vsel %vm2282, %v2220, 0
      %v2285 = vsel %vm2282, %v2222, 0
      %v2287 = vsel %vm2282, %v2224, 0
      %v2289 = vsel %vm2282, %v2226, 0
      %v2291 = vsel %vm2282, %v2228, 0
      %v2293 = vsel %vm2282, %v2230, 0
      %v2295 = vsel %vm2282, %v2232, 0
      %v2297 = vsel %vm2282, %v2234, 0
      %v2299 = vsel %vm2282, %v2236, 0
      %v2301 = vsel %vm2282, %v2238, 0
      %v2303 = vsel %vm2282, %v2240, 0
      %v2305 = vsel %vm2282, %v2242, 0
      %v2307 = vsel %vm2282, %v2244, 0
      %v2309 = vsel %vm2282, %v2246, 0
      %v2311 = vsel %vm2282, %v2248, 0
      %v2313 = vsel %vm2282, %v2250, 0
      %v2315 = vsel %vm2282, %v2252, 0
      %v2317 = vsel %vm2282, %v2254, 0
      %vm2319 = vcmask 1041408
      %v2321 = vsel %vm2319, %v2279, 0
      %2323 = vmatprep.subr.bf16.mxu0 0
      %2324 = vmatpush1.bf16.msra.mxu0 %v2277
      %2325 = vmatprep.subr.bf16.mxu0 0
      %2326 = vmatpush1.bf16.msra.mxu0 %v2278
      %2327 = vmatprep.subr.bf16.mxu0 0
      %2328 = vmatpush1.bf16.msra.mxu0 %v2321
      %2329 = vmatprep.subr.bf16.mxu0 0
      %2330 = vmatpush1.bf16.msra.mxu0 0
      %2331 = vmatprep.subr.bf16.mxu0 0
      %2332 = vmatpush1.bf16.msra.mxu0 0
      %2333 = vmatprep.subr.bf16.mxu0 0
      %2334 = vmatpush1.bf16.msra.mxu0 0
      %2335 = vmatprep.subr.bf16.mxu0 0
      %2336 = vmatpush1.bf16.msra.mxu0 0
      %2337 = vmatprep.subr.bf16.mxu0 0
      %2338 = vmatpush1.bf16.msra.mxu0 0
      %2339 = vmatprep.subr.bf16.mxu0 0
      %2340 = vmatpush1.bf16.msra.mxu0 0
      %2341 = vmatprep.subr.bf16.mxu0 0
      %2342 = vmatpush1.bf16.msra.mxu0 0
      %2343 = vmatprep.subr.bf16.mxu0 0
      %2344 = vmatpush1.bf16.msra.mxu0 0
      %2345 = vmatprep.subr.bf16.mxu0 0
      %2346 = vmatpush1.bf16.msra.mxu0 0
      %2347 = vmatprep.subr.bf16.mxu0 0
      %2348 = vmatpush1.bf16.msra.mxu0 0
      %2349 = vmatprep.subr.bf16.mxu0 0
      %2350 = vmatpush1.bf16.msra.mxu0 0
      %2351 = vmatprep.subr.bf16.mxu0 0
      %2352 = vmatpush1.bf16.msra.mxu0 0
      %2353 = vmatprep.subr.bf16.mxu0 0
      %2354 = vmatpush1.bf16.msra.mxu0 0
      %2355 = vmatprep.mubr.bf16.mxu0 0
      %2356 = vmatmul.mubr.bf16.gmra.mrb[0].mxu0 %v2283
      %v2357 = vpop.f32.mrb[0].mxu0
      %v2358 = vadd.f32 %v2265, %v2357
      %v2359 = vpop.f32.mrb[0].mxu0
      %v2360 = vpop.f32.mrb[0].mxu0
      %v2361 = vadd.f32 %v2265, %v2360
      %v2362 = vpop.f32.mrb[0].mxu0
      %2363 = vmatprep.mubr.bf16.mxu0 0
      %2364 = vmatmul.mubr.bf16.gmra.mrb[0].mxu0 %v2285
      %v2365 = vpop.f32.mrb[0].mxu0
      %v2366 = vadd.f32 %v2265, %v2365
      %v2367 = vpop.f32.mrb[0].mxu0
      %v2368 = vpop.f32.mrb[0].mxu0
      %v2369 = vadd.f32 %v2265, %v2368
      %v2370 = vpop.f32.mrb[0].mxu0
      %2371 = vmatprep.mubr.bf16.mxu0 0
      %2372 = vmatmul.mubr.bf16.gmra.mrb[0].mxu0 %v2287
      %v2373 = vpop.f32.mrb[0].mxu0
      %v2374 = vadd.f32 %v2265, %v2373
      %v2375 = vpop.f32.mrb[0].mxu0
      %v2376 = vpop.f32.mrb[0].mxu0
      %v2377 = vadd.f32 %v2265, %v2376
      %v2378 = vpop.f32.mrb[0].mxu0
      %2379 = vmatprep.mubr.bf16.mxu0 0
      %2380 = vmatmul.mubr.bf16.gmra.mrb[0].mxu0 %v2289
      %v2381 = vpop.f32.mrb[0].mxu0
      %v2382 = vadd.f32 %v2265, %v2381
      %v2383 = vpop.f32.mrb[0].mxu0
      %v2384 = vpop.f32.mrb[0].mxu0
      %v2385 = vadd.f32 %v2265, %v2384
      %v2386 = vpop.f32.mrb[0].mxu0
      %2387 = vmatprep.mubr.bf16.mxu0 0
      %2388 = vmatmul.mubr.bf16.gmra.mrb[0].mxu0 %v2291
      %v2389 = vpop.f32.mrb[0].mxu0
      %v2390 = vadd.f32 %v2265, %v2389
      %v2391 = vpop.f32.mrb[0].mxu0
      %v2392 = vpop.f32.mrb[0].mxu0
      %v2393 = vadd.f32 %v2265, %v2392
      %v2394 = vpop.f32.mrb[0].mxu0
      %2395 = vmatprep.mubr.bf16.mxu0 0
      %2396 = vmatmul.mubr.bf16.gmra.mrb[0].mxu0 %v2293
      %v2397 = vpop.f32.mrb[0].mxu0
      %v2398 = vadd.f32 %v2265, %v2397
      %v2399 = vpop.f32.mrb[0].mxu0
      %v2400 = vpop.f32.mrb[0].mxu0
      %v2401 = vadd.f32 %v2265, %v2400
      %v2402 = vpop.f32.mrb[0].mxu0
      %2403 = vmatprep.mubr.bf16.mxu0 0
      %2404 = vmatmul.mubr.bf16.gmra.mrb[0].mxu0 %v2295
      %v2405 = vpop.f32.mrb[0].mxu0
      %v2406 = vadd.f32 %v2265, %v2405
      %v2407 = vpop.f32.mrb[0].mxu0
      %v2408 = vpop.f32.mrb[0].mxu0
      %v2409 = vadd.f32 %v2265, %v2408
      %v2410 = vpop.f32.mrb[0].mxu0
      %2411 = vmatprep.mubr.bf16.mxu0 0
      %2412 = vmatmul.mubr.bf16.gmra.mrb[0].mxu0 %v2297
      %v2413 = vpop.f32.mrb[0].mxu0
      %v2414 = vadd.f32 %v2265, %v2413
      %v2415 = vpop.f32.mrb[0].mxu0
      %v2416 = vpop.f32.mrb[0].mxu0
      %v2417 = vadd.f32 %v2265, %v2416
      %v2418 = vpop.f32.mrb[0].mxu0
      %2419 = vmatprep.mubr.bf16.mxu0 0
      %2420 = vmatmul.mubr.bf16.gmra.mrb[0].mxu0 %v2299
      %v2421 = vpop.f32.mrb[0].mxu0
      %v2422 = vadd.f32 %v2265, %v2421
      %v2423 = vpop.f32.mrb[0].mxu0
      %v2424 = vpop.f32.mrb[0].mxu0
      %v2425 = vadd.f32 %v2265, %v2424
      %v2426 = vpop.f32.mrb[0].mxu0
      %2427 = vmatprep.mubr.bf16.mxu0 0
      %2428 = vmatmul.mubr.bf16.gmra.mrb[0].mxu0 %v2301
      %v2429 = vpop.f32.mrb[0].mxu0
      %v2430 = vadd.f32 %v2265, %v2429
      %v2431 = vpop.f32.mrb[0].mxu0
      %v2432 = vpop.f32.mrb[0].mxu0
      %v2433 = vadd.f32 %v2265, %v2432
      %v2434 = vpop.f32.mrb[0].mxu0
      %2435 = vmatprep.mubr.bf16.mxu0 0
      %2436 = vmatmul.mubr.bf16.gmra.mrb[0].mxu0 %v2303
      %v2437 = vpop.f32.mrb[0].mxu0
      %v2438 = vadd.f32 %v2265, %v2437
      %v2439 = vpop.f32.mrb[0].mxu0
      %v2440 = vpop.f32.mrb[0].mxu0
      %v2441 = vadd.f32 %v2265, %v2440
      %v2442 = vpop.f32.mrb[0].mxu0
      %2443 = vmatprep.mubr.bf16.mxu0 0
      %2444 = vmatmul.mubr.bf16.gmra.mrb[0].mxu0 %v2305
      %v2445 = vpop.f32.mrb[0].mxu0
      %v2446 = vadd.f32 %v2265, %v2445
      %v2447 = vpop.f32.mrb[0].mxu0
      %v2448 = vpop.f32.mrb[0].mxu0
      %v2449 = vadd.f32 %v2265, %v2448
      %v2450 = vpop.f32.mrb[0].mxu0
      %2451 = vmatprep.mubr.bf16.mxu0 0
      %2452 = vmatmul.mubr.bf16.gmra.mrb[0].mxu0 %v2307
      %v2453 = vpop.f32.mrb[0].mxu0
      %v2454 = vadd.f32 %v2265, %v2453
      %v2455 = vpop.f32.mrb[0].mxu0
      %v2456 = vpop.f32.mrb[0].mxu0
      %v2457 = vadd.f32 %v2265, %v2456
      %v2458 = vpop.f32.mrb[0].mxu0
      %2459 = vmatprep.mubr.bf16.mxu0 0
      %2460 = vmatmul.mubr.bf16.gmra.mrb[0].mxu0 %v2309
      %v2461 = vpop.f32.mrb[0].mxu0
      %v2462 = vadd.f32 %v2265, %v2461
      %v2463 = vpop.f32.mrb[0].mxu0
      %v2464 = vpop.f32.mrb[0].mxu0
      %v2465 = vadd.f32 %v2265, %v2464
      %v2466 = vpop.f32.mrb[0].mxu0
      %2467 = vmatprep.mubr.bf16.mxu0 0
      %2468 = vmatmul.mubr.bf16.gmra.mrb[0].mxu0 %v2311
      %v2469 = vpop.f32.mrb[0].mxu0
      %v2470 = vadd.f32 %v2265, %v2469
      %v2471 = vpop.f32.mrb[0].mxu0
      %v2472 = vpop.f32.mrb[0].mxu0
      %v2473 = vadd.f32 %v2265, %v2472
      %v2474 = vpop.f32.mrb[0].mxu0
      %2475 = vmatprep.mubr.bf16.mxu0 0
      %2476 = vmatmul.mubr.bf16.gmra.mrb[0].mxu0 %v2313
      %v2477 = vpop.f32.mrb[0].mxu0
      %v2478 = vadd.f32 %v2265, %v2477
      %v2479 = vpop.f32.mrb[0].mxu0
      %v2480 = vpop.f32.mrb[0].mxu0
      %v2481 = vadd.f32 %v2265, %v2480
      %v2482 = vpop.f32.mrb[0].mxu0
      %2483 = vmatprep.mubr.bf16.mxu0 0
      %2484 = vmatmul.mubr.bf16.gmra.mrb[0].mxu0 %v2315
      %v2485 = vpop.f32.mrb[0].mxu0
      %v2486 = vadd.f32 %v2265, %v2485
      %v2487 = vpop.f32.mrb[0].mxu0
      %v2488 = vpop.f32.mrb[0].mxu0
      %v2489 = vadd.f32 %v2265, %v2488
      %v2490 = vpop.f32.mrb[0].mxu0
      %2491 = vmatprep.mubr.bf16.mxu0 0
      %2492 = vmatmul.mubr.bf16.gmra.mrb[0].mxu0 %v2317
      %v2493 = vpop.f32.mrb[0].mxu0
      %v2494 = vadd.f32 %v2265, %v2493
      %v2495 = vpop.f32.mrb[0].mxu0
      %v2496 = vpop.f32.mrb[0].mxu0
      %v2497 = vadd.f32 %v2265, %v2496
      %v2498 = vpop.f32.mrb[0].mxu0
      %2499 = vdwg.mxu0
      %v2500 = vmax.f32 %v2358, 0.0
      %v2501 = vmax.f32 %v2361, 0.0
      %v2502 = vmax.f32 %v2366, 0.0
      %v2503 = vmax.f32 %v2369, 0.0
      %v2504 = vmax.f32 %v2374, 0.0
      %v2505 = vmax.f32 %v2377, 0.0
      %v2506 = vmax.f32 %v2382, 0.0
      %v2507 = vmax.f32 %v2385, 0.0
      %v2508 = vmax.f32 %v2390, 0.0
      %v2509 = vmax.f32 %v2393, 0.0
      %v2510 = vmax.f32 %v2398, 0.0
      %v2511 = vmax.f32 %v2401, 0.0
      %v2512 = vmax.f32 %v2406, 0.0
      %v2513 = vmax.f32 %v2409, 0.0
      %v2514 = vmax.f32 %v2414, 0.0
      %v2515 = vmax.f32 %v2417, 0.0
      %v2516 = vmax.f32 %v2422, 0.0
      %v2517 = vmax.f32 %v2425, 0.0
      %v2518 = vmax.f32 %v2430, 0.0
      %v2519 = vmax.f32 %v2433, 0.0
      %v2520 = vmax.f32 %v2438, 0.0
      %v2521 = vmax.f32 %v2441, 0.0
      %v2522 = vmax.f32 %v2446, 0.0
      %v2523 = vmax.f32 %v2449, 0.0
      %v2524 = vmax.f32 %v2454, 0.0
      %v2525 = vmax.f32 %v2457, 0.0
      %v2526 = vmax.f32 %v2462, 0.0
      %v2527 = vmax.f32 %v2465, 0.0
      %v2528 = vmax.f32 %v2470, 0.0
      %v2529 = vmax.f32 %v2473, 0.0
      %v2530 = vmax.f32 %v2478, 0.0
      %v2531 = vmax.f32 %v2481, 0.0
      %v2532 = vmax.f32 %v2486, 0.0
      %v2533 = vmax.f32 %v2489, 0.0
      %v2534 = vmax.f32 %v2494, 0.0
      %v2535 = vmax.f32 %v2497, 0.0
      %v2536 = vsel %vm1015, 1, 0
      %v2537 = vsel %vm1016, 1, 0
      %v2538 = vsel %vm1017, 1, 0
      %v2539 = vsel %vm1018, 1, 0
      %v2540 = vsel %vm1019, 1, 0
      %v2541 = vsel %vm1020, 1, 0
      %v2542 = vsel %vm1021, 1, 0
      %v2543 = vsel %vm1022, 1, 0
      %v2544 = vsel %vm1023, 1, 0
      %v2545 = vsel %vm1024, 1, 0
      %v2546 = vsel %vm1025, 1, 0
      %v2547 = vsel %vm1026, 1, 0
      %v2548 = vsel %vm1027, 1, 0
      %v2549 = vsel %vm1028, 1, 0
      %v2550 = vsel %vm1029, 1, 0
      %v2551 = vsel %vm1030, 1, 0
      %v2552 = vsel %vm1031, 1, 0
      %v2553 = vsel %vm1032, 1, 0
      %v2554 = vsel %vm1033, 1, 0
      %v2555 = vsel %vm1034, 1, 0
      %v2556 = vsel %vm1035, 1, 0
      %v2557 = vsel %vm1036, 1, 0
      %v2558 = vsel %vm1037, 1, 0
      %v2559 = vsel %vm1038, 1, 0
      %v2560 = vsel %vm1039, 1, 0
      %v2561 = vsel %vm1040, 1, 0
      %v2562 = vsel %vm1041, 1, 0
      %v2563 = vsel %vm1042, 1, 0
      %v2564 = vsel %vm1043, 1, 0
      %v2565 = vsel %vm1044, 1, 0
      %v2566 = vsel %vm1045, 1, 0
      %v2567 = vsel %vm1046, 1, 0
      %v2568 = vsel %vm1047, 1, 0
      %v2569 = vsel %vm1048, 1, 0
      %v2570 = vsel %vm1049, 1, 0
      %v2571 = vsel %vm1050, 1, 0
      %vm2572 = vcmp.eq.s32.totalorder %v2536, 1
      %vm2573 = vcmp.eq.s32.totalorder %v2537, 1
      %vm2574 = vcmp.eq.s32.totalorder %v2538, 1
      %vm2575 = vcmp.eq.s32.totalorder %v2539, 1
      %vm2576 = vcmp.eq.s32.totalorder %v2540, 1
      %vm2577 = vcmp.eq.s32.totalorder %v2541, 1
      %vm2578 = vcmp.eq.s32.totalorder %v2542, 1
      %vm2579 = vcmp.eq.s32.totalorder %v2543, 1
      %vm2580 = vcmp.eq.s32.totalorder %v2544, 1
      %vm2581 = vcmp.eq.s32.totalorder %v2545, 1
      %vm2582 = vcmp.eq.s32.totalorder %v2546, 1
      %vm2583 = vcmp.eq.s32.totalorder %v2547, 1
      %vm2584 = vcmp.eq.s32.totalorder %v2548, 1
      %vm2585 = vcmp.eq.s32.totalorder %v2549, 1
      %vm2586 = vcmp.eq.s32.totalorder %v2550, 1
      %vm2587 = vcmp.eq.s32.totalorder %v2551, 1
      %vm2588 = vcmp.eq.s32.totalorder %v2552, 1
      %vm2589 = vcmp.eq.s32.totalorder %v2553, 1
      %vm2590 = vcmp.eq.s32.totalorder %v2554, 1
      %vm2591 = vcmp.eq.s32.totalorder %v2555, 1
      %vm2592 = vcmp.eq.s32.totalorder %v2556, 1
      %vm2593 = vcmp.eq.s32.totalorder %v2557, 1
      %vm2594 = vcmp.eq.s32.totalorder %v2558, 1
      %vm2595 = vcmp.eq.s32.totalorder %v2559, 1
      %vm2596 = vcmp.eq.s32.totalorder %v2560, 1
      %vm2597 = vcmp.eq.s32.totalorder %v2561, 1
      %vm2598 = vcmp.eq.s32.totalorder %v2562, 1
      %vm2599 = vcmp.eq.s32.totalorder %v2563, 1
      %vm2600 = vcmp.eq.s32.totalorder %v2564, 1
      %vm2601 = vcmp.eq.s32.totalorder %v2565, 1
      %vm2602 = vcmp.eq.s32.totalorder %v2566, 1
      %vm2603 = vcmp.eq.s32.totalorder %v2567, 1
      %vm2604 = vcmp.eq.s32.totalorder %v2568, 1
      %vm2605 = vcmp.eq.s32.totalorder %v2569, 1
      %vm2606 = vcmp.eq.s32.totalorder %v2570, 1
      %vm2607 = vcmp.eq.s32.totalorder %v2571, 1
      %v2608 = vsel %vm2572, %v2500, 0.0
      %v2609 = vsel %vm2573, %v2501, 0.0
      %v2610 = vsel %vm2574, %v2502, 0.0
      %v2611 = vsel %vm2575, %v2503, 0.0
      %v2612 = vsel %vm2576, %v2504, 0.0
      %v2613 = vsel %vm2577, %v2505, 0.0
      %v2614 = vsel %vm2578, %v2506, 0.0
      %v2615 = vsel %vm2579, %v2507, 0.0
      %v2616 = vsel %vm2580, %v2508, 0.0
      %v2617 = vsel %vm2581, %v2509, 0.0
      %v2618 = vsel %vm2582, %v2510, 0.0
      %v2619 = vsel %vm2583, %v2511, 0.0
      %v2620 = vsel %vm2584, %v2512, 0.0
      %v2621 = vsel %vm2585, %v2513, 0.0
      %v2622 = vsel %vm2586, %v2514, 0.0
      %v2623 = vsel %vm2587, %v2515, 0.0
      %v2624 = vsel %vm2588, %v2516, 0.0
      %v2625 = vsel %vm2589, %v2517, 0.0
      %v2626 = vsel %vm2590, %v2518, 0.0
      %v2627 = vsel %vm2591, %v2519, 0.0
      %v2628 = vsel %vm2592, %v2520, 0.0
      %v2629 = vsel %vm2593, %v2521, 0.0
      %v2630 = vsel %vm2594, %v2522, 0.0
      %v2631 = vsel %vm2595, %v2523, 0.0
      %v2632 = vsel %vm2596, %v2524, 0.0
      %v2633 = vsel %vm2597, %v2525, 0.0
      %v2634 = vsel %vm2598, %v2526, 0.0
      %v2635 = vsel %vm2599, %v2527, 0.0
      %v2636 = vsel %vm2600, %v2528, 0.0
      %v2637 = vsel %vm2601, %v2529, 0.0
      %v2638 = vsel %vm2602, %v2530, 0.0
      %v2639 = vsel %vm2603, %v2531, 0.0
      %v2640 = vsel %vm2604, %v2532, 0.0
      %v2641 = vsel %vm2605, %v2533, 0.0
      %v2642 = vsel %vm2606, %v2534, 0.0
      %v2643 = vsel %vm2607, %v2535, 0.0
      %2644 = vst.msk [vmem:[#allocation2 + $0x13] sm:$0xff] %vm1997, %v2608
      %2645 = vst.msk [vmem:[#allocation2 + $0x1b] sm:$0xff] %vm1997, %v2609
      %2646 = vst.msk [vmem:[#allocation2 + $0x23] sm:$0xff] %vm1997, %v2610
      %2647 = vst.msk [vmem:[#allocation2 + $0x2b] sm:$0xff] %vm1997, %v2611
      %2648 = vst.msk [vmem:[#allocation2 + $0x33] sm:$0xff] %vm1997, %v2612
      %2649 = vst.msk [vmem:[#allocation2 + $0x3b] sm:$0xff] %vm1997, %v2613
      %2650 = vst.msk [vmem:[#allocation2 + $0x43] sm:$0xff] %vm1997, %v2614
      %2651 = vst.msk [vmem:[#allocation2 + $0x4b] sm:$0xff] %vm1997, %v2615
      %2652 = vst.msk [vmem:[#allocation2 + $0x53] sm:$0xff] %vm1997, %v2616
      %2653 = vst.msk [vmem:[#allocation2 + $0x5b] sm:$0xff] %vm1997, %v2617
      %2654 = vst.msk [vmem:[#allocation2 + $0x63] sm:$0xff] %vm1997, %v2618
      %2655 = vst.msk [vmem:[#allocation2 + $0x6b] sm:$0xff] %vm1997, %v2619
      %2656 = vst.msk [vmem:[#allocation2 + $0x73] sm:$0xff] %vm1997, %v2620
      %2657 = vst.msk [vmem:[#allocation2 + $0x7b] sm:$0xff] %vm1997, %v2621
      %2658 = vst.msk [vmem:[#allocation2 + $0x83] sm:$0xff] %vm1997, %v2622
      %2659 = vst.msk [vmem:[#allocation2 + $0x8b] sm:$0xff] %vm1997, %v2623
      %2660 = vst.msk [vmem:[#allocation2 + $0x93] sm:$0xff] %vm1997, %v2624
      %2661 = vst.msk [vmem:[#allocation2 + $0x9b] sm:$0xff] %vm1997, %v2625
      %2662 = vst.msk [vmem:[#allocation2 + $0xa3] sm:$0xff] %vm1997, %v2626
      %2663 = vst.msk [vmem:[#allocation2 + $0xab] sm:$0xff] %vm1997, %v2627
      %2664 = vst.msk [vmem:[#allocation2 + $0xb3] sm:$0xff] %vm1997, %v2628
      %2665 = vst.msk [vmem:[#allocation2 + $0xbb] sm:$0xff] %vm1997, %v2629
      %2666 = vst.msk [vmem:[#allocation2 + $0xc3] sm:$0xff] %vm1997, %v2630
      %2667 = vst.msk [vmem:[#allocation2 + $0xcb] sm:$0xff] %vm1997, %v2631
      %2668 = vst.msk [vmem:[#allocation2 + $0xd3] sm:$0xff] %vm1997, %v2632
      %2669 = vst.msk [vmem:[#allocation2 + $0xdb] sm:$0xff] %vm1997, %v2633
      %2670 = vst.msk [vmem:[#allocation2 + $0xe3] sm:$0xff] %vm1997, %v2634
      %2671 = vst.msk [vmem:[#allocation2 + $0xeb] sm:$0xff] %vm1997, %v2635
      %2672 = vst.msk [vmem:[#allocation2 + $0xf3] sm:$0xff] %vm1997, %v2636
      %2673 = vst.msk [vmem:[#allocation2 + $0xfb] sm:$0xff] %vm1997, %v2637
      %2674 = vst.msk [vmem:[#allocation2 + $0x103] sm:$0xff] %vm1997, %v2638
      %2675 = vst.msk [vmem:[#allocation2 + $0x10b] sm:$0xff] %vm1997, %v2639
      %2676 = vst.msk [vmem:[#allocation2 + $0x113] sm:$0xff] %vm1997, %v2640
      %2677 = vst.msk [vmem:[#allocation2 + $0x11b] sm:$0xff] %vm1997, %v2641
      %2678 = vst.msk [vmem:[#allocation2 + $0x123] sm:$0xff] %vm1997, %v2642
      %vm2679 = vcmask 62464
      %2680 = vst.msk [vmem:[#allocation2 + $0x12b] sm:$0x3f] %vm2679, %v2643
      %v2681 = vld [vmem:[#allocation2] sm:$0xff]
      %v2682 = vld [vmem:[#allocation2 + $0x8] sm:$0xff]
      %v2683 = vld [vmem:[#allocation2 + $0x10] sm:$0xff]
      %v2684 = vld [vmem:[#allocation2 + $0x18] sm:$0xff]
      %v2685 = vld [vmem:[#allocation2 + $0x20] sm:$0xff]
      %v2686 = vld [vmem:[#allocation2 + $0x28] sm:$0xff]
      %v2687 = vld [vmem:[#allocation2 + $0x30] sm:$0xff]
      %v2688 = vld [vmem:[#allocation2 + $0x38] sm:$0xff]
      %v2689 = vld [vmem:[#allocation2 + $0x40] sm:$0xff]
      %v2690 = vld [vmem:[#allocation2 + $0x48] sm:$0xff]
      %v2691 = vld [vmem:[#allocation2 + $0x50] sm:$0xff]
      %v2692 = vld [vmem:[#allocation2 + $0x58] sm:$0xff]
      %v2693 = vld [vmem:[#allocation2 + $0x60] sm:$0xff]
      %v2694 = vld [vmem:[#allocation2 + $0x68] sm:$0xff]
      %v2695 = vld [vmem:[#allocation2 + $0x70] sm:$0xff]
      %v2696 = vld [vmem:[#allocation2 + $0x78] sm:$0xff]
      %v2697 = vld [vmem:[#allocation2 + $0x80] sm:$0xff]
      %v2698 = vld [vmem:[#allocation2 + $0x88] sm:$0xff]
      %v2699 = vld [vmem:[#allocation2 + $0x90] sm:$0xff]
      %v2700 = vld [vmem:[#allocation2 + $0x98] sm:$0xff]
      %v2701 = vld [vmem:[#allocation2 + $0xa0] sm:$0xff]
      %v2702 = vld [vmem:[#allocation2 + $0xa8] sm:$0xff]
      %v2703 = vld [vmem:[#allocation2 + $0xb0] sm:$0xff]
      %v2704 = vld [vmem:[#allocation2 + $0xb8] sm:$0xff]
      %v2705 = vld [vmem:[#allocation2 + $0xc0] sm:$0xff]
      %v2706 = vld [vmem:[#allocation2 + $0xc8] sm:$0xff]
      %v2707 = vld [vmem:[#allocation2 + $0xd0] sm:$0xff]
      %v2708 = vld [vmem:[#allocation2 + $0xd8] sm:$0xff]
      %v2709 = vld [vmem:[#allocation2 + $0xe0] sm:$0xff]
      %v2710 = vld [vmem:[#allocation2 + $0xe8] sm:$0xff]
      %v2711 = vld [vmem:[#allocation2 + $0xf0] sm:$0xff]
      %v2712 = vld [vmem:[#allocation2 + $0xf8] sm:$0xff]
      %v2713 = vld [vmem:[#allocation2 + $0x100] sm:$0xff]
      %v2714 = vld [vmem:[#allocation2 + $0x108] sm:$0xff]
      %v2715 = vld [vmem:[#allocation2 + $0x110] sm:$0xff]
      %v2716 = vld [vmem:[#allocation2 + $0x118] sm:$0x3f]
      %v2717 = vpack.c.bf16 %v2682, %v2681
      %v2718 = vpack.c.bf16 %v2684, %v2683
      %v2719 = vpack.c.bf16 %v2686, %v2685
      %v2720 = vpack.c.bf16 %v2688, %v2687
      %v2721 = vpack.c.bf16 %v2690, %v2689
      %v2722 = vpack.c.bf16 %v2692, %v2691
      %v2723 = vpack.c.bf16 %v2694, %v2693
      %v2724 = vpack.c.bf16 %v2696, %v2695
      %v2725 = vpack.c.bf16 %v2698, %v2697
      %v2726 = vpack.c.bf16 %v2700, %v2699
      %v2727 = vpack.c.bf16 %v2702, %v2701
      %v2728 = vpack.c.bf16 %v2704, %v2703
      %v2729 = vpack.c.bf16 %v2706, %v2705
      %v2730 = vpack.c.bf16 %v2708, %v2707
      %v2731 = vpack.c.bf16 %v2710, %v2709
      %v2732 = vpack.c.bf16 %v2712, %v2711
      %v2733 = vpack.c.bf16 %v2714, %v2713
      %v2734 = vpack.c.bf16 %v2716, %v2715
      %v2735 = vld [vmem:[#allocation2 + $0x1] sm:$0xff]
      %v2736 = vld [vmem:[#allocation2 + $0x9] sm:$0xff]
      %v2737 = vld [vmem:[#allocation2 + $0x11] sm:$0xff]
      %v2738 = vld [vmem:[#allocation2 + $0x19] sm:$0xff]
      %v2739 = vld [vmem:[#allocation2 + $0x21] sm:$0xff]
      %v2740 = vld [vmem:[#allocation2 + $0x29] sm:$0xff]
      %v2741 = vld [vmem:[#allocation2 + $0x31] sm:$0xff]
      %v2742 = vld [vmem:[#allocation2 + $0x39] sm:$0xff]
      %v2743 = vld [vmem:[#allocation2 + $0x41] sm:$0xff]
      %v2744 = vld [vmem:[#allocation2 + $0x49] sm:$0xff]
      %v2745 = vld [vmem:[#allocation2 + $0x51] sm:$0xff]
      %v2746 = vld [vmem:[#allocation2 + $0x59] sm:$0xff]
      %v2747 = vld [vmem:[#allocation2 + $0x61] sm:$0xff]
      %v2748 = vld [vmem:[#allocation2 + $0x69] sm:$0xff]
      %v2749 = vld [vmem:[#allocation2 + $0x71] sm:$0xff]
      %v2750 = vld [vmem:[#allocation2 + $0x79] sm:$0xff]
      %v2751 = vld [vmem:[#allocation2 + $0x81] sm:$0xff]
      %v2752 = vld [vmem:[#allocation2 + $0x89] sm:$0xff]
      %v2753 = vld [vmem:[#allocation2 + $0x91] sm:$0xff]
      %v2754 = vld [vmem:[#allocation2 + $0x99] sm:$0xff]
      %v2755 = vld [vmem:[#allocation2 + $0xa1] sm:$0xff]
      %v2756 = vld [vmem:[#allocation2 + $0xa9] sm:$0xff]
      %v2757 = vld [vmem:[#allocation2 + $0xb1] sm:$0xff]
      %v2758 = vld [vmem:[#allocation2 + $0xb9] sm:$0xff]
      %v2759 = vld [vmem:[#allocation2 + $0xc1] sm:$0xff]
      %v2760 = vld [vmem:[#allocation2 + $0xc9] sm:$0xff]
      %v2761 = vld [vmem:[#allocation2 + $0xd1] sm:$0xff]
      %v2762 = vld [vmem:[#allocation2 + $0xd9] sm:$0xff]
      %v2763 = vld [vmem:[#allocation2 + $0xe1] sm:$0xff]
      %v2764 = vld [vmem:[#allocation2 + $0xe9] sm:$0xff]
      %v2765 = vld [vmem:[#allocation2 + $0xf1] sm:$0xff]
      %v2766 = vld [vmem:[#allocation2 + $0xf9] sm:$0xff]
      %v2767 = vld [vmem:[#allocation2 + $0x101] sm:$0xff]
      %v2768 = vld [vmem:[#allocation2 + $0x109] sm:$0xff]
      %v2769 = vld [vmem:[#allocation2 + $0x111] sm:$0xff]
      %v2770 = vld [vmem:[#allocation2 + $0x119] sm:$0x3f]
      %v2771 = vpack.c.bf16 %v2736, %v2735
      %v2772 = vpack.c.bf16 %v2738, %v2737
      %v2773 = vpack.c.bf16 %v2740, %v2739
      %v2774 = vpack.c.bf16 %v2742, %v2741
      %v2775 = vpack.c.bf16 %v2744, %v2743
      %v2776 = vpack.c.bf16 %v2746, %v2745
      %v2777 = vpack.c.bf16 %v2748, %v2747
      %v2778 = vpack.c.bf16 %v2750, %v2749
      %v2779 = vpack.c.bf16 %v2752, %v2751
      %v2780 = vpack.c.bf16 %v2754, %v2753
      %v2781 = vpack.c.bf16 %v2756, %v2755
      %v2782 = vpack.c.bf16 %v2758, %v2757
      %v2783 = vpack.c.bf16 %v2760, %v2759
      %v2784 = vpack.c.bf16 %v2762, %v2761
      %v2785 = vpack.c.bf16 %v2764, %v2763
      %v2786 = vpack.c.bf16 %v2766, %v2765
      %v2787 = vpack.c.bf16 %v2768, %v2767
      %v2788 = vpack.c.bf16 %v2770, %v2769
      %v2789 = vld [vmem:[#allocation2 + $0x2] sm:$0xff]
      %v2790 = vld [vmem:[#allocation2 + $0xa] sm:$0xff]
      %v2791 = vld [vmem:[#allocation2 + $0x12] sm:$0xff]
      %v2792 = vld [vmem:[#allocation2 + $0x1a] sm:$0xff]
      %v2793 = vld [vmem:[#allocation2 + $0x22] sm:$0xff]
      %v2794 = vld [vmem:[#allocation2 + $0x2a] sm:$0xff]
      %v2795 = vld [vmem:[#allocation2 + $0x32] sm:$0xff]
      %v2796 = vld [vmem:[#allocation2 + $0x3a] sm:$0xff]
      %v2797 = vld [vmem:[#allocation2 + $0x42] sm:$0xff]
      %v2798 = vld [vmem:[#allocation2 + $0x4a] sm:$0xff]
      %v2799 = vld [vmem:[#allocation2 + $0x52] sm:$0xff]
      %v2800 = vld [vmem:[#allocation2 + $0x5a] sm:$0xff]
      %v2801 = vld [vmem:[#allocation2 + $0x62] sm:$0xff]
      %v2802 = vld [vmem:[#allocation2 + $0x6a] sm:$0xff]
      %v2803 = vld [vmem:[#allocation2 + $0x72] sm:$0xff]
      %v2804 = vld [vmem:[#allocation2 + $0x7a] sm:$0xff]
      %v2805 = vld [vmem:[#allocation2 + $0x82] sm:$0xff]
      %v2806 = vld [vmem:[#allocation2 + $0x8a] sm:$0xff]
      %v2807 = vld [vmem:[#allocation2 + $0x92] sm:$0xff]
      %v2808 = vld [vmem:[#allocation2 + $0x9a] sm:$0xff]
      %v2809 = vld [vmem:[#allocation2 + $0xa2] sm:$0xff]
      %v2810 = vld [vmem:[#allocation2 + $0xaa] sm:$0xff]
      %v2811 = vld [vmem:[#allocation2 + $0xb2] sm:$0xff]
      %v2812 = vld [vmem:[#allocation2 + $0xba] sm:$0xff]
      %v2813 = vld [vmem:[#allocation2 + $0xc2] sm:$0xff]
      %v2814 = vld [vmem:[#allocation2 + $0xca] sm:$0xff]
      %v2815 = vld [vmem:[#allocation2 + $0xd2] sm:$0xff]
      %v2816 = vld [vmem:[#allocation2 + $0xda] sm:$0xff]
      %v2817 = vld [vmem:[#allocation2 + $0xe2] sm:$0xff]
      %v2818 = vld [vmem:[#allocation2 + $0xea] sm:$0xff]
      %v2819 = vld [vmem:[#allocation2 + $0xf2] sm:$0xff]
      %v2820 = vld [vmem:[#allocation2 + $0xfa] sm:$0xff]
      %v2821 = vld [vmem:[#allocation2 + $0x102] sm:$0xff]
      %v2822 = vld [vmem:[#allocation2 + $0x10a] sm:$0xff]
      %v2823 = vld [vmem:[#allocation2 + $0x112] sm:$0xff]
      %v2824 = vld [vmem:[#allocation2 + $0x11a] sm:$0x3f]
      %v2825 = vpack.c.bf16 %v2790, %v2789
      %v2826 = vpack.c.bf16 %v2792, %v2791
      %v2827 = vpack.c.bf16 %v2794, %v2793
      %v2828 = vpack.c.bf16 %v2796, %v2795
      %v2829 = vpack.c.bf16 %v2798, %v2797
      %v2830 = vpack.c.bf16 %v2800, %v2799
      %v2831 = vpack.c.bf16 %v2802, %v2801
      %v2832 = vpack.c.bf16 %v2804, %v2803
      %v2833 = vpack.c.bf16 %v2806, %v2805
      %v2834 = vpack.c.bf16 %v2808, %v2807
      %v2835 = vpack.c.bf16 %v2810, %v2809
      %v2836 = vpack.c.bf16 %v2812, %v2811
      %v2837 = vpack.c.bf16 %v2814, %v2813
      %v2838 = vpack.c.bf16 %v2816, %v2815
      %v2839 = vpack.c.bf16 %v2818, %v2817
      %v2840 = vpack.c.bf16 %v2820, %v2819
      %v2841 = vpack.c.bf16 %v2822, %v2821
      %v2842 = vpack.c.bf16 %v2824, %v2823
      %v2843 = vld [vmem:[#allocation2 + $0x11a] sm:$0xff]
      %v2844 = vld [vmem:[#allocation2 + $0x122] sm:$0xff]
      %v2845 = vld [vmem:[#allocation2 + $0x12a] sm:$0x3f]
      %v2846 = vpack.c.bf16 %v2843, %v2823
      %v2847 = vpack.c.bf16 %v2845, %v2844
      %v2848 = vld [vmem:[#allocation2 + $0x13] sm:$0xff]
      %v2849 = vld [vmem:[#allocation2 + $0x1b] sm:$0xff]
      %v2850 = vld [vmem:[#allocation2 + $0x23] sm:$0xff]
      %v2851 = vld [vmem:[#allocation2 + $0x2b] sm:$0xff]
      %v2852 = vld [vmem:[#allocation2 + $0x33] sm:$0xff]
      %v2853 = vld [vmem:[#allocation2 + $0x3b] sm:$0xff]
      %v2854 = vld [vmem:[#allocation2 + $0x43] sm:$0xff]
      %v2855 = vld [vmem:[#allocation2 + $0x4b] sm:$0xff]
      %v2856 = vld [vmem:[#allocation2 + $0x53] sm:$0xff]
      %v2857 = vld [vmem:[#allocation2 + $0x5b] sm:$0xff]
      %v2858 = vld [vmem:[#allocation2 + $0x63] sm:$0xff]
      %v2859 = vld [vmem:[#allocation2 + $0x6b] sm:$0xff]
      %v2860 = vld [vmem:[#allocation2 + $0x73] sm:$0xff]
      %v2861 = vld [vmem:[#allocation2 + $0x7b] sm:$0xff]
      %v2862 = vld [vmem:[#allocation2 + $0x83] sm:$0xff]
      %v2863 = vld [vmem:[#allocation2 + $0x8b] sm:$0xff]
      %v2864 = vld [vmem:[#allocation2 + $0x93] sm:$0xff]
      %v2865 = vld [vmem:[#allocation2 + $0x9b] sm:$0xff]
      %v2866 = vld [vmem:[#allocation2 + $0xa3] sm:$0xff]
      %v2867 = vld [vmem:[#allocation2 + $0xab] sm:$0xff]
      %v2868 = vld [vmem:[#allocation2 + $0xb3] sm:$0xff]
      %v2869 = vld [vmem:[#allocation2 + $0xbb] sm:$0xff]
      %v2870 = vld [vmem:[#allocation2 + $0xc3] sm:$0xff]
      %v2871 = vld [vmem:[#allocation2 + $0xcb] sm:$0xff]
      %v2872 = vld [vmem:[#allocation2 + $0xd3] sm:$0xff]
      %v2873 = vld [vmem:[#allocation2 + $0xdb] sm:$0xff]
      %v2874 = vld [vmem:[#allocation2 + $0xe3] sm:$0xff]
      %v2875 = vld [vmem:[#allocation2 + $0xeb] sm:$0xff]
      %v2876 = vld [vmem:[#allocation2 + $0xf3] sm:$0xff]
      %v2877 = vld [vmem:[#allocation2 + $0xfb] sm:$0xff]
      %v2878 = vld [vmem:[#allocation2 + $0x103] sm:$0xff]
      %v2879 = vld [vmem:[#allocation2 + $0x10b] sm:$0xff]
      %v2880 = vld [vmem:[#allocation2 + $0x113] sm:$0xff]
      %v2881 = vld [vmem:[#allocation2 + $0x11b] sm:$0xff]
      %v2882 = vld [vmem:[#allocation2 + $0x123] sm:$0xff]
      %v2883 = vld [vmem:[#allocation2 + $0x12b] sm:$0x3f]
      %v2884 = vpack.c.bf16 %v2849, %v2848
      %v2885 = vpack.c.bf16 %v2851, %v2850
      %v2886 = vpack.c.bf16 %v2853, %v2852
      %v2887 = vpack.c.bf16 %v2855, %v2854
      %v2888 = vpack.c.bf16 %v2857, %v2856
      %v2889 = vpack.c.bf16 %v2859, %v2858
      %v2890 = vpack.c.bf16 %v2861, %v2860
      %v2891 = vpack.c.bf16 %v2863, %v2862
      %v2892 = vpack.c.bf16 %v2865, %v2864
      %v2893 = vpack.c.bf16 %v2867, %v2866
      %v2894 = vpack.c.bf16 %v2869, %v2868
      %v2895 = vpack.c.bf16 %v2871, %v2870
      %v2896 = vpack.c.bf16 %v2873, %v2872
      %v2897 = vpack.c.bf16 %v2875, %v2874
      %v2898 = vpack.c.bf16 %v2877, %v2876
      %v2899 = vpack.c.bf16 %v2879, %v2878
      %v2900 = vpack.c.bf16 %v2881, %v2880
      %v2901 = vpack.c.bf16 %v2883, %v2882
      %v2902 = vld [vmem:[#allocation2 + $0x14] sm:$0xff]
      %v2903 = vld [vmem:[#allocation2 + $0x1c] sm:$0xff]
      %v2904 = vld [vmem:[#allocation2 + $0x24] sm:$0xff]
      %v2905 = vld [vmem:[#allocation2 + $0x2c] sm:$0xff]
      %v2906 = vld [vmem:[#allocation2 + $0x34] sm:$0xff]
      %v2907 = vld [vmem:[#allocation2 + $0x3c] sm:$0xff]
      %v2908 = vld [vmem:[#allocation2 + $0x44] sm:$0xff]
      %v2909 = vld [vmem:[#allocation2 + $0x4c] sm:$0xff]
      %v2910 = vld [vmem:[#allocation2 + $0x54] sm:$0xff]
      %v2911 = vld [vmem:[#allocation2 + $0x5c] sm:$0xff]
      %v2912 = vld [vmem:[#allocation2 + $0x64] sm:$0xff]
      %v2913 = vld [vmem:[#allocation2 + $0x6c] sm:$0xff]
      %v2914 = vld [vmem:[#allocation2 + $0x74] sm:$0xff]
      %v2915 = vld [vmem:[#allocation2 + $0x7c] sm:$0xff]
      %v2916 = vld [vmem:[#allocation2 + $0x84] sm:$0xff]
      %v2917 = vld [vmem:[#allocation2 + $0x8c] sm:$0xff]
      %v2918 = vld [vmem:[#allocation2 + $0x94] sm:$0xff]
      %v2919 = vld [vmem:[#allocation2 + $0x9c] sm:$0xff]
      %v2920 = vld [vmem:[#allocation2 + $0xa4] sm:$0xff]
      %v2921 = vld [vmem:[#allocation2 + $0xac] sm:$0xff]
      %v2922 = vld [vmem:[#allocation2 + $0xb4] sm:$0xff]
      %v2923 = vld [vmem:[#allocation2 + $0xbc] sm:$0xff]
      %v2924 = vld [vmem:[#allocation2 + $0xc4] sm:$0xff]
      %v2925 = vld [vmem:[#allocation2 + $0xcc] sm:$0xff]
      %v2926 = vld [vmem:[#allocation2 + $0xd4] sm:$0xff]
      %v2927 = vld [vmem:[#allocation2 + $0xdc] sm:$0xff]
      %v2928 = vld [vmem:[#allocation2 + $0xe4] sm:$0xff]
      %v2929 = vld [vmem:[#allocation2 + $0xec] sm:$0xff]
      %v2930 = vld [vmem:[#allocation2 + $0xf4] sm:$0xff]
      %v2931 = vld [vmem:[#allocation2 + $0xfc] sm:$0xff]
      %v2932 = vld [vmem:[#allocation2 + $0x104] sm:$0xff]
      %v2933 = vld [vmem:[#allocation2 + $0x10c] sm:$0xff]
      %v2934 = vld [vmem:[#allocation2 + $0x114] sm:$0xff]
      %v2935 = vld [vmem:[#allocation2 + $0x11c] sm:$0xff]
      %v2936 = vld [vmem:[#allocation2 + $0x124] sm:$0xff]
      %v2937 = vld [vmem:[#allocation2 + $0x12c] sm:$0x3f]
      %v2938 = vpack.c.bf16 %v2903, %v2902
      %v2939 = vpack.c.bf16 %v2905, %v2904
      %v2940 = vpack.c.bf16 %v2907, %v2906
      %v2941 = vpack.c.bf16 %v2909, %v2908
      %v2942 = vpack.c.bf16 %v2911, %v2910
      %v2943 = vpack.c.bf16 %v2913, %v2912
      %v2944 = vpack.c.bf16 %v2915, %v2914
      %v2945 = vpack.c.bf16 %v2917, %v2916
      %v2946 = vpack.c.bf16 %v2919, %v2918
      %v2947 = vpack.c.bf16 %v2921, %v2920
      %v2948 = vpack.c.bf16 %v2923, %v2922
      %v2949 = vpack.c.bf16 %v2925, %v2924
      %v2950 = vpack.c.bf16 %v2927, %v2926
      %v2951 = vpack.c.bf16 %v2929, %v2928
      %v2952 = vpack.c.bf16 %v2931, %v2930
      %v2953 = vpack.c.bf16 %v2933, %v2932
      %v2954 = vpack.c.bf16 %v2935, %v2934
      %v2955 = vpack.c.bf16 %v2937, %v2936
      %v2956 = vld [vmem:[#allocation2 + $0x12c] sm:$0xff]
      %v2957 = vld [vmem:[#allocation2 + $0x134] sm:$0xff]
      %v2958 = vld [vmem:[#allocation2 + $0x13c] sm:$0x3f]
      %v2959 = vpack.c.bf16 %v2956, %v2936
      %v2960 = vpack.c.bf16 %v2958, %v2957
      %v2961 = vld [vmem:[#allocation2 + $0x25] sm:$0xff]
      %v2962 = vld [vmem:[#allocation2 + $0x2d] sm:$0xff]
      %v2963 = vld [vmem:[#allocation2 + $0x35] sm:$0xff]
      %v2964 = vld [vmem:[#allocation2 + $0x3d] sm:$0xff]
      %v2965 = vld [vmem:[#allocation2 + $0x45] sm:$0xff]
      %v2966 = vld [vmem:[#allocation2 + $0x4d] sm:$0xff]
      %v2967 = vld [vmem:[#allocation2 + $0x55] sm:$0xff]
      %v2968 = vld [vmem:[#allocation2 + $0x5d] sm:$0xff]
      %v2969 = vld [vmem:[#allocation2 + $0x65] sm:$0xff]
      %v2970 = vld [vmem:[#allocation2 + $0x6d] sm:$0xff]
      %v2971 = vld [vmem:[#allocation2 + $0x75] sm:$0xff]
      %v2972 = vld [vmem:[#allocation2 + $0x7d] sm:$0xff]
      %v2973 = vld [vmem:[#allocation2 + $0x85] sm:$0xff]
      %v2974 = vld [vmem:[#allocation2 + $0x8d] sm:$0xff]
      %v2975 = vld [vmem:[#allocation2 + $0x95] sm:$0xff]
      %v2976 = vld [vmem:[#allocation2 + $0x9d] sm:$0xff]
      %v2977 = vld [vmem:[#allocation2 + $0xa5] sm:$0xff]
      %v2978 = vld [vmem:[#allocation2 + $0xad] sm:$0xff]
      %v2979 = vld [vmem:[#allocation2 + $0xb5] sm:$0xff]
      %v2980 = vld [vmem:[#allocation2 + $0xbd] sm:$0xff]
      %v2981 = vld [vmem:[#allocation2 + $0xc5] sm:$0xff]
      %v2982 = vld [vmem:[#allocation2 + $0xcd] sm:$0xff]
      %v2983 = vld [vmem:[#allocation2 + $0xd5] sm:$0xff]
      %v2984 = vld [vmem:[#allocation2 + $0xdd] sm:$0xff]
      %v2985 = vld [vmem:[#allocation2 + $0xe5] sm:$0xff]
      %v2986 = vld [vmem:[#allocation2 + $0xed] sm:$0xff]
      %v2987 = vld [vmem:[#allocation2 + $0xf5] sm:$0xff]
      %v2988 = vld [vmem:[#allocation2 + $0xfd] sm:$0xff]
      %v2989 = vld [vmem:[#allocation2 + $0x105] sm:$0xff]
      %v2990 = vld [vmem:[#allocation2 + $0x10d] sm:$0xff]
      %v2991 = vld [vmem:[#allocation2 + $0x115] sm:$0xff]
      %v2992 = vld [vmem:[#allocation2 + $0x11d] sm:$0xff]
      %v2993 = vld [vmem:[#allocation2 + $0x125] sm:$0xff]
      %v2994 = vld [vmem:[#allocation2 + $0x12d] sm:$0xff]
      %v2995 = vld [vmem:[#allocation2 + $0x135] sm:$0xff]
      %v2996 = vld [vmem:[#allocation2 + $0x13d] sm:$0x3f]
      %v2997 = vpack.c.bf16 %v2962, %v2961
      %v2998 = vpack.c.bf16 %v2964, %v2963
      %v2999 = vpack.c.bf16 %v2966, %v2965
      %v3000 = vpack.c.bf16 %v2968, %v2967
      %v3001 = vpack.c.bf16 %v2970, %v2969
      %v3002 = vpack.c.bf16 %v2972, %v2971
      %v3003 = vpack.c.bf16 %v2974, %v2973
      %v3004 = vpack.c.bf16 %v2976, %v2975
      %v3005 = vpack.c.bf16 %v2978, %v2977
      %v3006 = vpack.c.bf16 %v2980, %v2979
      %v3007 = vpack.c.bf16 %v2982, %v2981
      %v3008 = vpack.c.bf16 %v2984, %v2983
      %v3009 = vpack.c.bf16 %v2986, %v2985
      %v3010 = vpack.c.bf16 %v2988, %v2987
      %v3011 = vpack.c.bf16 %v2990, %v2989
      %v3012 = vpack.c.bf16 %v2992, %v2991
      %v3013 = vpack.c.bf16 %v2994, %v2993
      %v3014 = vpack.c.bf16 %v2996, %v2995
      %v3015 = vld [vmem:[#allocation2 + $0x26] sm:$0xff]
      %v3016 = vld [vmem:[#allocation2 + $0x2e] sm:$0xff]
      %v3017 = vld [vmem:[#allocation2 + $0x36] sm:$0xff]
      %v3018 = vld [vmem:[#allocation2 + $0x3e] sm:$0xff]
      %v3019 = vld [vmem:[#allocation2 + $0x46] sm:$0xff]
      %v3020 = vld [vmem:[#allocation2 + $0x4e] sm:$0xff]
      %v3021 = vld [vmem:[#allocation2 + $0x56] sm:$0xff]
      %v3022 = vld [vmem:[#allocation2 + $0x5e] sm:$0xff]
      %v3023 = vld [vmem:[#allocation2 + $0x66] sm:$0xff]
      %v3024 = vld [vmem:[#allocation2 + $0x6e] sm:$0xff]
      %v3025 = vld [vmem:[#allocation2 + $0x76] sm:$0xff]
      %v3026 = vld [vmem:[#allocation2 + $0x7e] sm:$0xff]
      %v3027 = vld [vmem:[#allocation2 + $0x86] sm:$0xff]
      %v3028 = vld [vmem:[#allocation2 + $0x8e] sm:$0xff]
      %v3029 = vld [vmem:[#allocation2 + $0x96] sm:$0xff]
      %v3030 = vld [vmem:[#allocation2 + $0x9e] sm:$0xff]
      %v3031 = vld [vmem:[#allocation2 + $0xa6] sm:$0xff]
      %v3032 = vld [vmem:[#allocation2 + $0xae] sm:$0xff]
      %v3033 = vld [vmem:[#allocation2 + $0xb6] sm:$0xff]
      %v3034 = vld [vmem:[#allocation2 + $0xbe] sm:$0xff]
      %v3035 = vld [vmem:[#allocation2 + $0xc6] sm:$0xff]
      %v3036 = vld [vmem:[#allocation2 + $0xce] sm:$0xff]
      %v3037 = vld [vmem:[#allocation2 + $0xd6] sm:$0xff]
      %v3038 = vld [vmem:[#allocation2 + $0xde] sm:$0xff]
      %v3039 = vld [vmem:[#allocation2 + $0xe6] sm:$0xff]
      %v3040 = vld [vmem:[#allocation2 + $0xee] sm:$0xff]
      %v3041 = vld [vmem:[#allocation2 + $0xf6] sm:$0xff]
      %v3042 = vld [vmem:[#allocation2 + $0xfe] sm:$0xff]
      %v3043 = vld [vmem:[#allocation2 + $0x106] sm:$0xff]
      %v3044 = vld [vmem:[#allocation2 + $0x10e] sm:$0xff]
      %v3045 = vld [vmem:[#allocation2 + $0x116] sm:$0xff]
      %v3046 = vld [vmem:[#allocation2 + $0x11e] sm:$0xff]
      %v3047 = vld [vmem:[#allocation2 + $0x126] sm:$0xff]
      %v3048 = vld [vmem:[#allocation2 + $0x12e] sm:$0xff]
      %v3049 = vld [vmem:[#allocation2 + $0x136] sm:$0xff]
      %v3050 = vld [vmem:[#allocation2 + $0x13e] sm:$0x3f]
      %v3051 = vpack.c.bf16 %v3016, %v3015
      %v3052 = vpack.c.bf16 %v3018, %v3017
      %v3053 = vpack.c.bf16 %v3020, %v3019
      %v3054 = vpack.c.bf16 %v3022, %v3021
      %v3055 = vpack.c.bf16 %v3024, %v3023
      %v3056 = vpack.c.bf16 %v3026, %v3025
      %v3057 = vpack.c.bf16 %v3028, %v3027
      %v3058 = vpack.c.bf16 %v3030, %v3029
      %v3059 = vpack.c.bf16 %v3032, %v3031
      %v3060 = vpack.c.bf16 %v3034, %v3033
      %v3061 = vpack.c.bf16 %v3036, %v3035
      %v3062 = vpack.c.bf16 %v3038, %v3037
      %v3063 = vpack.c.bf16 %v3040, %v3039
      %v3064 = vpack.c.bf16 %v3042, %v3041
      %v3065 = vpack.c.bf16 %v3044, %v3043
      %v3066 = vpack.c.bf16 %v3046, %v3045
      %v3067 = vpack.c.bf16 %v3048, %v3047
      %v3068 = vpack.c.bf16 %v3050, %v3049
      %3087 = vrot.lane.b32.xlu0 %v2771, 8
      %v3088 = vpop.permute.xlu0 %3087
      %3089 = vrot.lane.b32.xlu0 %v2772, 8
      %v3090 = vpop.permute.xlu0 %3089
      %3091 = vrot.lane.b32.xlu0 %v2773, 8
      %v3092 = vpop.permute.xlu0 %3091
      %3093 = vrot.lane.b32.xlu0 %v2774, 8
      %v3094 = vpop.permute.xlu0 %3093
      %3095 = vrot.lane.b32.xlu0 %v2775, 8
      %v3096 = vpop.permute.xlu0 %3095
      %3097 = vrot.lane.b32.xlu0 %v2776, 8
      %v3098 = vpop.permute.xlu0 %3097
      %3099 = vrot.lane.b32.xlu0 %v2777, 8
      %v3100 = vpop.permute.xlu0 %3099
      %3101 = vrot.lane.b32.xlu0 %v2778, 8
      %v3102 = vpop.permute.xlu0 %3101
      %3103 = vrot.lane.b32.xlu0 %v2779, 8
      %v3104 = vpop.permute.xlu0 %3103
      %3105 = vrot.lane.b32.xlu0 %v2780, 8
      %v3106 = vpop.permute.xlu0 %3105
      %3107 = vrot.lane.b32.xlu0 %v2781, 8
      %v3108 = vpop.permute.xlu0 %3107
      %3109 = vrot.lane.b32.xlu0 %v2782, 8
      %v3110 = vpop.permute.xlu0 %3109
      %3111 = vrot.lane.b32.xlu0 %v2783, 8
      %v3112 = vpop.permute.xlu0 %3111
      %3113 = vrot.lane.b32.xlu0 %v2784, 8
      %v3114 = vpop.permute.xlu0 %3113
      %3115 = vrot.lane.b32.xlu0 %v2785, 8
      %v3116 = vpop.permute.xlu0 %3115
      %3117 = vrot.lane.b32.xlu0 %v2786, 8
      %v3118 = vpop.permute.xlu0 %3117
      %3119 = vrot.lane.b32.xlu0 %v2787, 8
      %v3120 = vpop.permute.xlu0 %3119
      %3121 = vrot.lane.b32.xlu0 %v2788, 8
      %v3122 = vpop.permute.xlu0 %3121
      %3141 = vrot.lane.b32.xlu0 %v2825, 16
      %v3142 = vpop.permute.xlu0 %3141
      %3143 = vrot.lane.b32.xlu0 %v2826, 16
      %v3144 = vpop.permute.xlu0 %3143
      %3145 = vrot.lane.b32.xlu0 %v2827, 16
      %v3146 = vpop.permute.xlu0 %3145
      %3147 = vrot.lane.b32.xlu0 %v2828, 16
      %v3148 = vpop.permute.xlu0 %3147
      %3149 = vrot.lane.b32.xlu0 %v2829, 16
      %v3150 = vpop.permute.xlu0 %3149
      %3151 = vrot.lane.b32.xlu0 %v2830, 16
      %v3152 = vpop.permute.xlu0 %3151
      %3153 = vrot.lane.b32.xlu0 %v2831, 16
      %v3154 = vpop.permute.xlu0 %3153
      %3155 = vrot.lane.b32.xlu0 %v2832, 16
      %v3156 = vpop.permute.xlu0 %3155
      %3157 = vrot.lane.b32.xlu0 %v2833, 16
      %v3158 = vpop.permute.xlu0 %3157
      %3159 = vrot.lane.b32.xlu0 %v2834, 16
      %v3160 = vpop.permute.xlu0 %3159
      %3161 = vrot.lane.b32.xlu0 %v2835, 16
      %v3162 = vpop.permute.xlu0 %3161
      %3163 = vrot.lane.b32.xlu0 %v2836, 16
      %v3164 = vpop.permute.xlu0 %3163
      %3165 = vrot.lane.b32.xlu0 %v2837, 16
      %v3166 = vpop.permute.xlu0 %3165
      %3167 = vrot.lane.b32.xlu0 %v2838, 16
      %v3168 = vpop.permute.xlu0 %3167
      %3169 = vrot.lane.b32.xlu0 %v2839, 16
      %v3170 = vpop.permute.xlu0 %3169
      %3171 = vrot.lane.b32.xlu0 %v2840, 16
      %v3172 = vpop.permute.xlu0 %3171
      %3173 = vrot.lane.b32.xlu0 %v2841, 16
      %v3174 = vpop.permute.xlu0 %3173
      %3175 = vrot.lane.b32.xlu0 %v2842, 16
      %v3176 = vpop.permute.xlu0 %3175
      %3179 = vrot.lane.b32.xlu0 %v2826, 24
      %v3180 = vpop.permute.xlu0 %3179
      %3181 = vrot.lane.b32.xlu0 %v2827, 24
      %v3182 = vpop.permute.xlu0 %3181
      %3183 = vrot.lane.b32.xlu0 %v2828, 24
      %v3184 = vpop.permute.xlu0 %3183
      %3185 = vrot.lane.b32.xlu0 %v2829, 24
      %v3186 = vpop.permute.xlu0 %3185
      %3187 = vrot.lane.b32.xlu0 %v2830, 24
      %v3188 = vpop.permute.xlu0 %3187
      %3189 = vrot.lane.b32.xlu0 %v2831, 24
      %v3190 = vpop.permute.xlu0 %3189
      %3191 = vrot.lane.b32.xlu0 %v2832, 24
      %v3192 = vpop.permute.xlu0 %3191
      %3193 = vrot.lane.b32.xlu0 %v2833, 24
      %v3194 = vpop.permute.xlu0 %3193
      %3195 = vrot.lane.b32.xlu0 %v2834, 24
      %v3196 = vpop.permute.xlu0 %3195
      %3197 = vrot.lane.b32.xlu0 %v2835, 24
      %v3198 = vpop.permute.xlu0 %3197
      %3199 = vrot.lane.b32.xlu0 %v2836, 24
      %v3200 = vpop.permute.xlu0 %3199
      %3201 = vrot.lane.b32.xlu0 %v2837, 24
      %v3202 = vpop.permute.xlu0 %3201
      %3203 = vrot.lane.b32.xlu0 %v2838, 24
      %v3204 = vpop.permute.xlu0 %3203
      %3205 = vrot.lane.b32.xlu0 %v2839, 24
      %v3206 = vpop.permute.xlu0 %3205
      %3207 = vrot.lane.b32.xlu0 %v2840, 24
      %v3208 = vpop.permute.xlu0 %3207
      %3209 = vrot.lane.b32.xlu0 %v2841, 24
      %v3210 = vpop.permute.xlu0 %3209
      %3211 = vrot.lane.b32.xlu0 %v2846, 24
      %v3212 = vpop.permute.xlu0 %3211
      %3213 = vrot.lane.b32.xlu0 %v2847, 24
      %v3214 = vpop.permute.xlu0 %3213
      %3233 = vrot.lane.b32.xlu0 %v2884, 32
      %v3234 = vpop.permute.xlu0 %3233
      %3235 = vrot.lane.b32.xlu0 %v2885, 32
      %v3236 = vpop.permute.xlu0 %3235
      %3237 = vrot.lane.b32.xlu0 %v2886, 32
      %v3238 = vpop.permute.xlu0 %3237
      %3239 = vrot.lane.b32.xlu0 %v2887, 32
      %v3240 = vpop.permute.xlu0 %3239
      %3241 = vrot.lane.b32.xlu0 %v2888, 32
      %v3242 = vpop.permute.xlu0 %3241
      %3243 = vrot.lane.b32.xlu0 %v2889, 32
      %v3244 = vpop.permute.xlu0 %3243
      %3245 = vrot.lane.b32.xlu0 %v2890, 32
      %v3246 = vpop.permute.xlu0 %3245
      %3247 = vrot.lane.b32.xlu0 %v2891, 32
      %v3248 = vpop.permute.xlu0 %3247
      %3249 = vrot.lane.b32.xlu0 %v2892, 32
      %v3250 = vpop.permute.xlu0 %3249
      %3251 = vrot.lane.b32.xlu0 %v2893, 32
      %v3252 = vpop.permute.xlu0 %3251
      %3253 = vrot.lane.b32.xlu0 %v2894, 32
      %v3254 = vpop.permute.xlu0 %3253
      %3255 = vrot.lane.b32.xlu0 %v2895, 32
      %v3256 = vpop.permute.xlu0 %3255
      %3257 = vrot.lane.b32.xlu0 %v2896, 32
      %v3258 = vpop.permute.xlu0 %3257
      %3259 = vrot.lane.b32.xlu0 %v2897, 32
      %v3260 = vpop.permute.xlu0 %3259
      %3261 = vrot.lane.b32.xlu0 %v2898, 32
      %v3262 = vpop.permute.xlu0 %3261
      %3263 = vrot.lane.b32.xlu0 %v2899, 32
      %v3264 = vpop.permute.xlu0 %3263
      %3265 = vrot.lane.b32.xlu0 %v2900, 32
      %v3266 = vpop.permute.xlu0 %3265
      %3267 = vrot.lane.b32.xlu0 %v2901, 32
      %v3268 = vpop.permute.xlu0 %3267
      %3287 = vrot.lane.b32.xlu0 %v2938, 40
      %v3288 = vpop.permute.xlu0 %3287
      %3289 = vrot.lane.b32.xlu0 %v2939, 40
      %v3290 = vpop.permute.xlu0 %3289
      %3291 = vrot.lane.b32.xlu0 %v2940, 40
      %v3292 = vpop.permute.xlu0 %3291
      %3293 = vrot.lane.b32.xlu0 %v2941, 40
      %v3294 = vpop.permute.xlu0 %3293
      %3295 = vrot.lane.b32.xlu0 %v2942, 40
      %v3296 = vpop.permute.xlu0 %3295
      %3297 = vrot.lane.b32.xlu0 %v2943, 40
      %v3298 = vpop.permute.xlu0 %3297
      %3299 = vrot.lane.b32.xlu0 %v2944, 40
      %v3300 = vpop.permute.xlu0 %3299
      %3301 = vrot.lane.b32.xlu0 %v2945, 40
      %v3302 = vpop.permute.xlu0 %3301
      %3303 = vrot.lane.b32.xlu0 %v2946, 40
      %v3304 = vpop.permute.xlu0 %3303
      %3305 = vrot.lane.b32.xlu0 %v2947, 40
      %v3306 = vpop.permute.xlu0 %3305
      %3307 = vrot.lane.b32.xlu0 %v2948, 40
      %v3308 = vpop.permute.xlu0 %3307
      %3309 = vrot.lane.b32.xlu0 %v2949, 40
      %v3310 = vpop.permute.xlu0 %3309
      %3311 = vrot.lane.b32.xlu0 %v2950, 40
      %v3312 = vpop.permute.xlu0 %3311
      %3313 = vrot.lane.b32.xlu0 %v2951, 40
      %v3314 = vpop.permute.xlu0 %3313
      %3315 = vrot.lane.b32.xlu0 %v2952, 40
      %v3316 = vpop.permute.xlu0 %3315
      %3317 = vrot.lane.b32.xlu0 %v2953, 40
      %v3318 = vpop.permute.xlu0 %3317
      %3319 = vrot.lane.b32.xlu0 %v2954, 40
      %v3320 = vpop.permute.xlu0 %3319
      %3321 = vrot.lane.b32.xlu0 %v2955, 40
      %v3322 = vpop.permute.xlu0 %3321
      %3325 = vrot.lane.b32.xlu0 %v2939, 48
      %v3326 = vpop.permute.xlu0 %3325
      %3327 = vrot.lane.b32.xlu0 %v2940, 48
      %v3328 = vpop.permute.xlu0 %3327
      %3329 = vrot.lane.b32.xlu0 %v2941, 48
      %v3330 = vpop.permute.xlu0 %3329
      %3331 = vrot.lane.b32.xlu0 %v2942, 48
      %v3332 = vpop.permute.xlu0 %3331
      %3333 = vrot.lane.b32.xlu0 %v2943, 48
      %v3334 = vpop.permute.xlu0 %3333
      %3335 = vrot.lane.b32.xlu0 %v2944, 48
      %v3336 = vpop.permute.xlu0 %3335
      %3337 = vrot.lane.b32.xlu0 %v2945, 48
      %v3338 = vpop.permute.xlu0 %3337
      %3339 = vrot.lane.b32.xlu0 %v2946, 48
      %v3340 = vpop.permute.xlu0 %3339
      %3341 = vrot.lane.b32.xlu0 %v2947, 48
      %v3342 = vpop.permute.xlu0 %3341
      %3343 = vrot.lane.b32.xlu0 %v2948, 48
      %v3344 = vpop.permute.xlu0 %3343
      %3345 = vrot.lane.b32.xlu0 %v2949, 48
      %v3346 = vpop.permute.xlu0 %3345
      %3347 = vrot.lane.b32.xlu0 %v2950, 48
      %v3348 = vpop.permute.xlu0 %3347
      %3349 = vrot.lane.b32.xlu0 %v2951, 48
      %v3350 = vpop.permute.xlu0 %3349
      %3351 = vrot.lane.b32.xlu0 %v2952, 48
      %v3352 = vpop.permute.xlu0 %3351
      %3353 = vrot.lane.b32.xlu0 %v2953, 48
      %v3354 = vpop.permute.xlu0 %3353
      %3355 = vrot.lane.b32.xlu0 %v2954, 48
      %v3356 = vpop.permute.xlu0 %3355
      %3357 = vrot.lane.b32.xlu0 %v2959, 48
      %v3358 = vpop.permute.xlu0 %3357
      %3359 = vrot.lane.b32.xlu0 %v2960, 48
      %v3360 = vpop.permute.xlu0 %3359
      %3379 = vrot.lane.b32.xlu0 %v2997, 56
      %v3380 = vpop.permute.xlu0 %3379
      %3381 = vrot.lane.b32.xlu0 %v2998, 56
      %v3382 = vpop.permute.xlu0 %3381
      %3383 = vrot.lane.b32.xlu0 %v2999, 56
      %v3384 = vpop.permute.xlu0 %3383
      %3385 = vrot.lane.b32.xlu0 %v3000, 56
      %v3386 = vpop.permute.xlu0 %3385
      %3387 = vrot.lane.b32.xlu0 %v3001, 56
      %v3388 = vpop.permute.xlu0 %3387
      %3389 = vrot.lane.b32.xlu0 %v3002, 56
      %v3390 = vpop.permute.xlu0 %3389
      %3391 = vrot.lane.b32.xlu0 %v3003, 56
      %v3392 = vpop.permute.xlu0 %3391
      %3393 = vrot.lane.b32.xlu0 %v3004, 56
      %v3394 = vpop.permute.xlu0 %3393
      %3395 = vrot.lane.b32.xlu0 %v3005, 56
      %v3396 = vpop.permute.xlu0 %3395
      %3397 = vrot.lane.b32.xlu0 %v3006, 56
      %v3398 = vpop.permute.xlu0 %3397
      %3399 = vrot.lane.b32.xlu0 %v3007, 56
      %v3400 = vpop.permute.xlu0 %3399
      %3401 = vrot.lane.b32.xlu0 %v3008, 56
      %v3402 = vpop.permute.xlu0 %3401
      %3403 = vrot.lane.b32.xlu0 %v3009, 56
      %v3404 = vpop.permute.xlu0 %3403
      %3405 = vrot.lane.b32.xlu0 %v3010, 56
      %v3406 = vpop.permute.xlu0 %3405
      %3407 = vrot.lane.b32.xlu0 %v3011, 56
      %v3408 = vpop.permute.xlu0 %3407
      %3409 = vrot.lane.b32.xlu0 %v3012, 56
      %v3410 = vpop.permute.xlu0 %3409
      %3411 = vrot.lane.b32.xlu0 %v3013, 56
      %v3412 = vpop.permute.xlu0 %3411
      %3413 = vrot.lane.b32.xlu0 %v3014, 56
      %v3414 = vpop.permute.xlu0 %3413
      %3433 = vrot.lane.b32.xlu0 %v3051, 64
      %v3434 = vpop.permute.xlu0 %3433
      %3435 = vrot.lane.b32.xlu0 %v3052, 64
      %v3436 = vpop.permute.xlu0 %3435
      %3437 = vrot.lane.b32.xlu0 %v3053, 64
      %v3438 = vpop.permute.xlu0 %3437
      %3439 = vrot.lane.b32.xlu0 %v3054, 64
      %v3440 = vpop.permute.xlu0 %3439
      %3441 = vrot.lane.b32.xlu0 %v3055, 64
      %v3442 = vpop.permute.xlu0 %3441
      %3443 = vrot.lane.b32.xlu0 %v3056, 64
      %v3444 = vpop.permute.xlu0 %3443
      %3445 = vrot.lane.b32.xlu0 %v3057, 64
      %v3446 = vpop.permute.xlu0 %3445
      %3447 = vrot.lane.b32.xlu0 %v3058, 64
      %v3448 = vpop.permute.xlu0 %3447
      %3449 = vrot.lane.b32.xlu0 %v3059, 64
      %v3450 = vpop.permute.xlu0 %3449
      %3451 = vrot.lane.b32.xlu0 %v3060, 64
      %v3452 = vpop.permute.xlu0 %3451
      %3453 = vrot.lane.b32.xlu0 %v3061, 64
      %v3454 = vpop.permute.xlu0 %3453
      %3455 = vrot.lane.b32.xlu0 %v3062, 64
      %v3456 = vpop.permute.xlu0 %3455
      %3457 = vrot.lane.b32.xlu0 %v3063, 64
      %v3458 = vpop.permute.xlu0 %3457
      %3459 = vrot.lane.b32.xlu0 %v3064, 64
      %v3460 = vpop.permute.xlu0 %3459
      %3461 = vrot.lane.b32.xlu0 %v3065, 64
      %v3462 = vpop.permute.xlu0 %3461
      %3463 = vrot.lane.b32.xlu0 %v3066, 64
      %v3464 = vpop.permute.xlu0 %3463
      %3465 = vrot.lane.b32.xlu0 %v3067, 64
      %v3466 = vpop.permute.xlu0 %3465
      %3467 = vrot.lane.b32.xlu0 %v3068, 64
      %v3468 = vpop.permute.xlu0 %3467
      %v3471 = vsel %vm1997, %v2717, %v3088
      %v3474 = vsel %vm1997, %v2718, %v3090
      %v3477 = vsel %vm1997, %v2719, %v3092
      %v3480 = vsel %vm1997, %v2720, %v3094
      %v3483 = vsel %vm1997, %v2721, %v3096
      %v3486 = vsel %vm1997, %v2722, %v3098
      %v3489 = vsel %vm1997, %v2723, %v3100
      %v3492 = vsel %vm1997, %v2724, %v3102
      %v3495 = vsel %vm1997, %v2725, %v3104
      %v3498 = vsel %vm1997, %v2726, %v3106
      %v3501 = vsel %vm1997, %v2727, %v3108
      %v3504 = vsel %vm1997, %v2728, %v3110
      %v3507 = vsel %vm1997, %v2729, %v3112
      %v3510 = vsel %vm1997, %v2730, %v3114
      %v3513 = vsel %vm1997, %v2731, %v3116
      %v3516 = vsel %vm1997, %v2732, %v3118
      %v3519 = vsel %vm1997, %v2733, %v3120
      %v3522 = vsel %vm1997, %v2734, %v3122
      %v3524 = vsel %vm280, %v3471, %v3142
      %v3526 = vsel %vm280, %v3474, %v3144
      %v3528 = vsel %vm280, %v3477, %v3146
      %v3530 = vsel %vm280, %v3480, %v3148
      %v3532 = vsel %vm280, %v3483, %v3150
      %v3534 = vsel %vm280, %v3486, %v3152
      %v3536 = vsel %vm280, %v3489, %v3154
      %v3538 = vsel %vm280, %v3492, %v3156
      %v3540 = vsel %vm280, %v3495, %v3158
      %v3542 = vsel %vm280, %v3498, %v3160
      %v3544 = vsel %vm280, %v3501, %v3162
      %v3546 = vsel %vm280, %v3504, %v3164
      %v3548 = vsel %vm280, %v3507, %v3166
      %v3550 = vsel %vm280, %v3510, %v3168
      %v3552 = vsel %vm280, %v3513, %v3170
      %v3554 = vsel %vm280, %v3516, %v3172
      %v3556 = vsel %vm280, %v3519, %v3174
      %v3558 = vsel %vm280, %v3522, %v3176
      %v3560 = vsel %vm2144, %v3524, %v3180
      %v3562 = vsel %vm2144, %v3526, %v3182
      %v3564 = vsel %vm2144, %v3528, %v3184
      %v3566 = vsel %vm2144, %v3530, %v3186
      %v3568 = vsel %vm2144, %v3532, %v3188
      %v3570 = vsel %vm2144, %v3534, %v3190
      %v3572 = vsel %vm2144, %v3536, %v3192
      %v3574 = vsel %vm2144, %v3538, %v3194
      %v3576 = vsel %vm2144, %v3540, %v3196
      %v3578 = vsel %vm2144, %v3542, %v3198
      %v3580 = vsel %vm2144, %v3544, %v3200
      %v3582 = vsel %vm2144, %v3546, %v3202
      %v3584 = vsel %vm2144, %v3548, %v3204
      %v3586 = vsel %vm2144, %v3550, %v3206
      %v3588 = vsel %vm2144, %v3552, %v3208
      %v3590 = vsel %vm2144, %v3554, %v3210
      %v3592 = vsel %vm2144, %v3556, %v3212
      %v3594 = vsel %vm2144, %v3558, %v3214
      %v3596 = vsel %vm2218, %v3560, %v3234
      %v3598 = vsel %vm2218, %v3562, %v3236
      %v3600 = vsel %vm2218, %v3564, %v3238
      %v3602 = vsel %vm2218, %v3566, %v3240
      %v3604 = vsel %vm2218, %v3568, %v3242
      %v3606 = vsel %vm2218, %v3570, %v3244
      %v3608 = vsel %vm2218, %v3572, %v3246
      %v3610 = vsel %vm2218, %v3574, %v3248
      %v3612 = vsel %vm2218, %v3576, %v3250
      %v3614 = vsel %vm2218, %v3578, %v3252
      %v3616 = vsel %vm2218, %v3580, %v3254
      %v3618 = vsel %vm2218, %v3582, %v3256
      %v3620 = vsel %vm2218, %v3584, %v3258
      %v3622 = vsel %vm2218, %v3586, %v3260
      %v3624 = vsel %vm2218, %v3588, %v3262
      %v3626 = vsel %vm2218, %v3590, %v3264
      %v3628 = vsel %vm2218, %v3592, %v3266
      %v3630 = vsel %vm2218, %v3594, %v3268
      %vm3631 = vcmask 326656
      %v3633 = vsel %vm3631, %v3596, %v3288
      %v3635 = vsel %vm3631, %v3598, %v3290
      %v3637 = vsel %vm3631, %v3600, %v3292
      %v3639 = vsel %vm3631, %v3602, %v3294
      %v3641 = vsel %vm3631, %v3604, %v3296
      %v3643 = vsel %vm3631, %v3606, %v3298
      %v3645 = vsel %vm3631, %v3608, %v3300
      %v3647 = vsel %vm3631, %v3610, %v3302
      %v3649 = vsel %vm3631, %v3612, %v3304
      %v3651 = vsel %vm3631, %v3614, %v3306
      %v3653 = vsel %vm3631, %v3616, %v3308
      %v3655 = vsel %vm3631, %v3618, %v3310
      %v3657 = vsel %vm3631, %v3620, %v3312
      %v3659 = vsel %vm3631, %v3622, %v3314
      %v3661 = vsel %vm3631, %v3624, %v3316
      %v3663 = vsel %vm3631, %v3626, %v3318
      %v3665 = vsel %vm3631, %v3628, %v3320
      %v3667 = vsel %vm3631, %v3630, %v3322
      %vm3668 = vcmask 392192
      %v3670 = vsel %vm3668, %v3633, %v3326
      %v3672 = vsel %vm3668, %v3635, %v3328
      %v3674 = vsel %vm3668, %v3637, %v3330
      %v3676 = vsel %vm3668, %v3639, %v3332
      %v3678 = vsel %vm3668, %v3641, %v3334
      %v3680 = vsel %vm3668, %v3643, %v3336
      %v3682 = vsel %vm3668, %v3645, %v3338
      %v3684 = vsel %vm3668, %v3647, %v3340
      %v3686 = vsel %vm3668, %v3649, %v3342
      %v3688 = vsel %vm3668, %v3651, %v3344
      %v3690 = vsel %vm3668, %v3653, %v3346
      %v3692 = vsel %vm3668, %v3655, %v3348
      %v3694 = vsel %vm3668, %v3657, %v3350
      %v3696 = vsel %vm3668, %v3659, %v3352
      %v3698 = vsel %vm3668, %v3661, %v3354
      %v3700 = vsel %vm3668, %v3663, %v3356
      %v3702 = vsel %vm3668, %v3665, %v3358
      %v3704 = vsel %vm3668, %v3667, %v3360
      %vm3705 = vcmask 457728
      %v3707 = vsel %vm3705, %v3670, %v3380
      %v3709 = vsel %vm3705, %v3672, %v3382
      %v3711 = vsel %vm3705, %v3674, %v3384
      %v3713 = vsel %vm3705, %v3676, %v3386
      %v3715 = vsel %vm3705, %v3678, %v3388
      %v3717 = vsel %vm3705, %v3680, %v3390
      %v3719 = vsel %vm3705, %v3682, %v3392
      %v3721 = vsel %vm3705, %v3684, %v3394
      %v3723 = vsel %vm3705, %v3686, %v3396
      %v3725 = vsel %vm3705, %v3688, %v3398
      %v3727 = vsel %vm3705, %v3690, %v3400
      %v3729 = vsel %vm3705, %v3692, %v3402
      %v3731 = vsel %vm3705, %v3694, %v3404
      %v3733 = vsel %vm3705, %v3696, %v3406
      %v3735 = vsel %vm3705, %v3698, %v3408
      %v3737 = vsel %vm3705, %v3700, %v3410
      %v3739 = vsel %vm3705, %v3702, %v3412
      %v3741 = vsel %vm3705, %v3704, %v3414
      %vm3742 = vcmask 523264
      %v3744 = vsel %vm3742, %v3707, %v3434
      %v3746 = vsel %vm3742, %v3709, %v3436
      %v3748 = vsel %vm3742, %v3711, %v3438
      %v3750 = vsel %vm3742, %v3713, %v3440
      %v3752 = vsel %vm3742, %v3715, %v3442
      %v3754 = vsel %vm3742, %v3717, %v3444
      %v3756 = vsel %vm3742, %v3719, %v3446
      %v3758 = vsel %vm3742, %v3721, %v3448
      %v3760 = vsel %vm3742, %v3723, %v3450
      %v3762 = vsel %vm3742, %v3725, %v3452
      %v3764 = vsel %vm3742, %v3727, %v3454
      %v3766 = vsel %vm3742, %v3729, %v3456
      %v3768 = vsel %vm3742, %v3731, %v3458
      %v3770 = vsel %vm3742, %v3733, %v3460
      %v3772 = vsel %vm3742, %v3735, %v3462
      %v3774 = vsel %vm3742, %v3737, %v3464
      %v3776 = vsel %vm3742, %v3739, %v3466
      %v3778 = vsel %vm3742, %v3741, %v3468
      %v3779 = vld [vmem:[%s3] sm:$0xf]
      %v3780 = vld [vmem:[%s3 + $0x4] sm:$0xf]
      %v3781 = vld [vmem:[%s3 + $0x8] sm:$0xf]
      %v3782 = vld [vmem:[%s3 + $0xc] sm:$0xf]
      %v3783 = vld [vmem:[%s3 + $0x10] sm:$0xf]
      %v3784 = vld [vmem:[%s3 + $0x14] sm:$0xf]
      %v3785 = vld [vmem:[%s3 + $0x18] sm:$0xf]
      %v3786 = vld [vmem:[%s3 + $0x1c] sm:$0xf]
      %v3787 = vld [vmem:[%s3 + $0x20] sm:$0xf]
      %v3788 = vld [vmem:[%s4] sm:$0x1]
      %v3790 = vlaneseq
      %v3791 = vshrl.u32 %v3790, 7
      %v3792 = vsub.s32 0, %v3791
      %v3793 = vrot.slane %v3788, %v3792
      %v3804 = vunpack.c.l.b16 %v3779
      %v3805 = vunpack.c.l.b16 %v3780
      %v3806 = vunpack.c.l.b16 %v3781
      %v3807 = vunpack.c.l.b16 %v3782
      %v3808 = vunpack.c.l.b16 %v3783
      %v3809 = vunpack.c.l.b16 %v3784
      %v3810 = vunpack.c.l.b16 %v3785
      %v3811 = vunpack.c.l.b16 %v3786
      %v3812 = vunpack.c.l.b16 %v3787
      %v3813 = vpack.c.b16 %v3805, %v3804
      %v3814 = vpack.c.b16 %v3807, %v3806
      %v3815 = vpack.c.b16 %v3809, %v3808
      %v3816 = vpack.c.b16 %v3811, %v3810
      %v3817 = vpack.c.b16 %v3812, %v3812
      %vm3822 = vcmask 588800
      %v3823 = vsel %vm3822, %v3744, 0
      %v3825 = vsel %vm3822, %v3746, 0
      %v3827 = vsel %vm3822, %v3748, 0
      %v3829 = vsel %vm3822, %v3750, 0
      %v3831 = vsel %vm3822, %v3752, 0
      %v3833 = vsel %vm3822, %v3754, 0
      %v3835 = vsel %vm3822, %v3756, 0
      %v3837 = vsel %vm3822, %v3758, 0
      %v3839 = vsel %vm3822, %v3760, 0
      %v3841 = vsel %vm3822, %v3762, 0
      %v3843 = vsel %vm3822, %v3764, 0
      %v3845 = vsel %vm3822, %v3766, 0
      %v3847 = vsel %vm3822, %v3768, 0
      %v3849 = vsel %vm3822, %v3770, 0
      %v3851 = vsel %vm3822, %v3772, 0
      %v3853 = vsel %vm3822, %v3774, 0
      %v3855 = vsel %vm3822, %v3776, 0
      %v3857 = vsel %vm3822, %v3778, 0
      %vm3859 = vcmask 1043456
      %v3861 = vsel %vm3859, %v3817, 0
      %3863 = vmatprep.subr.bf16.mxu0 0
      %3864 = vmatpush1.bf16.msra.mxu0 %v3813
      %3865 = vmatprep.subr.bf16.mxu0 0
      %3866 = vmatpush1.bf16.msra.mxu0 %v3814
      %3867 = vmatprep.subr.bf16.mxu0 0
      %3868 = vmatpush1.bf16.msra.mxu0 %v3815
      %3869 = vmatprep.subr.bf16.mxu0 0
      %3870 = vmatpush1.bf16.msra.mxu0 %v3816
      %3871 = vmatprep.subr.bf16.mxu0 0
      %3872 = vmatpush1.bf16.msra.mxu0 %v3861
      %3873 = vmatprep.subr.bf16.mxu0 0
      %3874 = vmatpush1.bf16.msra.mxu0 0
      %3875 = vmatprep.subr.bf16.mxu0 0
      %3876 = vmatpush1.bf16.msra.mxu0 0
      %3877 = vmatprep.subr.bf16.mxu0 0
      %3878 = vmatpush1.bf16.msra.mxu0 0
      %3879 = vmatprep.subr.bf16.mxu0 0
      %3880 = vmatpush1.bf16.msra.mxu0 0
      %3881 = vmatprep.subr.bf16.mxu0 0
      %3882 = vmatpush1.bf16.msra.mxu0 0
      %3883 = vmatprep.subr.bf16.mxu0 0
      %3884 = vmatpush1.bf16.msra.mxu0 0
      %3885 = vmatprep.subr.bf16.mxu0 0
      %3886 = vmatpush1.bf16.msra.mxu0 0
      %3887 = vmatprep.subr.bf16.mxu0 0
      %3888 = vmatpush1.bf16.msra.mxu0 0
      %3889 = vmatprep.subr.bf16.mxu0 0
      %3890 = vmatpush1.bf16.msra.mxu0 0
      %3891 = vmatprep.subr.bf16.mxu0 0
      %3892 = vmatpush1.bf16.msra.mxu0 0
      %3893 = vmatprep.subr.bf16.mxu0 0
      %3894 = vmatpush1.bf16.msra.mxu0 0
      %3895 = vmatprep.mubr.bf16.mxu0 0
      %3896 = vmatmul.mubr.bf16.gmra.mrb[0].mxu0 %v3823
      %v3897 = vpop.f32.mrb[0].mxu0
      %v3898 = vadd.f32 %v3793, %v3897
      %v3899 = vpop.f32.mrb[0].mxu0
      %v3900 = vpop.f32.mrb[0].mxu0
      %v3901 = vadd.f32 %v3793, %v3900
      %v3902 = vpop.f32.mrb[0].mxu0
      %3903 = vmatprep.mubr.bf16.mxu0 0
      %3904 = vmatmul.mubr.bf16.gmra.mrb[0].mxu0 %v3825
      %v3905 = vpop.f32.mrb[0].mxu0
      %v3906 = vadd.f32 %v3793, %v3905
      %v3907 = vpop.f32.mrb[0].mxu0
      %v3908 = vpop.f32.mrb[0].mxu0
      %v3909 = vadd.f32 %v3793, %v3908
      %v3910 = vpop.f32.mrb[0].mxu0
      %3911 = vmatprep.mubr.bf16.mxu0 0
      %3912 = vmatmul.mubr.bf16.gmra.mrb[0].mxu0 %v3827
      %v3913 = vpop.f32.mrb[0].mxu0
      %v3914 = vadd.f32 %v3793, %v3913
      %v3915 = vpop.f32.mrb[0].mxu0
      %v3916 = vpop.f32.mrb[0].mxu0
      %v3917 = vadd.f32 %v3793, %v3916
      %v3918 = vpop.f32.mrb[0].mxu0
      %3919 = vmatprep.mubr.bf16.mxu0 0
      %3920 = vmatmul.mubr.bf16.gmra.mrb[0].mxu0 %v3829
      %v3921 = vpop.f32.mrb[0].mxu0
      %v3922 = vadd.f32 %v3793, %v3921
      %v3923 = vpop.f32.mrb[0].mxu0
      %v3924 = vpop.f32.mrb[0].mxu0
      %v3925 = vadd.f32 %v3793, %v3924
      %v3926 = vpop.f32.mrb[0].mxu0
      %3927 = vmatprep.mubr.bf16.mxu0 0
      %3928 = vmatmul.mubr.bf16.gmra.mrb[0].mxu0 %v3831
      %v3929 = vpop.f32.mrb[0].mxu0
      %v3930 = vadd.f32 %v3793, %v3929
      %v3931 = vpop.f32.mrb[0].mxu0
      %v3932 = vpop.f32.mrb[0].mxu0
      %v3933 = vadd.f32 %v3793, %v3932
      %v3934 = vpop.f32.mrb[0].mxu0
      %3935 = vmatprep.mubr.bf16.mxu0 0
      %3936 = vmatmul.mubr.bf16.gmra.mrb[0].mxu0 %v3833
      %v3937 = vpop.f32.mrb[0].mxu0
      %v3938 = vadd.f32 %v3793, %v3937
      %v3939 = vpop.f32.mrb[0].mxu0
      %v3940 = vpop.f32.mrb[0].mxu0
      %v3941 = vadd.f32 %v3793, %v3940
      %v3942 = vpop.f32.mrb[0].mxu0
      %3943 = vmatprep.mubr.bf16.mxu0 0
      %3944 = vmatmul.mubr.bf16.gmra.mrb[0].mxu0 %v3835
      %v3945 = vpop.f32.mrb[0].mxu0
      %v3946 = vadd.f32 %v3793, %v3945
      %v3947 = vpop.f32.mrb[0].mxu0
      %v3948 = vpop.f32.mrb[0].mxu0
      %v3949 = vadd.f32 %v3793, %v3948
      %v3950 = vpop.f32.mrb[0].mxu0
      %3951 = vmatprep.mubr.bf16.mxu0 0
      %3952 = vmatmul.mubr.bf16.gmra.mrb[0].mxu0 %v3837
      %v3953 = vpop.f32.mrb[0].mxu0
      %v3954 = vadd.f32 %v3793, %v3953
      %v3955 = vpop.f32.mrb[0].mxu0
      %v3956 = vpop.f32.mrb[0].mxu0
      %v3957 = vadd.f32 %v3793, %v3956
      %v3958 = vpop.f32.mrb[0].mxu0
      %3959 = vmatprep.mubr.bf16.mxu0 0
      %3960 = vmatmul.mubr.bf16.gmra.mrb[0].mxu0 %v3839
      %v3961 = vpop.f32.mrb[0].mxu0
      %v3962 = vadd.f32 %v3793, %v3961
      %v3963 = vpop.f32.mrb[0].mxu0
      %v3964 = vpop.f32.mrb[0].mxu0
      %v3965 = vadd.f32 %v3793, %v3964
      %v3966 = vpop.f32.mrb[0].mxu0
      %3967 = vmatprep.mubr.bf16.mxu0 0
      %3968 = vmatmul.mubr.bf16.gmra.mrb[0].mxu0 %v3841
      %v3969 = vpop.f32.mrb[0].mxu0
      %v3970 = vadd.f32 %v3793, %v3969
      %v3971 = vpop.f32.mrb[0].mxu0
      %v3972 = vpop.f32.mrb[0].mxu0
      %v3973 = vadd.f32 %v3793, %v3972
      %v3974 = vpop.f32.mrb[0].mxu0
      %3975 = vmatprep.mubr.bf16.mxu0 0
      %3976 = vmatmul.mubr.bf16.gmra.mrb[0].mxu0 %v3843
      %v3977 = vpop.f32.mrb[0].mxu0
      %v3978 = vadd.f32 %v3793, %v3977
      %v3979 = vpop.f32.mrb[0].mxu0
      %v3980 = vpop.f32.mrb[0].mxu0
      %v3981 = vadd.f32 %v3793, %v3980
      %v3982 = vpop.f32.mrb[0].mxu0
      %3983 = vmatprep.mubr.bf16.mxu0 0
      %3984 = vmatmul.mubr.bf16.gmra.mrb[0].mxu0 %v3845
      %v3985 = vpop.f32.mrb[0].mxu0
      %v3986 = vadd.f32 %v3793, %v3985
      %v3987 = vpop.f32.mrb[0].mxu0
      %v3988 = vpop.f32.mrb[0].mxu0
      %v3989 = vadd.f32 %v3793, %v3988
      %v3990 = vpop.f32.mrb[0].mxu0
      %3991 = vmatprep.mubr.bf16.mxu0 0
      %3992 = vmatmul.mubr.bf16.gmra.mrb[0].mxu0 %v3847
      %v3993 = vpop.f32.mrb[0].mxu0
      %v3994 = vadd.f32 %v3793, %v3993
      %v3995 = vpop.f32.mrb[0].mxu0
      %v3996 = vpop.f32.mrb[0].mxu0
      %v3997 = vadd.f32 %v3793, %v3996
      %v3998 = vpop.f32.mrb[0].mxu0
      %3999 = vmatprep.mubr.bf16.mxu0 0
      %4000 = vmatmul.mubr.bf16.gmra.mrb[0].mxu0 %v3849
      %v4001 = vpop.f32.mrb[0].mxu0
      %v4002 = vadd.f32 %v3793, %v4001
      %v4003 = vpop.f32.mrb[0].mxu0
      %v4004 = vpop.f32.mrb[0].mxu0
      %v4005 = vadd.f32 %v3793, %v4004
      %v4006 = vpop.f32.mrb[0].mxu0
      %4007 = vmatprep.mubr.bf16.mxu0 0
      %4008 = vmatmul.mubr.bf16.gmra.mrb[0].mxu0 %v3851
      %v4009 = vpop.f32.mrb[0].mxu0
      %v4010 = vadd.f32 %v3793, %v4009
      %v4011 = vpop.f32.mrb[0].mxu0
      %v4012 = vpop.f32.mrb[0].mxu0
      %v4013 = vadd.f32 %v3793, %v4012
      %v4014 = vpop.f32.mrb[0].mxu0
      %4015 = vmatprep.mubr.bf16.mxu0 0
      %4016 = vmatmul.mubr.bf16.gmra.mrb[0].mxu0 %v3853
      %v4017 = vpop.f32.mrb[0].mxu0
      %v4018 = vadd.f32 %v3793, %v4017
      %v4019 = vpop.f32.mrb[0].mxu0
      %v4020 = vpop.f32.mrb[0].mxu0
      %v4021 = vadd.f32 %v3793, %v4020
      %v4022 = vpop.f32.mrb[0].mxu0
      %4023 = vmatprep.mubr.bf16.mxu0 0
      %4024 = vmatmul.mubr.bf16.gmra.mrb[0].mxu0 %v3855
      %v4025 = vpop.f32.mrb[0].mxu0
      %v4026 = vadd.f32 %v3793, %v4025
      %v4027 = vpop.f32.mrb[0].mxu0
      %v4028 = vpop.f32.mrb[0].mxu0
      %v4029 = vadd.f32 %v3793, %v4028
      %v4030 = vpop.f32.mrb[0].mxu0
      %4031 = vmatprep.mubr.bf16.mxu0 0
      %4032 = vmatmul.mubr.bf16.gmra.mrb[0].mxu0 %v3857
      %v4033 = vpop.f32.mrb[0].mxu0
      %v4034 = vadd.f32 %v3793, %v4033
      %v4035 = vpop.f32.mrb[0].mxu0
      %v4036 = vpop.f32.mrb[0].mxu0
      %v4037 = vadd.f32 %v3793, %v4036
      %v4038 = vpop.f32.mrb[0].mxu0
      %4039 = vdwg.mxu0
      %v4040 = vmax.f32 %v3898, 0.0
      %v4041 = vmax.f32 %v3901, 0.0
      %v4042 = vmax.f32 %v3906, 0.0
      %v4043 = vmax.f32 %v3909, 0.0
      %v4044 = vmax.f32 %v3914, 0.0
      %v4045 = vmax.f32 %v3917, 0.0
      %v4046 = vmax.f32 %v3922, 0.0
      %v4047 = vmax.f32 %v3925, 0.0
      %v4048 = vmax.f32 %v3930, 0.0
      %v4049 = vmax.f32 %v3933, 0.0
      %v4050 = vmax.f32 %v3938, 0.0
      %v4051 = vmax.f32 %v3941, 0.0
      %v4052 = vmax.f32 %v3946, 0.0
      %v4053 = vmax.f32 %v3949, 0.0
      %v4054 = vmax.f32 %v3954, 0.0
      %v4055 = vmax.f32 %v3957, 0.0
      %v4056 = vmax.f32 %v3962, 0.0
      %v4057 = vmax.f32 %v3965, 0.0
      %v4058 = vmax.f32 %v3970, 0.0
      %v4059 = vmax.f32 %v3973, 0.0
      %v4060 = vmax.f32 %v3978, 0.0
      %v4061 = vmax.f32 %v3981, 0.0
      %v4062 = vmax.f32 %v3986, 0.0
      %v4063 = vmax.f32 %v3989, 0.0
      %v4064 = vmax.f32 %v3994, 0.0
      %v4065 = vmax.f32 %v3997, 0.0
      %v4066 = vmax.f32 %v4002, 0.0
      %v4067 = vmax.f32 %v4005, 0.0
      %v4068 = vmax.f32 %v4010, 0.0
      %v4069 = vmax.f32 %v4013, 0.0
      %v4070 = vmax.f32 %v4018, 0.0
      %v4071 = vmax.f32 %v4021, 0.0
      %v4072 = vmax.f32 %v4026, 0.0
      %v4073 = vmax.f32 %v4029, 0.0
      %v4074 = vmax.f32 %v4034, 0.0
      %v4075 = vmax.f32 %v4037, 0.0
      %v4076 = vsel %vm2572, %v4040, 0.0
      %v4077 = vsel %vm2573, %v4041, 0.0
      %v4078 = vsel %vm2574, %v4042, 0.0
      %v4079 = vsel %vm2575, %v4043, 0.0
      %v4080 = vsel %vm2576, %v4044, 0.0
      %v4081 = vsel %vm2577, %v4045, 0.0
      %v4082 = vsel %vm2578, %v4046, 0.0
      %v4083 = vsel %vm2579, %v4047, 0.0
      %v4084 = vsel %vm2580, %v4048, 0.0
      %v4085 = vsel %vm2581, %v4049, 0.0
      %v4086 = vsel %vm2582, %v4050, 0.0
      %v4087 = vsel %vm2583, %v4051, 0.0
      %v4088 = vsel %vm2584, %v4052, 0.0
      %v4089 = vsel %vm2585, %v4053, 0.0
      %v4090 = vsel %vm2586, %v4054, 0.0
      %v4091 = vsel %vm2587, %v4055, 0.0
      %v4092 = vsel %vm2588, %v4056, 0.0
      %v4093 = vsel %vm2589, %v4057, 0.0
      %v4094 = vsel %vm2590, %v4058, 0.0
      %v4095 = vsel %vm2591, %v4059, 0.0
      %v4096 = vsel %vm2592, %v4060, 0.0
      %v4097 = vsel %vm2593, %v4061, 0.0
      %v4098 = vsel %vm2594, %v4062, 0.0
      %v4099 = vsel %vm2595, %v4063, 0.0
      %v4100 = vsel %vm2596, %v4064, 0.0
      %v4101 = vsel %vm2597, %v4065, 0.0
      %v4102 = vsel %vm2598, %v4066, 0.0
      %v4103 = vsel %vm2599, %v4067, 0.0
      %v4104 = vsel %vm2600, %v4068, 0.0
      %v4105 = vsel %vm2601, %v4069, 0.0
      %v4106 = vsel %vm2602, %v4070, 0.0
      %v4107 = vsel %vm2603, %v4071, 0.0
      %v4108 = vsel %vm2604, %v4072, 0.0
      %v4109 = vsel %vm2605, %v4073, 0.0
      %v4110 = vsel %vm2606, %v4074, 0.0
      %v4111 = vsel %vm2607, %v4075, 0.0
      %4112 = vst.msk [vmem:[#allocation3 + $0x13] sm:$0xff] %vm280, %v4076
      %4113 = vst.msk [vmem:[#allocation3 + $0x1b] sm:$0xff] %vm280, %v4077
      %4114 = vst.msk [vmem:[#allocation3 + $0x23] sm:$0xff] %vm280, %v4078
      %4115 = vst.msk [vmem:[#allocation3 + $0x2b] sm:$0xff] %vm280, %v4079
      %4116 = vst.msk [vmem:[#allocation3 + $0x33] sm:$0xff] %vm280, %v4080
      %4117 = vst.msk [vmem:[#allocation3 + $0x3b] sm:$0xff] %vm280, %v4081
      %4118 = vst.msk [vmem:[#allocation3 + $0x43] sm:$0xff] %vm280, %v4082
      %4119 = vst.msk [vmem:[#allocation3 + $0x4b] sm:$0xff] %vm280, %v4083
      %4120 = vst.msk [vmem:[#allocation3 + $0x53] sm:$0xff] %vm280, %v4084
      %4121 = vst.msk [vmem:[#allocation3 + $0x5b] sm:$0xff] %vm280, %v4085
      %4122 = vst.msk [vmem:[#allocation3 + $0x63] sm:$0xff] %vm280, %v4086
      %4123 = vst.msk [vmem:[#allocation3 + $0x6b] sm:$0xff] %vm280, %v4087
      %4124 = vst.msk [vmem:[#allocation3 + $0x73] sm:$0xff] %vm280, %v4088
      %4125 = vst.msk [vmem:[#allocation3 + $0x7b] sm:$0xff] %vm280, %v4089
      %4126 = vst.msk [vmem:[#allocation3 + $0x83] sm:$0xff] %vm280, %v4090
      %4127 = vst.msk [vmem:[#allocation3 + $0x8b] sm:$0xff] %vm280, %v4091
      %4128 = vst.msk [vmem:[#allocation3 + $0x93] sm:$0xff] %vm280, %v4092
      %4129 = vst.msk [vmem:[#allocation3 + $0x9b] sm:$0xff] %vm280, %v4093
      %4130 = vst.msk [vmem:[#allocation3 + $0xa3] sm:$0xff] %vm280, %v4094
      %4131 = vst.msk [vmem:[#allocation3 + $0xab] sm:$0xff] %vm280, %v4095
      %4132 = vst.msk [vmem:[#allocation3 + $0xb3] sm:$0xff] %vm280, %v4096
      %4133 = vst.msk [vmem:[#allocation3 + $0xbb] sm:$0xff] %vm280, %v4097
      %4134 = vst.msk [vmem:[#allocation3 + $0xc3] sm:$0xff] %vm280, %v4098
      %4135 = vst.msk [vmem:[#allocation3 + $0xcb] sm:$0xff] %vm280, %v4099
      %4136 = vst.msk [vmem:[#allocation3 + $0xd3] sm:$0xff] %vm280, %v4100
      %4137 = vst.msk [vmem:[#allocation3 + $0xdb] sm:$0xff] %vm280, %v4101
      %4138 = vst.msk [vmem:[#allocation3 + $0xe3] sm:$0xff] %vm280, %v4102
      %4139 = vst.msk [vmem:[#allocation3 + $0xeb] sm:$0xff] %vm280, %v4103
      %4140 = vst.msk [vmem:[#allocation3 + $0xf3] sm:$0xff] %vm280, %v4104
      %4141 = vst.msk [vmem:[#allocation3 + $0xfb] sm:$0xff] %vm280, %v4105
      %4142 = vst.msk [vmem:[#allocation3 + $0x103] sm:$0xff] %vm280, %v4106
      %4143 = vst.msk [vmem:[#allocation3 + $0x10b] sm:$0xff] %vm280, %v4107
      %4144 = vst.msk [vmem:[#allocation3 + $0x113] sm:$0xff] %vm280, %v4108
      %4145 = vst.msk [vmem:[#allocation3 + $0x11b] sm:$0xff] %vm280, %v4109
      %4146 = vst.msk [vmem:[#allocation3 + $0x123] sm:$0xff] %vm280, %v4110
      %vm4147 = vcmask 128000
      %4148 = vst.msk [vmem:[#allocation3 + $0x12b] sm:$0x3f] %vm4147, %v4111
      %v4149 = vld [vmem:[#allocation3] sm:$0xff]
      %v4150 = vld [vmem:[#allocation3 + $0x8] sm:$0xff]
      %v4151 = vld [vmem:[#allocation3 + $0x10] sm:$0xff]
      %v4152 = vld [vmem:[#allocation3 + $0x18] sm:$0xff]
      %v4153 = vld [vmem:[#allocation3 + $0x20] sm:$0xff]
      %v4154 = vld [vmem:[#allocation3 + $0x28] sm:$0xff]
      %v4155 = vld [vmem:[#allocation3 + $0x30] sm:$0xff]
      %v4156 = vld [vmem:[#allocation3 + $0x38] sm:$0xff]
      %v4157 = vld [vmem:[#allocation3 + $0x40] sm:$0xff]
      %v4158 = vld [vmem:[#allocation3 + $0x48] sm:$0xff]
      %v4159 = vld [vmem:[#allocation3 + $0x50] sm:$0xff]
      %v4160 = vld [vmem:[#allocation3 + $0x58] sm:$0xff]
      %v4161 = vld [vmem:[#allocation3 + $0x60] sm:$0xff]
      %v4162 = vld [vmem:[#allocation3 + $0x68] sm:$0xff]
      %v4163 = vld [vmem:[#allocation3 + $0x70] sm:$0xff]
      %v4164 = vld [vmem:[#allocation3 + $0x78] sm:$0xff]
      %v4165 = vld [vmem:[#allocation3 + $0x80] sm:$0xff]
      %v4166 = vld [vmem:[#allocation3 + $0x88] sm:$0xff]
      %v4167 = vld [vmem:[#allocation3 + $0x90] sm:$0xff]
      %v4168 = vld [vmem:[#allocation3 + $0x98] sm:$0xff]
      %v4169 = vld [vmem:[#allocation3 + $0xa0] sm:$0xff]
      %v4170 = vld [vmem:[#allocation3 + $0xa8] sm:$0xff]
      %v4171 = vld [vmem:[#allocation3 + $0xb0] sm:$0xff]
      %v4172 = vld [vmem:[#allocation3 + $0xb8] sm:$0xff]
      %v4173 = vld [vmem:[#allocation3 + $0xc0] sm:$0xff]
      %v4174 = vld [vmem:[#allocation3 + $0xc8] sm:$0xff]
      %v4175 = vld [vmem:[#allocation3 + $0xd0] sm:$0xff]
      %v4176 = vld [vmem:[#allocation3 + $0xd8] sm:$0xff]
      %v4177 = vld [vmem:[#allocation3 + $0xe0] sm:$0xff]
      %v4178 = vld [vmem:[#allocation3 + $0xe8] sm:$0xff]
      %v4179 = vld [vmem:[#allocation3 + $0xf0] sm:$0xff]
      %v4180 = vld [vmem:[#allocation3 + $0xf8] sm:$0xff]
      %v4181 = vld [vmem:[#allocation3 + $0x100] sm:$0xff]
      %v4182 = vld [vmem:[#allocation3 + $0x108] sm:$0xff]
      %v4183 = vld [vmem:[#allocation3 + $0x110] sm:$0xff]
      %v4184 = vld [vmem:[#allocation3 + $0x118] sm:$0x3f]
      %v4185 = vpack.c.bf16 %v4150, %v4149
      %v4186 = vpack.c.bf16 %v4152, %v4151
      %v4187 = vpack.c.bf16 %v4154, %v4153
      %v4188 = vpack.c.bf16 %v4156, %v4155
      %v4189 = vpack.c.bf16 %v4158, %v4157
      %v4190 = vpack.c.bf16 %v4160, %v4159
      %v4191 = vpack.c.bf16 %v4162, %v4161
      %v4192 = vpack.c.bf16 %v4164, %v4163
      %v4193 = vpack.c.bf16 %v4166, %v4165
      %v4194 = vpack.c.bf16 %v4168, %v4167
      %v4195 = vpack.c.bf16 %v4170, %v4169
      %v4196 = vpack.c.bf16 %v4172, %v4171
      %v4197 = vpack.c.bf16 %v4174, %v4173
      %v4198 = vpack.c.bf16 %v4176, %v4175
      %v4199 = vpack.c.bf16 %v4178, %v4177
      %v4200 = vpack.c.bf16 %v4180, %v4179
      %v4201 = vpack.c.bf16 %v4182, %v4181
      %v4202 = vpack.c.bf16 %v4184, %v4183
      %v4203 = vld [vmem:[#allocation3 + $0x1] sm:$0xff]
      %v4204 = vld [vmem:[#allocation3 + $0x9] sm:$0xff]
      %v4205 = vld [vmem:[#allocation3 + $0x11] sm:$0xff]
      %v4206 = vld [vmem:[#allocation3 + $0x19] sm:$0xff]
      %v4207 = vld [vmem:[#allocation3 + $0x21] sm:$0xff]
      %v4208 = vld [vmem:[#allocation3 + $0x29] sm:$0xff]
      %v4209 = vld [vmem:[#allocation3 + $0x31] sm:$0xff]
      %v4210 = vld [vmem:[#allocation3 + $0x39] sm:$0xff]
      %v4211 = vld [vmem:[#allocation3 + $0x41] sm:$0xff]
      %v4212 = vld [vmem:[#allocation3 + $0x49] sm:$0xff]
      %v4213 = vld [vmem:[#allocation3 + $0x51] sm:$0xff]
      %v4214 = vld [vmem:[#allocation3 + $0x59] sm:$0xff]
      %v4215 = vld [vmem:[#allocation3 + $0x61] sm:$0xff]
      %v4216 = vld [vmem:[#allocation3 + $0x69] sm:$0xff]
      %v4217 = vld [vmem:[#allocation3 + $0x71] sm:$0xff]
      %v4218 = vld [vmem:[#allocation3 + $0x79] sm:$0xff]
      %v4219 = vld [vmem:[#allocation3 + $0x81] sm:$0xff]
      %v4220 = vld [vmem:[#allocation3 + $0x89] sm:$0xff]
      %v4221 = vld [vmem:[#allocation3 + $0x91] sm:$0xff]
      %v4222 = vld [vmem:[#allocation3 + $0x99] sm:$0xff]
      %v4223 = vld [vmem:[#allocation3 + $0xa1] sm:$0xff]
      %v4224 = vld [vmem:[#allocation3 + $0xa9] sm:$0xff]
      %v4225 = vld [vmem:[#allocation3 + $0xb1] sm:$0xff]
      %v4226 = vld [vmem:[#allocation3 + $0xb9] sm:$0xff]
      %v4227 = vld [vmem:[#allocation3 + $0xc1] sm:$0xff]
      %v4228 = vld [vmem:[#allocation3 + $0xc9] sm:$0xff]
      %v4229 = vld [vmem:[#allocation3 + $0xd1] sm:$0xff]
      %v4230 = vld [vmem:[#allocation3 + $0xd9] sm:$0xff]
      %v4231 = vld [vmem:[#allocation3 + $0xe1] sm:$0xff]
      %v4232 = vld [vmem:[#allocation3 + $0xe9] sm:$0xff]
      %v4233 = vld [vmem:[#allocation3 + $0xf1] sm:$0xff]
      %v4234 = vld [vmem:[#allocation3 + $0xf9] sm:$0xff]
      %v4235 = vld [vmem:[#allocation3 + $0x101] sm:$0xff]
      %v4236 = vld [vmem:[#allocation3 + $0x109] sm:$0xff]
      %v4237 = vld [vmem:[#allocation3 + $0x111] sm:$0xff]
      %v4238 = vld [vmem:[#allocation3 + $0x119] sm:$0x3f]
      %v4239 = vpack.c.bf16 %v4204, %v4203
      %v4240 = vpack.c.bf16 %v4206, %v4205
      %v4241 = vpack.c.bf16 %v4208, %v4207
      %v4242 = vpack.c.bf16 %v4210, %v4209
      %v4243 = vpack.c.bf16 %v4212, %v4211
      %v4244 = vpack.c.bf16 %v4214, %v4213
      %v4245 = vpack.c.bf16 %v4216, %v4215
      %v4246 = vpack.c.bf16 %v4218, %v4217
      %v4247 = vpack.c.bf16 %v4220, %v4219
      %v4248 = vpack.c.bf16 %v4222, %v4221
      %v4249 = vpack.c.bf16 %v4224, %v4223
      %v4250 = vpack.c.bf16 %v4226, %v4225
      %v4251 = vpack.c.bf16 %v4228, %v4227
      %v4252 = vpack.c.bf16 %v4230, %v4229
      %v4253 = vpack.c.bf16 %v4232, %v4231
      %v4254 = vpack.c.bf16 %v4234, %v4233
      %v4255 = vpack.c.bf16 %v4236, %v4235
      %v4256 = vpack.c.bf16 %v4238, %v4237
      %v4257 = vld [vmem:[#allocation3 + $0x2] sm:$0xff]
      %v4258 = vld [vmem:[#allocation3 + $0xa] sm:$0xff]
      %v4259 = vld [vmem:[#allocation3 + $0x12] sm:$0xff]
      %v4260 = vld [vmem:[#allocation3 + $0x1a] sm:$0xff]
      %v4261 = vld [vmem:[#allocation3 + $0x22] sm:$0xff]
      %v4262 = vld [vmem:[#allocation3 + $0x2a] sm:$0xff]
      %v4263 = vld [vmem:[#allocation3 + $0x32] sm:$0xff]
      %v4264 = vld [vmem:[#allocation3 + $0x3a] sm:$0xff]
      %v4265 = vld [vmem:[#allocation3 + $0x42] sm:$0xff]
      %v4266 = vld [vmem:[#allocation3 + $0x4a] sm:$0xff]
      %v4267 = vld [vmem:[#allocation3 + $0x52] sm:$0xff]
      %v4268 = vld [vmem:[#allocation3 + $0x5a] sm:$0xff]
      %v4269 = vld [vmem:[#allocation3 + $0x62] sm:$0xff]
      %v4270 = vld [vmem:[#allocation3 + $0x6a] sm:$0xff]
      %v4271 = vld [vmem:[#allocation3 + $0x72] sm:$0xff]
      %v4272 = vld [vmem:[#allocation3 + $0x7a] sm:$0xff]
      %v4273 = vld [vmem:[#allocation3 + $0x82] sm:$0xff]
      %v4274 = vld [vmem:[#allocation3 + $0x8a] sm:$0xff]
      %v4275 = vld [vmem:[#allocation3 + $0x92] sm:$0xff]
      %v4276 = vld [vmem:[#allocation3 + $0x9a] sm:$0xff]
      %v4277 = vld [vmem:[#allocation3 + $0xa2] sm:$0xff]
      %v4278 = vld [vmem:[#allocation3 + $0xaa] sm:$0xff]
      %v4279 = vld [vmem:[#allocation3 + $0xb2] sm:$0xff]
      %v4280 = vld [vmem:[#allocation3 + $0xba] sm:$0xff]
      %v4281 = vld [vmem:[#allocation3 + $0xc2] sm:$0xff]
      %v4282 = vld [vmem:[#allocation3 + $0xca] sm:$0xff]
      %v4283 = vld [vmem:[#allocation3 + $0xd2] sm:$0xff]
      %v4284 = vld [vmem:[#allocation3 + $0xda] sm:$0xff]
      %v4285 = vld [vmem:[#allocation3 + $0xe2] sm:$0xff]
      %v4286 = vld [vmem:[#allocation3 + $0xea] sm:$0xff]
      %v4287 = vld [vmem:[#allocation3 + $0xf2] sm:$0xff]
      %v4288 = vld [vmem:[#allocation3 + $0xfa] sm:$0xff]
      %v4289 = vld [vmem:[#allocation3 + $0x102] sm:$0xff]
      %v4290 = vld [vmem:[#allocation3 + $0x10a] sm:$0xff]
      %v4291 = vld [vmem:[#allocation3 + $0x112] sm:$0xff]
      %v4292 = vld [vmem:[#allocation3 + $0x11a] sm:$0x3f]
      %v4293 = vpack.c.bf16 %v4258, %v4257
      %v4294 = vpack.c.bf16 %v4260, %v4259
      %v4295 = vpack.c.bf16 %v4262, %v4261
      %v4296 = vpack.c.bf16 %v4264, %v4263
      %v4297 = vpack.c.bf16 %v4266, %v4265
      %v4298 = vpack.c.bf16 %v4268, %v4267
      %v4299 = vpack.c.bf16 %v4270, %v4269
      %v4300 = vpack.c.bf16 %v4272, %v4271
      %v4301 = vpack.c.bf16 %v4274, %v4273
      %v4302 = vpack.c.bf16 %v4276, %v4275
      %v4303 = vpack.c.bf16 %v4278, %v4277
      %v4304 = vpack.c.bf16 %v4280, %v4279
      %v4305 = vpack.c.bf16 %v4282, %v4281
      %v4306 = vpack.c.bf16 %v4284, %v4283
      %v4307 = vpack.c.bf16 %v4286, %v4285
      %v4308 = vpack.c.bf16 %v4288, %v4287
      %v4309 = vpack.c.bf16 %v4290, %v4289
      %v4310 = vpack.c.bf16 %v4292, %v4291
      %v4311 = vld [vmem:[#allocation3 + $0x11a] sm:$0xff]
      %v4312 = vld [vmem:[#allocation3 + $0x122] sm:$0xff]
      %v4313 = vld [vmem:[#allocation3 + $0x12a] sm:$0x3f]
      %v4314 = vpack.c.bf16 %v4311, %v4291
      %v4315 = vpack.c.bf16 %v4313, %v4312
      %v4316 = vld [vmem:[#allocation3 + $0x13] sm:$0xff]
      %v4317 = vld [vmem:[#allocation3 + $0x1b] sm:$0xff]
      %v4318 = vld [vmem:[#allocation3 + $0x23] sm:$0xff]
      %v4319 = vld [vmem:[#allocation3 + $0x2b] sm:$0xff]
      %v4320 = vld [vmem:[#allocation3 + $0x33] sm:$0xff]
      %v4321 = vld [vmem:[#allocation3 + $0x3b] sm:$0xff]
      %v4322 = vld [vmem:[#allocation3 + $0x43] sm:$0xff]
      %v4323 = vld [vmem:[#allocation3 + $0x4b] sm:$0xff]
      %v4324 = vld [vmem:[#allocation3 + $0x53] sm:$0xff]
      %v4325 = vld [vmem:[#allocation3 + $0x5b] sm:$0xff]
      %v4326 = vld [vmem:[#allocation3 + $0x63] sm:$0xff]
      %v4327 = vld [vmem:[#allocation3 + $0x6b] sm:$0xff]
      %v4328 = vld [vmem:[#allocation3 + $0x73] sm:$0xff]
      %v4329 = vld [vmem:[#allocation3 + $0x7b] sm:$0xff]
      %v4330 = vld [vmem:[#allocation3 + $0x83] sm:$0xff]
      %v4331 = vld [vmem:[#allocation3 + $0x8b] sm:$0xff]
      %v4332 = vld [vmem:[#allocation3 + $0x93] sm:$0xff]
      %v4333 = vld [vmem:[#allocation3 + $0x9b] sm:$0xff]
      %v4334 = vld [vmem:[#allocation3 + $0xa3] sm:$0xff]
      %v4335 = vld [vmem:[#allocation3 + $0xab] sm:$0xff]
      %v4336 = vld [vmem:[#allocation3 + $0xb3] sm:$0xff]
      %v4337 = vld [vmem:[#allocation3 + $0xbb] sm:$0xff]
      %v4338 = vld [vmem:[#allocation3 + $0xc3] sm:$0xff]
      %v4339 = vld [vmem:[#allocation3 + $0xcb] sm:$0xff]
      %v4340 = vld [vmem:[#allocation3 + $0xd3] sm:$0xff]
      %v4341 = vld [vmem:[#allocation3 + $0xdb] sm:$0xff]
      %v4342 = vld [vmem:[#allocation3 + $0xe3] sm:$0xff]
      %v4343 = vld [vmem:[#allocation3 + $0xeb] sm:$0xff]
      %v4344 = vld [vmem:[#allocation3 + $0xf3] sm:$0xff]
      %v4345 = vld [vmem:[#allocation3 + $0xfb] sm:$0xff]
      %v4346 = vld [vmem:[#allocation3 + $0x103] sm:$0xff]
      %v4347 = vld [vmem:[#allocation3 + $0x10b] sm:$0xff]
      %v4348 = vld [vmem:[#allocation3 + $0x113] sm:$0xff]
      %v4349 = vld [vmem:[#allocation3 + $0x11b] sm:$0xff]
      %v4350 = vld [vmem:[#allocation3 + $0x123] sm:$0xff]
      %v4351 = vld [vmem:[#allocation3 + $0x12b] sm:$0x3f]
      %v4352 = vpack.c.bf16 %v4317, %v4316
      %v4353 = vpack.c.bf16 %v4319, %v4318
      %v4354 = vpack.c.bf16 %v4321, %v4320
      %v4355 = vpack.c.bf16 %v4323, %v4322
      %v4356 = vpack.c.bf16 %v4325, %v4324
      %v4357 = vpack.c.bf16 %v4327, %v4326
      %v4358 = vpack.c.bf16 %v4329, %v4328
      %v4359 = vpack.c.bf16 %v4331, %v4330
      %v4360 = vpack.c.bf16 %v4333, %v4332
      %v4361 = vpack.c.bf16 %v4335, %v4334
      %v4362 = vpack.c.bf16 %v4337, %v4336
      %v4363 = vpack.c.bf16 %v4339, %v4338
      %v4364 = vpack.c.bf16 %v4341, %v4340
      %v4365 = vpack.c.bf16 %v4343, %v4342
      %v4366 = vpack.c.bf16 %v4345, %v4344
      %v4367 = vpack.c.bf16 %v4347, %v4346
      %v4368 = vpack.c.bf16 %v4349, %v4348
      %v4369 = vpack.c.bf16 %v4351, %v4350
      %v4370 = vld [vmem:[#allocation3 + $0x14] sm:$0xff]
      %v4371 = vld [vmem:[#allocation3 + $0x1c] sm:$0xff]
      %v4372 = vld [vmem:[#allocation3 + $0x24] sm:$0xff]
      %v4373 = vld [vmem:[#allocation3 + $0x2c] sm:$0xff]
      %v4374 = vld [vmem:[#allocation3 + $0x34] sm:$0xff]
      %v4375 = vld [vmem:[#allocation3 + $0x3c] sm:$0xff]
      %v4376 = vld [vmem:[#allocation3 + $0x44] sm:$0xff]
      %v4377 = vld [vmem:[#allocation3 + $0x4c] sm:$0xff]
      %v4378 = vld [vmem:[#allocation3 + $0x54] sm:$0xff]
      %v4379 = vld [vmem:[#allocation3 + $0x5c] sm:$0xff]
      %v4380 = vld [vmem:[#allocation3 + $0x64] sm:$0xff]
      %v4381 = vld [vmem:[#allocation3 + $0x6c] sm:$0xff]
      %v4382 = vld [vmem:[#allocation3 + $0x74] sm:$0xff]
      %v4383 = vld [vmem:[#allocation3 + $0x7c] sm:$0xff]
      %v4384 = vld [vmem:[#allocation3 + $0x84] sm:$0xff]
      %v4385 = vld [vmem:[#allocation3 + $0x8c] sm:$0xff]
      %v4386 = vld [vmem:[#allocation3 + $0x94] sm:$0xff]
      %v4387 = vld [vmem:[#allocation3 + $0x9c] sm:$0xff]
      %v4388 = vld [vmem:[#allocation3 + $0xa4] sm:$0xff]
      %v4389 = vld [vmem:[#allocation3 + $0xac] sm:$0xff]
      %v4390 = vld [vmem:[#allocation3 + $0xb4] sm:$0xff]
      %v4391 = vld [vmem:[#allocation3 + $0xbc] sm:$0xff]
      %v4392 = vld [vmem:[#allocation3 + $0xc4] sm:$0xff]
      %v4393 = vld [vmem:[#allocation3 + $0xcc] sm:$0xff]
      %v4394 = vld [vmem:[#allocation3 + $0xd4] sm:$0xff]
      %v4395 = vld [vmem:[#allocation3 + $0xdc] sm:$0xff]
      %v4396 = vld [vmem:[#allocation3 + $0xe4] sm:$0xff]
      %v4397 = vld [vmem:[#allocation3 + $0xec] sm:$0xff]
      %v4398 = vld [vmem:[#allocation3 + $0xf4] sm:$0xff]
      %v4399 = vld [vmem:[#allocation3 + $0xfc] sm:$0xff]
      %v4400 = vld [vmem:[#allocation3 + $0x104] sm:$0xff]
      %v4401 = vld [vmem:[#allocation3 + $0x10c] sm:$0xff]
      %v4402 = vld [vmem:[#allocation3 + $0x114] sm:$0xff]
      %v4403 = vld [vmem:[#allocation3 + $0x11c] sm:$0xff]
      %v4404 = vld [vmem:[#allocation3 + $0x124] sm:$0xff]
      %v4405 = vld [vmem:[#allocation3 + $0x12c] sm:$0x3f]
      %v4406 = vpack.c.bf16 %v4371, %v4370
      %v4407 = vpack.c.bf16 %v4373, %v4372
      %v4408 = vpack.c.bf16 %v4375, %v4374
      %v4409 = vpack.c.bf16 %v4377, %v4376
      %v4410 = vpack.c.bf16 %v4379, %v4378
      %v4411 = vpack.c.bf16 %v4381, %v4380
      %v4412 = vpack.c.bf16 %v4383, %v4382
      %v4413 = vpack.c.bf16 %v4385, %v4384
      %v4414 = vpack.c.bf16 %v4387, %v4386
      %v4415 = vpack.c.bf16 %v4389, %v4388
      %v4416 = vpack.c.bf16 %v4391, %v4390
      %v4417 = vpack.c.bf16 %v4393, %v4392
      %v4418 = vpack.c.bf16 %v4395, %v4394
      %v4419 = vpack.c.bf16 %v4397, %v4396
      %v4420 = vpack.c.bf16 %v4399, %v4398
      %v4421 = vpack.c.bf16 %v4401, %v4400
      %v4422 = vpack.c.bf16 %v4403, %v4402
      %v4423 = vpack.c.bf16 %v4405, %v4404
      %v4424 = vld [vmem:[#allocation3 + $0x12c] sm:$0xff]
      %v4425 = vld [vmem:[#allocation3 + $0x134] sm:$0xff]
      %v4426 = vld [vmem:[#allocation3 + $0x13c] sm:$0x3f]
      %v4427 = vpack.c.bf16 %v4424, %v4404
      %v4428 = vpack.c.bf16 %v4426, %v4425
      %v4429 = vld [vmem:[#allocation3 + $0x25] sm:$0xff]
      %v4430 = vld [vmem:[#allocation3 + $0x2d] sm:$0xff]
      %v4431 = vld [vmem:[#allocation3 + $0x35] sm:$0xff]
      %v4432 = vld [vmem:[#allocation3 + $0x3d] sm:$0xff]
      %v4433 = vld [vmem:[#allocation3 + $0x45] sm:$0xff]
      %v4434 = vld [vmem:[#allocation3 + $0x4d] sm:$0xff]
      %v4435 = vld [vmem:[#allocation3 + $0x55] sm:$0xff]
      %v4436 = vld [vmem:[#allocation3 + $0x5d] sm:$0xff]
      %v4437 = vld [vmem:[#allocation3 + $0x65] sm:$0xff]
      %v4438 = vld [vmem:[#allocation3 + $0x6d] sm:$0xff]
      %v4439 = vld [vmem:[#allocation3 + $0x75] sm:$0xff]
      %v4440 = vld [vmem:[#allocation3 + $0x7d] sm:$0xff]
      %v4441 = vld [vmem:[#allocation3 + $0x85] sm:$0xff]
      %v4442 = vld [vmem:[#allocation3 + $0x8d] sm:$0xff]
      %v4443 = vld [vmem:[#allocation3 + $0x95] sm:$0xff]
      %v4444 = vld [vmem:[#allocation3 + $0x9d] sm:$0xff]
      %v4445 = vld [vmem:[#allocation3 + $0xa5] sm:$0xff]
      %v4446 = vld [vmem:[#allocation3 + $0xad] sm:$0xff]
      %v4447 = vld [vmem:[#allocation3 + $0xb5] sm:$0xff]
      %v4448 = vld [vmem:[#allocation3 + $0xbd] sm:$0xff]
      %v4449 = vld [vmem:[#allocation3 + $0xc5] sm:$0xff]
      %v4450 = vld [vmem:[#allocation3 + $0xcd] sm:$0xff]
      %v4451 = vld [vmem:[#allocation3 + $0xd5] sm:$0xff]
      %v4452 = vld [vmem:[#allocation3 + $0xdd] sm:$0xff]
      %v4453 = vld [vmem:[#allocation3 + $0xe5] sm:$0xff]
      %v4454 = vld [vmem:[#allocation3 + $0xed] sm:$0xff]
      %v4455 = vld [vmem:[#allocation3 + $0xf5] sm:$0xff]
      %v4456 = vld [vmem:[#allocation3 + $0xfd] sm:$0xff]
      %v4457 = vld [vmem:[#allocation3 + $0x105] sm:$0xff]
      %v4458 = vld [vmem:[#allocation3 + $0x10d] sm:$0xff]
      %v4459 = vld [vmem:[#allocation3 + $0x115] sm:$0xff]
      %v4460 = vld [vmem:[#allocation3 + $0x11d] sm:$0xff]
      %v4461 = vld [vmem:[#allocation3 + $0x125] sm:$0xff]
      %v4462 = vld [vmem:[#allocation3 + $0x12d] sm:$0xff]
      %v4463 = vld [vmem:[#allocation3 + $0x135] sm:$0xff]
      %v4464 = vld [vmem:[#allocation3 + $0x13d] sm:$0x3f]
      %v4465 = vpack.c.bf16 %v4430, %v4429
      %v4466 = vpack.c.bf16 %v4432, %v4431
      %v4467 = vpack.c.bf16 %v4434, %v4433
      %v4468 = vpack.c.bf16 %v4436, %v4435
      %v4469 = vpack.c.bf16 %v4438, %v4437
      %v4470 = vpack.c.bf16 %v4440, %v4439
      %v4471 = vpack.c.bf16 %v4442, %v4441
      %v4472 = vpack.c.bf16 %v4444, %v4443
      %v4473 = vpack.c.bf16 %v4446, %v4445
      %v4474 = vpack.c.bf16 %v4448, %v4447
      %v4475 = vpack.c.bf16 %v4450, %v4449
      %v4476 = vpack.c.bf16 %v4452, %v4451
      %v4477 = vpack.c.bf16 %v4454, %v4453
      %v4478 = vpack.c.bf16 %v4456, %v4455
      %v4479 = vpack.c.bf16 %v4458, %v4457
      %v4480 = vpack.c.bf16 %v4460, %v4459
      %v4481 = vpack.c.bf16 %v4462, %v4461
      %v4482 = vpack.c.bf16 %v4464, %v4463
      %v4483 = vld [vmem:[#allocation3 + $0x26] sm:$0xff]
      %v4484 = vld [vmem:[#allocation3 + $0x2e] sm:$0xff]
      %v4485 = vld [vmem:[#allocation3 + $0x36] sm:$0xff]
      %v4486 = vld [vmem:[#allocation3 + $0x3e] sm:$0xff]
      %v4487 = vld [vmem:[#allocation3 + $0x46] sm:$0xff]
      %v4488 = vld [vmem:[#allocation3 + $0x4e] sm:$0xff]
      %v4489 = vld [vmem:[#allocation3 + $0x56] sm:$0xff]
      %v4490 = vld [vmem:[#allocation3 + $0x5e] sm:$0xff]
      %v4491 = vld [vmem:[#allocation3 + $0x66] sm:$0xff]
      %v4492 = vld [vmem:[#allocation3 + $0x6e] sm:$0xff]
      %v4493 = vld [vmem:[#allocation3 + $0x76] sm:$0xff]
      %v4494 = vld [vmem:[#allocation3 + $0x7e] sm:$0xff]
      %v4495 = vld [vmem:[#allocation3 + $0x86] sm:$0xff]
      %v4496 = vld [vmem:[#allocation3 + $0x8e] sm:$0xff]
      %v4497 = vld [vmem:[#allocation3 + $0x96] sm:$0xff]
      %v4498 = vld [vmem:[#allocation3 + $0x9e] sm:$0xff]
      %v4499 = vld [vmem:[#allocation3 + $0xa6] sm:$0xff]
      %v4500 = vld [vmem:[#allocation3 + $0xae] sm:$0xff]
      %v4501 = vld [vmem:[#allocation3 + $0xb6] sm:$0xff]
      %v4502 = vld [vmem:[#allocation3 + $0xbe] sm:$0xff]
      %v4503 = vld [vmem:[#allocation3 + $0xc6] sm:$0xff]
      %v4504 = vld [vmem:[#allocation3 + $0xce] sm:$0xff]
      %v4505 = vld [vmem:[#allocation3 + $0xd6] sm:$0xff]
      %v4506 = vld [vmem:[#allocation3 + $0xde] sm:$0xff]
      %v4507 = vld [vmem:[#allocation3 + $0xe6] sm:$0xff]
      %v4508 = vld [vmem:[#allocation3 + $0xee] sm:$0xff]
      %v4509 = vld [vmem:[#allocation3 + $0xf6] sm:$0xff]
      %v4510 = vld [vmem:[#allocation3 + $0xfe] sm:$0xff]
      %v4511 = vld [vmem:[#allocation3 + $0x106] sm:$0xff]
      %v4512 = vld [vmem:[#allocation3 + $0x10e] sm:$0xff]
      %v4513 = vld [vmem:[#allocation3 + $0x116] sm:$0xff]
      %v4514 = vld [vmem:[#allocation3 + $0x11e] sm:$0xff]
      %v4515 = vld [vmem:[#allocation3 + $0x126] sm:$0xff]
      %v4516 = vld [vmem:[#allocation3 + $0x12e] sm:$0xff]
      %v4517 = vld [vmem:[#allocation3 + $0x136] sm:$0xff]
      %v4518 = vld [vmem:[#allocation3 + $0x13e] sm:$0x3f]
      %v4519 = vpack.c.bf16 %v4484, %v4483
      %v4520 = vpack.c.bf16 %v4486, %v4485
      %v4521 = vpack.c.bf16 %v4488, %v4487
      %v4522 = vpack.c.bf16 %v4490, %v4489
      %v4523 = vpack.c.bf16 %v4492, %v4491
      %v4524 = vpack.c.bf16 %v4494, %v4493
      %v4525 = vpack.c.bf16 %v4496, %v4495
      %v4526 = vpack.c.bf16 %v4498, %v4497
      %v4527 = vpack.c.bf16 %v4500, %v4499
      %v4528 = vpack.c.bf16 %v4502, %v4501
      %v4529 = vpack.c.bf16 %v4504, %v4503
      %v4530 = vpack.c.bf16 %v4506, %v4505
      %v4531 = vpack.c.bf16 %v4508, %v4507
      %v4532 = vpack.c.bf16 %v4510, %v4509
      %v4533 = vpack.c.bf16 %v4512, %v4511
      %v4534 = vpack.c.bf16 %v4514, %v4513
      %v4535 = vpack.c.bf16 %v4516, %v4515
      %v4536 = vpack.c.bf16 %v4518, %v4517
      %4555 = vrot.lane.b32.xlu0 %v4239, 16
      %v4556 = vpop.permute.xlu0 %4555
      %4557 = vrot.lane.b32.xlu0 %v4240, 16
      %v4558 = vpop.permute.xlu0 %4557
      %4559 = vrot.lane.b32.xlu0 %v4241, 16
      %v4560 = vpop.permute.xlu0 %4559
      %4561 = vrot.lane.b32.xlu0 %v4242, 16
      %v4562 = vpop.permute.xlu0 %4561
      %4563 = vrot.lane.b32.xlu0 %v4243, 16
      %v4564 = vpop.permute.xlu0 %4563
      %4565 = vrot.lane.b32.xlu0 %v4244, 16
      %v4566 = vpop.permute.xlu0 %4565
      %4567 = vrot.lane.b32.xlu0 %v4245, 16
      %v4568 = vpop.permute.xlu0 %4567
      %4569 = vrot.lane.b32.xlu0 %v4246, 16
      %v4570 = vpop.permute.xlu0 %4569
      %4571 = vrot.lane.b32.xlu0 %v4247, 16
      %v4572 = vpop.permute.xlu0 %4571
      %4573 = vrot.lane.b32.xlu0 %v4248, 16
      %v4574 = vpop.permute.xlu0 %4573
      %4575 = vrot.lane.b32.xlu0 %v4249, 16
      %v4576 = vpop.permute.xlu0 %4575
      %4577 = vrot.lane.b32.xlu0 %v4250, 16
      %v4578 = vpop.permute.xlu0 %4577
      %4579 = vrot.lane.b32.xlu0 %v4251, 16
      %v4580 = vpop.permute.xlu0 %4579
      %4581 = vrot.lane.b32.xlu0 %v4252, 16
      %v4582 = vpop.permute.xlu0 %4581
      %4583 = vrot.lane.b32.xlu0 %v4253, 16
      %v4584 = vpop.permute.xlu0 %4583
      %4585 = vrot.lane.b32.xlu0 %v4254, 16
      %v4586 = vpop.permute.xlu0 %4585
      %4587 = vrot.lane.b32.xlu0 %v4255, 16
      %v4588 = vpop.permute.xlu0 %4587
      %4589 = vrot.lane.b32.xlu0 %v4256, 16
      %v4590 = vpop.permute.xlu0 %4589
      %4609 = vrot.lane.b32.xlu0 %v4293, 32
      %v4610 = vpop.permute.xlu0 %4609
      %4611 = vrot.lane.b32.xlu0 %v4294, 32
      %v4612 = vpop.permute.xlu0 %4611
      %4613 = vrot.lane.b32.xlu0 %v4295, 32
      %v4614 = vpop.permute.xlu0 %4613
      %4615 = vrot.lane.b32.xlu0 %v4296, 32
      %v4616 = vpop.permute.xlu0 %4615
      %4617 = vrot.lane.b32.xlu0 %v4297, 32
      %v4618 = vpop.permute.xlu0 %4617
      %4619 = vrot.lane.b32.xlu0 %v4298, 32
      %v4620 = vpop.permute.xlu0 %4619
      %4621 = vrot.lane.b32.xlu0 %v4299, 32
      %v4622 = vpop.permute.xlu0 %4621
      %4623 = vrot.lane.b32.xlu0 %v4300, 32
      %v4624 = vpop.permute.xlu0 %4623
      %4625 = vrot.lane.b32.xlu0 %v4301, 32
      %v4626 = vpop.permute.xlu0 %4625
      %4627 = vrot.lane.b32.xlu0 %v4302, 32
      %v4628 = vpop.permute.xlu0 %4627
      %4629 = vrot.lane.b32.xlu0 %v4303, 32
      %v4630 = vpop.permute.xlu0 %4629
      %4631 = vrot.lane.b32.xlu0 %v4304, 32
      %v4632 = vpop.permute.xlu0 %4631
      %4633 = vrot.lane.b32.xlu0 %v4305, 32
      %v4634 = vpop.permute.xlu0 %4633
      %4635 = vrot.lane.b32.xlu0 %v4306, 32
      %v4636 = vpop.permute.xlu0 %4635
      %4637 = vrot.lane.b32.xlu0 %v4307, 32
      %v4638 = vpop.permute.xlu0 %4637
      %4639 = vrot.lane.b32.xlu0 %v4308, 32
      %v4640 = vpop.permute.xlu0 %4639
      %4641 = vrot.lane.b32.xlu0 %v4309, 32
      %v4642 = vpop.permute.xlu0 %4641
      %4643 = vrot.lane.b32.xlu0 %v4310, 32
      %v4644 = vpop.permute.xlu0 %4643
      %4647 = vrot.lane.b32.xlu0 %v4294, 48
      %v4648 = vpop.permute.xlu0 %4647
      %4649 = vrot.lane.b32.xlu0 %v4295, 48
      %v4650 = vpop.permute.xlu0 %4649
      %4651 = vrot.lane.b32.xlu0 %v4296, 48
      %v4652 = vpop.permute.xlu0 %4651
      %4653 = vrot.lane.b32.xlu0 %v4297, 48
      %v4654 = vpop.permute.xlu0 %4653
      %4655 = vrot.lane.b32.xlu0 %v4298, 48
      %v4656 = vpop.permute.xlu0 %4655
      %4657 = vrot.lane.b32.xlu0 %v4299, 48
      %v4658 = vpop.permute.xlu0 %4657
      %4659 = vrot.lane.b32.xlu0 %v4300, 48
      %v4660 = vpop.permute.xlu0 %4659
      %4661 = vrot.lane.b32.xlu0 %v4301, 48
      %v4662 = vpop.permute.xlu0 %4661
      %4663 = vrot.lane.b32.xlu0 %v4302, 48
      %v4664 = vpop.permute.xlu0 %4663
      %4665 = vrot.lane.b32.xlu0 %v4303, 48
      %v4666 = vpop.permute.xlu0 %4665
      %4667 = vrot.lane.b32.xlu0 %v4304, 48
      %v4668 = vpop.permute.xlu0 %4667
      %4669 = vrot.lane.b32.xlu0 %v4305, 48
      %v4670 = vpop.permute.xlu0 %4669
      %4671 = vrot.lane.b32.xlu0 %v4306, 48
      %v4672 = vpop.permute.xlu0 %4671
      %4673 = vrot.lane.b32.xlu0 %v4307, 48
      %v4674 = vpop.permute.xlu0 %4673
      %4675 = vrot.lane.b32.xlu0 %v4308, 48
      %v4676 = vpop.permute.xlu0 %4675
      %4677 = vrot.lane.b32.xlu0 %v4309, 48
      %v4678 = vpop.permute.xlu0 %4677
      %4679 = vrot.lane.b32.xlu0 %v4314, 48
      %v4680 = vpop.permute.xlu0 %4679
      %4681 = vrot.lane.b32.xlu0 %v4315, 48
      %v4682 = vpop.permute.xlu0 %4681
      %4701 = vrot.lane.b32.xlu0 %v4352, 64
      %v4702 = vpop.permute.xlu0 %4701
      %4703 = vrot.lane.b32.xlu0 %v4353, 64
      %v4704 = vpop.permute.xlu0 %4703
      %4705 = vrot.lane.b32.xlu0 %v4354, 64
      %v4706 = vpop.permute.xlu0 %4705
      %4707 = vrot.lane.b32.xlu0 %v4355, 64
      %v4708 = vpop.permute.xlu0 %4707
      %4709 = vrot.lane.b32.xlu0 %v4356, 64
      %v4710 = vpop.permute.xlu0 %4709
      %4711 = vrot.lane.b32.xlu0 %v4357, 64
      %v4712 = vpop.permute.xlu0 %4711
      %4713 = vrot.lane.b32.xlu0 %v4358, 64
      %v4714 = vpop.permute.xlu0 %4713
      %4715 = vrot.lane.b32.xlu0 %v4359, 64
      %v4716 = vpop.permute.xlu0 %4715
      %4717 = vrot.lane.b32.xlu0 %v4360, 64
      %v4718 = vpop.permute.xlu0 %4717
      %4719 = vrot.lane.b32.xlu0 %v4361, 64
      %v4720 = vpop.permute.xlu0 %4719
      %4721 = vrot.lane.b32.xlu0 %v4362, 64
      %v4722 = vpop.permute.xlu0 %4721
      %4723 = vrot.lane.b32.xlu0 %v4363, 64
      %v4724 = vpop.permute.xlu0 %4723
      %4725 = vrot.lane.b32.xlu0 %v4364, 64
      %v4726 = vpop.permute.xlu0 %4725
      %4727 = vrot.lane.b32.xlu0 %v4365, 64
      %v4728 = vpop.permute.xlu0 %4727
      %4729 = vrot.lane.b32.xlu0 %v4366, 64
      %v4730 = vpop.permute.xlu0 %4729
      %4731 = vrot.lane.b32.xlu0 %v4367, 64
      %v4732 = vpop.permute.xlu0 %4731
      %4733 = vrot.lane.b32.xlu0 %v4368, 64
      %v4734 = vpop.permute.xlu0 %4733
      %4735 = vrot.lane.b32.xlu0 %v4369, 64
      %v4736 = vpop.permute.xlu0 %4735
      %4755 = vrot.lane.b32.xlu0 %v4406, 80
      %v4756 = vpop.permute.xlu0 %4755
      %4757 = vrot.lane.b32.xlu0 %v4407, 80
      %v4758 = vpop.permute.xlu0 %4757
      %4759 = vrot.lane.b32.xlu0 %v4408, 80
      %v4760 = vpop.permute.xlu0 %4759
      %4761 = vrot.lane.b32.xlu0 %v4409, 80
      %v4762 = vpop.permute.xlu0 %4761
      %4763 = vrot.lane.b32.xlu0 %v4410, 80
      %v4764 = vpop.permute.xlu0 %4763
      %4765 = vrot.lane.b32.xlu0 %v4411, 80
      %v4766 = vpop.permute.xlu0 %4765
      %4767 = vrot.lane.b32.xlu0 %v4412, 80
      %v4768 = vpop.permute.xlu0 %4767
      %4769 = vrot.lane.b32.xlu0 %v4413, 80
      %v4770 = vpop.permute.xlu0 %4769
      %4771 = vrot.lane.b32.xlu0 %v4414, 80
      %v4772 = vpop.permute.xlu0 %4771
      %4773 = vrot.lane.b32.xlu0 %v4415, 80
      %v4774 = vpop.permute.xlu0 %4773
      %4775 = vrot.lane.b32.xlu0 %v4416, 80
      %v4776 = vpop.permute.xlu0 %4775
      %4777 = vrot.lane.b32.xlu0 %v4417, 80
      %v4778 = vpop.permute.xlu0 %4777
      %4779 = vrot.lane.b32.xlu0 %v4418, 80
      %v4780 = vpop.permute.xlu0 %4779
      %4781 = vrot.lane.b32.xlu0 %v4419, 80
      %v4782 = vpop.permute.xlu0 %4781
      %4783 = vrot.lane.b32.xlu0 %v4420, 80
      %v4784 = vpop.permute.xlu0 %4783
      %4785 = vrot.lane.b32.xlu0 %v4421, 80
      %v4786 = vpop.permute.xlu0 %4785
      %4787 = vrot.lane.b32.xlu0 %v4422, 80
      %v4788 = vpop.permute.xlu0 %4787
      %4789 = vrot.lane.b32.xlu0 %v4423, 80
      %v4790 = vpop.permute.xlu0 %4789
      %4793 = vrot.lane.b32.xlu0 %v4407, 96
      %v4794 = vpop.permute.xlu0 %4793
      %4795 = vrot.lane.b32.xlu0 %v4408, 96
      %v4796 = vpop.permute.xlu0 %4795
      %4797 = vrot.lane.b32.xlu0 %v4409, 96
      %v4798 = vpop.permute.xlu0 %4797
      %4799 = vrot.lane.b32.xlu0 %v4410, 96
      %v4800 = vpop.permute.xlu0 %4799
      %4801 = vrot.lane.b32.xlu0 %v4411, 96
      %v4802 = vpop.permute.xlu0 %4801
      %4803 = vrot.lane.b32.xlu0 %v4412, 96
      %v4804 = vpop.permute.xlu0 %4803
      %4805 = vrot.lane.b32.xlu0 %v4413, 96
      %v4806 = vpop.permute.xlu0 %4805
      %4807 = vrot.lane.b32.xlu0 %v4414, 96
      %v4808 = vpop.permute.xlu0 %4807
      %4809 = vrot.lane.b32.xlu0 %v4415, 96
      %v4810 = vpop.permute.xlu0 %4809
      %4811 = vrot.lane.b32.xlu0 %v4416, 96
      %v4812 = vpop.permute.xlu0 %4811
      %4813 = vrot.lane.b32.xlu0 %v4417, 96
      %v4814 = vpop.permute.xlu0 %4813
      %4815 = vrot.lane.b32.xlu0 %v4418, 96
      %v4816 = vpop.permute.xlu0 %4815
      %4817 = vrot.lane.b32.xlu0 %v4419, 96
      %v4818 = vpop.permute.xlu0 %4817
      %4819 = vrot.lane.b32.xlu0 %v4420, 96
      %v4820 = vpop.permute.xlu0 %4819
      %4821 = vrot.lane.b32.xlu0 %v4421, 96
      %v4822 = vpop.permute.xlu0 %4821
      %4823 = vrot.lane.b32.xlu0 %v4422, 96
      %v4824 = vpop.permute.xlu0 %4823
      %4825 = vrot.lane.b32.xlu0 %v4427, 96
      %v4826 = vpop.permute.xlu0 %4825
      %4827 = vrot.lane.b32.xlu0 %v4428, 96
      %v4828 = vpop.permute.xlu0 %4827
      %4847 = vrot.lane.b32.xlu0 %v4465, 112
      %v4848 = vpop.permute.xlu0 %4847
      %4849 = vrot.lane.b32.xlu0 %v4466, 112
      %v4850 = vpop.permute.xlu0 %4849
      %4851 = vrot.lane.b32.xlu0 %v4467, 112
      %v4852 = vpop.permute.xlu0 %4851
      %4853 = vrot.lane.b32.xlu0 %v4468, 112
      %v4854 = vpop.permute.xlu0 %4853
      %4855 = vrot.lane.b32.xlu0 %v4469, 112
      %v4856 = vpop.permute.xlu0 %4855
      %4857 = vrot.lane.b32.xlu0 %v4470, 112
      %v4858 = vpop.permute.xlu0 %4857
      %4859 = vrot.lane.b32.xlu0 %v4471, 112
      %v4860 = vpop.permute.xlu0 %4859
      %4861 = vrot.lane.b32.xlu0 %v4472, 112
      %v4862 = vpop.permute.xlu0 %4861
      %4863 = vrot.lane.b32.xlu0 %v4473, 112
      %v4864 = vpop.permute.xlu0 %4863
      %4865 = vrot.lane.b32.xlu0 %v4474, 112
      %v4866 = vpop.permute.xlu0 %4865
      %4867 = vrot.lane.b32.xlu0 %v4475, 112
      %v4868 = vpop.permute.xlu0 %4867
      %4869 = vrot.lane.b32.xlu0 %v4476, 112
      %v4870 = vpop.permute.xlu0 %4869
      %4871 = vrot.lane.b32.xlu0 %v4477, 112
      %v4872 = vpop.permute.xlu0 %4871
      %4873 = vrot.lane.b32.xlu0 %v4478, 112
      %v4874 = vpop.permute.xlu0 %4873
      %4875 = vrot.lane.b32.xlu0 %v4479, 112
      %v4876 = vpop.permute.xlu0 %4875
      %4877 = vrot.lane.b32.xlu0 %v4480, 112
      %v4878 = vpop.permute.xlu0 %4877
      %4879 = vrot.lane.b32.xlu0 %v4481, 112
      %v4880 = vpop.permute.xlu0 %4879
      %4881 = vrot.lane.b32.xlu0 %v4482, 112
      %v4882 = vpop.permute.xlu0 %4881
      %v4885 = vsel %vm280, %v4185, %v4556
      %v4888 = vsel %vm280, %v4186, %v4558
      %v4891 = vsel %vm280, %v4187, %v4560
      %v4894 = vsel %vm280, %v4188, %v4562
      %v4897 = vsel %vm280, %v4189, %v4564
      %v4900 = vsel %vm280, %v4190, %v4566
      %v4903 = vsel %vm280, %v4191, %v4568
      %v4906 = vsel %vm280, %v4192, %v4570
      %v4909 = vsel %vm280, %v4193, %v4572
      %v4912 = vsel %vm280, %v4194, %v4574
      %v4915 = vsel %vm280, %v4195, %v4576
      %v4918 = vsel %vm280, %v4196, %v4578
      %v4921 = vsel %vm280, %v4197, %v4580
      %v4924 = vsel %vm280, %v4198, %v4582
      %v4927 = vsel %vm280, %v4199, %v4584
      %v4930 = vsel %vm280, %v4200, %v4586
      %v4933 = vsel %vm280, %v4201, %v4588
      %v4936 = vsel %vm280, %v4202, %v4590
      %v4938 = vsel %vm2218, %v4885, %v4610
      %v4940 = vsel %vm2218, %v4888, %v4612
      %v4942 = vsel %vm2218, %v4891, %v4614
      %v4944 = vsel %vm2218, %v4894, %v4616
      %v4946 = vsel %vm2218, %v4897, %v4618
      %v4948 = vsel %vm2218, %v4900, %v4620
      %v4950 = vsel %vm2218, %v4903, %v4622
      %v4952 = vsel %vm2218, %v4906, %v4624
      %v4954 = vsel %vm2218, %v4909, %v4626
      %v4956 = vsel %vm2218, %v4912, %v4628
      %v4958 = vsel %vm2218, %v4915, %v4630
      %v4960 = vsel %vm2218, %v4918, %v4632
      %v4962 = vsel %vm2218, %v4921, %v4634
      %v4964 = vsel %vm2218, %v4924, %v4636
      %v4966 = vsel %vm2218, %v4927, %v4638
      %v4968 = vsel %vm2218, %v4930, %v4640
      %v4970 = vsel %vm2218, %v4933, %v4642
      %v4972 = vsel %vm2218, %v4936, %v4644
      %v4974 = vsel %vm3668, %v4938, %v4648
      %v4976 = vsel %vm3668, %v4940, %v4650
      %v4978 = vsel %vm3668, %v4942, %v4652
      %v4980 = vsel %vm3668, %v4944, %v4654
      %v4982 = vsel %vm3668, %v4946, %v4656
      %v4984 = vsel %vm3668, %v4948, %v4658
      %v4986 = vsel %vm3668, %v4950, %v4660
      %v4988 = vsel %vm3668, %v4952, %v4662
      %v4990 = vsel %vm3668, %v4954, %v4664
      %v4992 = vsel %vm3668, %v4956, %v4666
      %v4994 = vsel %vm3668, %v4958, %v4668
      %v4996 = vsel %vm3668, %v4960, %v4670
      %v4998 = vsel %vm3668, %v4962, %v4672
      %v5000 = vsel %vm3668, %v4964, %v4674
      %v5002 = vsel %vm3668, %v4966, %v4676
      %v5004 = vsel %vm3668, %v4968, %v4678
      %v5006 = vsel %vm3668, %v4970, %v4680
      %v5008 = vsel %vm3668, %v4972, %v4682
      %v5010 = vsel %vm3742, %v4974, %v4702
      %v5012 = vsel %vm3742, %v4976, %v4704
      %v5014 = vsel %vm3742, %v4978, %v4706
      %v5016 = vsel %vm3742, %v4980, %v4708
      %v5018 = vsel %vm3742, %v4982, %v4710
      %v5020 = vsel %vm3742, %v4984, %v4712
      %v5022 = vsel %vm3742, %v4986, %v4714
      %v5024 = vsel %vm3742, %v4988, %v4716
      %v5026 = vsel %vm3742, %v4990, %v4718
      %v5028 = vsel %vm3742, %v4992, %v4720
      %v5030 = vsel %vm3742, %v4994, %v4722
      %v5032 = vsel %vm3742, %v4996, %v4724
      %v5034 = vsel %vm3742, %v4998, %v4726
      %v5036 = vsel %vm3742, %v5000, %v4728
      %v5038 = vsel %vm3742, %v5002, %v4730
      %v5040 = vsel %vm3742, %v5004, %v4732
      %v5042 = vsel %vm3742, %v5006, %v4734
      %v5044 = vsel %vm3742, %v5008, %v4736
      %vm5045 = vcmask 654336
      %v5047 = vsel %vm5045, %v5010, %v4756
      %v5049 = vsel %vm5045, %v5012, %v4758
      %v5051 = vsel %vm5045, %v5014, %v4760
      %v5053 = vsel %vm5045, %v5016, %v4762
      %v5055 = vsel %vm5045, %v5018, %v4764
      %v5057 = vsel %vm5045, %v5020, %v4766
      %v5059 = vsel %vm5045, %v5022, %v4768
      %v5061 = vsel %vm5045, %v5024, %v4770
      %v5063 = vsel %vm5045, %v5026, %v4772
      %v5065 = vsel %vm5045, %v5028, %v4774
      %v5067 = vsel %vm5045, %v5030, %v4776
      %v5069 = vsel %vm5045, %v5032, %v4778
      %v5071 = vsel %vm5045, %v5034, %v4780
      %v5073 = vsel %vm5045, %v5036, %v4782
      %v5075 = vsel %vm5045, %v5038, %v4784
      %v5077 = vsel %vm5045, %v5040, %v4786
      %v5079 = vsel %vm5045, %v5042, %v4788
      %v5081 = vsel %vm5045, %v5044, %v4790
      %vm5082 = vcmask 785408
      %v5084 = vsel %vm5082, %v5047, %v4794
      %v5086 = vsel %vm5082, %v5049, %v4796
      %v5088 = vsel %vm5082, %v5051, %v4798
      %v5090 = vsel %vm5082, %v5053, %v4800
      %v5092 = vsel %vm5082, %v5055, %v4802
      %v5094 = vsel %vm5082, %v5057, %v4804
      %v5096 = vsel %vm5082, %v5059, %v4806
      %v5098 = vsel %vm5082, %v5061, %v4808
      %v5100 = vsel %vm5082, %v5063, %v4810
      %v5102 = vsel %vm5082, %v5065, %v4812
      %v5104 = vsel %vm5082, %v5067, %v4814
      %v5106 = vsel %vm5082, %v5069, %v4816
      %v5108 = vsel %vm5082, %v5071, %v4818
      %v5110 = vsel %vm5082, %v5073, %v4820
      %v5112 = vsel %vm5082, %v5075, %v4822
      %v5114 = vsel %vm5082, %v5077, %v4824
      %v5116 = vsel %vm5082, %v5079, %v4826
      %v5118 = vsel %vm5082, %v5081, %v4828
      %vm5119 = vcmask 916480
      %v5121 = vsel %vm5119, %v5084, %v4848
      %v5124 = vsel %vm5119, %v5086, %v4850
      %v5127 = vsel %vm5119, %v5088, %v4852
      %v5130 = vsel %vm5119, %v5090, %v4854
      %v5133 = vsel %vm5119, %v5092, %v4856
      %v5136 = vsel %vm5119, %v5094, %v4858
      %v5139 = vsel %vm5119, %v5096, %v4860
      %v5142 = vsel %vm5119, %v5098, %v4862
      %v5145 = vsel %vm5119, %v5100, %v4864
      %v5148 = vsel %vm5119, %v5102, %v4866
      %v5151 = vsel %vm5119, %v5104, %v4868
      %v5154 = vsel %vm5119, %v5106, %v4870
      %v5157 = vsel %vm5119, %v5108, %v4872
      %v5160 = vsel %vm5119, %v5110, %v4874
      %v5163 = vsel %vm5119, %v5112, %v4876
      %v5166 = vsel %vm5119, %v5114, %v4878
      %v5169 = vsel %vm5119, %v5116, %v4880
      %v5172 = vsel %vm5119, %v5118, %v4882
      %v5174 = vld [vmem:[%s5] sm:$0xf]
      %v5175 = vld [vmem:[%s5 + $0x4] sm:$0xf]
      %v5176 = vld [vmem:[%s5 + $0x8] sm:$0xf]
      %v5177 = vld [vmem:[%s5 + $0xc] sm:$0xf]
      %v5178 = vld [vmem:[%s5 + $0x10] sm:$0xf]
      %v5179 = vld [vmem:[%s5 + $0x14] sm:$0xf]
      %v5180 = vld [vmem:[%s5 + $0x18] sm:$0xf]
      %v5181 = vld [vmem:[%s5 + $0x1c] sm:$0xf]
      %v5182 = vld [vmem:[%s5 + $0x20] sm:$0xf]
      %v5183 = vld [vmem:[%s5 + $0x24] sm:$0xf]
      %v5184 = vld [vmem:[%s5 + $0x28] sm:$0xf]
      %v5185 = vld [vmem:[%s5 + $0x2c] sm:$0xf]
      %v5186 = vld [vmem:[%s5 + $0x30] sm:$0xf]
      %v5187 = vld [vmem:[%s5 + $0x34] sm:$0xf]
      %v5188 = vld [vmem:[%s5 + $0x38] sm:$0xf]
      %v5189 = vld [vmem:[%s5 + $0x3c] sm:$0xf]
      %v5190 = vld [vmem:[%s5 + $0x40] sm:$0xf]
      %v5191 = vld [vmem:[%s5 + $0x44] sm:$0xf]
      %v5192 = vld [vmem:[%s6] sm:$0x1]
      %v5194 = vlaneseq
      %v5195 = vshrl.u32 %v5194, 7
      %v5196 = vsub.s32 0, %v5195
      %v5197 = vrot.slane %v5192, %v5196
      %v5217 = vunpack.c.l.b16 %v5174
      %v5218 = vunpack.c.l.b16 %v5175
      %v5219 = vunpack.c.l.b16 %v5176
      %v5220 = vunpack.c.l.b16 %v5177
      %v5221 = vunpack.c.l.b16 %v5178
      %v5222 = vunpack.c.l.b16 %v5179
      %v5223 = vunpack.c.l.b16 %v5180
      %v5224 = vunpack.c.l.b16 %v5181
      %v5225 = vunpack.c.l.b16 %v5182
      %v5226 = vunpack.c.l.b16 %v5183
      %v5227 = vunpack.c.l.b16 %v5184
      %v5228 = vunpack.c.l.b16 %v5185
      %v5229 = vunpack.c.l.b16 %v5186
      %v5230 = vunpack.c.l.b16 %v5187
      %v5231 = vunpack.c.l.b16 %v5188
      %v5232 = vunpack.c.l.b16 %v5189
      %v5233 = vunpack.c.l.b16 %v5190
      %v5234 = vunpack.c.l.b16 %v5191
      %v5235 = vpack.c.b16 %v5218, %v5217
      %v5236 = vpack.c.b16 %v5220, %v5219
      %v5237 = vpack.c.b16 %v5222, %v5221
      %v5238 = vpack.c.b16 %v5224, %v5223
      %v5239 = vpack.c.b16 %v5226, %v5225
      %v5240 = vpack.c.b16 %v5228, %v5227
      %v5241 = vpack.c.b16 %v5230, %v5229
      %v5242 = vpack.c.b16 %v5232, %v5231
      %v5243 = vpack.c.b16 %v5234, %v5233
      %v5254 = vsel %vm280, %v4519, 0
      %v5257 = vsel %vm280, %v4520, 0
      %v5260 = vsel %vm280, %v4521, 0
      %v5263 = vsel %vm280, %v4522, 0
      %v5266 = vsel %vm280, %v4523, 0
      %v5269 = vsel %vm280, %v4524, 0
      %v5272 = vsel %vm280, %v4525, 0
      %v5275 = vsel %vm280, %v4526, 0
      %v5278 = vsel %vm280, %v4527, 0
      %v5281 = vsel %vm280, %v4528, 0
      %v5284 = vsel %vm280, %v4529, 0
      %v5287 = vsel %vm280, %v4530, 0
      %v5290 = vsel %vm280, %v4531, 0
      %v5293 = vsel %vm280, %v4532, 0
      %v5296 = vsel %vm280, %v4533, 0
      %v5299 = vsel %vm280, %v4534, 0
      %v5302 = vsel %vm280, %v4535, 0
      %v5305 = vsel %vm280, %v4536, 0
      %5307 = vmatprep.subr.bf16.mxu0 0
      %5308 = vmatpush1.bf16.msra.mxu0 %v5235
      %5309 = vmatprep.subr.bf16.mxu0 0
      %5310 = vmatpush1.bf16.msra.mxu0 %v5236
      %5311 = vmatprep.subr.bf16.mxu0 0
      %5312 = vmatpush1.bf16.msra.mxu0 %v5237
      %5313 = vmatprep.subr.bf16.mxu0 0
      %5314 = vmatpush1.bf16.msra.mxu0 %v5238
      %5315 = vmatprep.subr.bf16.mxu0 0
      %5316 = vmatpush1.bf16.msra.mxu0 %v5239
      %5317 = vmatprep.subr.bf16.mxu0 0
      %5318 = vmatpush1.bf16.msra.mxu0 %v5240
      %5319 = vmatprep.subr.bf16.mxu0 0
      %5320 = vmatpush1.bf16.msra.mxu0 %v5241
      %5321 = vmatprep.subr.bf16.mxu0 0
      %5322 = vmatpush1.bf16.msra.mxu0 %v5242
      %5323 = vmatprep.subr.bf16.mxu0 0
      %5324 = vmatpush1.bf16.msra.mxu0 %v5243
      %5325 = vmatprep.subr.bf16.mxu0 0
      %5326 = vmatpush1.bf16.msra.mxu0 0
      %5327 = vmatprep.subr.bf16.mxu0 0
      %5328 = vmatpush1.bf16.msra.mxu0 0
      %5329 = vmatprep.subr.bf16.mxu0 0
      %5330 = vmatpush1.bf16.msra.mxu0 0
      %5331 = vmatprep.subr.bf16.mxu0 0
      %5332 = vmatpush1.bf16.msra.mxu0 0
      %5333 = vmatprep.subr.bf16.mxu0 0
      %5334 = vmatpush1.bf16.msra.mxu0 0
      %5335 = vmatprep.subr.bf16.mxu0 0
      %5336 = vmatpush1.bf16.msra.mxu0 0
      %5337 = vmatprep.subr.bf16.mxu0 0
      %5338 = vmatpush1.bf16.msra.mxu0 0
      %5339 = vmatprep.mubr.bf16.mxu0 %v5254
      %5340 = vmatmul.mubr.bf16.gmra.mrb[0].mxu0 %v5121
      %v5341 = vpop.f32.mrb[0].mxu0
      %v5342 = vadd.f32 %v5197, %v5341
      %v5343 = vpop.f32.mrb[0].mxu0
      %v5344 = vpop.f32.mrb[0].mxu0
      %v5345 = vadd.f32 %v5197, %v5344
      %v5346 = vpop.f32.mrb[0].mxu0
      %5347 = vmatprep.mubr.bf16.mxu0 %v5257
      %5348 = vmatmul.mubr.bf16.gmra.mrb[0].mxu0 %v5124
      %v5349 = vpop.f32.mrb[0].mxu0
      %v5350 = vadd.f32 %v5197, %v5349
      %v5351 = vpop.f32.mrb[0].mxu0
      %v5352 = vpop.f32.mrb[0].mxu0
      %v5353 = vadd.f32 %v5197, %v5352
      %v5354 = vpop.f32.mrb[0].mxu0
      %5355 = vmatprep.mubr.bf16.mxu0 %v5260
      %5356 = vmatmul.mubr.bf16.gmra.mrb[0].mxu0 %v5127
      %v5357 = vpop.f32.mrb[0].mxu0
      %v5358 = vadd.f32 %v5197, %v5357
      %v5359 = vpop.f32.mrb[0].mxu0
      %v5360 = vpop.f32.mrb[0].mxu0
      %v5361 = vadd.f32 %v5197, %v5360
      %v5362 = vpop.f32.mrb[0].mxu0
      %5363 = vmatprep.mubr.bf16.mxu0 %v5263
      %5364 = vmatmul.mubr.bf16.gmra.mrb[0].mxu0 %v5130
      %v5365 = vpop.f32.mrb[0].mxu0
      %v5366 = vadd.f32 %v5197, %v5365
      %v5367 = vpop.f32.mrb[0].mxu0
      %v5368 = vpop.f32.mrb[0].mxu0
      %v5369 = vadd.f32 %v5197, %v5368
      %v5370 = vpop.f32.mrb[0].mxu0
      %5371 = vmatprep.mubr.bf16.mxu0 %v5266
      %5372 = vmatmul.mubr.bf16.gmra.mrb[0].mxu0 %v5133
      %v5373 = vpop.f32.mrb[0].mxu0
      %v5374 = vadd.f32 %v5197, %v5373
      %v5375 = vpop.f32.mrb[0].mxu0
      %v5376 = vpop.f32.mrb[0].mxu0
      %v5377 = vadd.f32 %v5197, %v5376
      %v5378 = vpop.f32.mrb[0].mxu0
      %5379 = vmatprep.mubr.bf16.mxu0 %v5269
      %5380 = vmatmul.mubr.bf16.gmra.mrb[0].mxu0 %v5136
      %v5381 = vpop.f32.mrb[0].mxu0
      %v5382 = vadd.f32 %v5197, %v5381
      %v5383 = vpop.f32.mrb[0].mxu0
      %v5384 = vpop.f32.mrb[0].mxu0
      %v5385 = vadd.f32 %v5197, %v5384
      %v5386 = vpop.f32.mrb[0].mxu0
      %5387 = vmatprep.mubr.bf16.mxu0 %v5272
      %5388 = vmatmul.mubr.bf16.gmra.mrb[0].mxu0 %v5139
      %v5389 = vpop.f32.mrb[0].mxu0
      %v5390 = vadd.f32 %v5197, %v5389
      %v5391 = vpop.f32.mrb[0].mxu0
      %v5392 = vpop.f32.mrb[0].mxu0
      %v5393 = vadd.f32 %v5197, %v5392
      %v5394 = vpop.f32.mrb[0].mxu0
      %5395 = vmatprep.mubr.bf16.mxu0 %v5275
      %5396 = vmatmul.mubr.bf16.gmra.mrb[0].mxu0 %v5142
      %v5397 = vpop.f32.mrb[0].mxu0
      %v5398 = vadd.f32 %v5197, %v5397
      %v5399 = vpop.f32.mrb[0].mxu0
      %v5400 = vpop.f32.mrb[0].mxu0
      %v5401 = vadd.f32 %v5197, %v5400
      %v5402 = vpop.f32.mrb[0].mxu0
      %5403 = vmatprep.mubr.bf16.mxu0 %v5278
      %5404 = vmatmul.mubr.bf16.gmra.mrb[0].mxu0 %v5145
      %v5405 = vpop.f32.mrb[0].mxu0
      %v5406 = vadd.f32 %v5197, %v5405
      %v5407 = vpop.f32.mrb[0].mxu0
      %v5408 = vpop.f32.mrb[0].mxu0
      %v5409 = vadd.f32 %v5197, %v5408
      %v5410 = vpop.f32.mrb[0].mxu0
      %5411 = vmatprep.mubr.bf16.mxu0 %v5281
      %5412 = vmatmul.mubr.bf16.gmra.mrb[0].mxu0 %v5148
      %v5413 = vpop.f32.mrb[0].mxu0
      %v5414 = vadd.f32 %v5197, %v5413
      %v5415 = vpop.f32.mrb[0].mxu0
      %v5416 = vpop.f32.mrb[0].mxu0
      %v5417 = vadd.f32 %v5197, %v5416
      %v5418 = vpop.f32.mrb[0].mxu0
      %5419 = vmatprep.mubr.bf16.mxu0 %v5284
      %5420 = vmatmul.mubr.bf16.gmra.mrb[0].mxu0 %v5151
      %v5421 = vpop.f32.mrb[0].mxu0
      %v5422 = vadd.f32 %v5197, %v5421
      %v5423 = vpop.f32.mrb[0].mxu0
      %v5424 = vpop.f32.mrb[0].mxu0
      %v5425 = vadd.f32 %v5197, %v5424
      %v5426 = vpop.f32.mrb[0].mxu0
      %5427 = vmatprep.mubr.bf16.mxu0 %v5287
      %5428 = vmatmul.mubr.bf16.gmra.mrb[0].mxu0 %v5154
      %v5429 = vpop.f32.mrb[0].mxu0
      %v5430 = vadd.f32 %v5197, %v5429
      %v5431 = vpop.f32.mrb[0].mxu0
      %v5432 = vpop.f32.mrb[0].mxu0
      %v5433 = vadd.f32 %v5197, %v5432
      %v5434 = vpop.f32.mrb[0].mxu0
      %5435 = vmatprep.mubr.bf16.mxu0 %v5290
      %5436 = vmatmul.mubr.bf16.gmra.mrb[0].mxu0 %v5157
      %v5437 = vpop.f32.mrb[0].mxu0
      %v5438 = vadd.f32 %v5197, %v5437
      %v5439 = vpop.f32.mrb[0].mxu0
      %v5440 = vpop.f32.mrb[0].mxu0
      %v5441 = vadd.f32 %v5197, %v5440
      %v5442 = vpop.f32.mrb[0].mxu0
      %5443 = vmatprep.mubr.bf16.mxu0 %v5293
      %5444 = vmatmul.mubr.bf16.gmra.mrb[0].mxu0 %v5160
      %v5445 = vpop.f32.mrb[0].mxu0
      %v5446 = vadd.f32 %v5197, %v5445
      %v5447 = vpop.f32.mrb[0].mxu0
      %v5448 = vpop.f32.mrb[0].mxu0
      %v5449 = vadd.f32 %v5197, %v5448
      %v5450 = vpop.f32.mrb[0].mxu0
      %5451 = vmatprep.mubr.bf16.mxu0 %v5296
      %5452 = vmatmul.mubr.bf16.gmra.mrb[0].mxu0 %v5163
      %v5453 = vpop.f32.mrb[0].mxu0
      %v5454 = vadd.f32 %v5197, %v5453
      %v5455 = vpop.f32.mrb[0].mxu0
      %v5456 = vpop.f32.mrb[0].mxu0
      %v5457 = vadd.f32 %v5197, %v5456
      %v5458 = vpop.f32.mrb[0].mxu0
      %5459 = vmatprep.mubr.bf16.mxu0 %v5299
      %5460 = vmatmul.mubr.bf16.gmra.mrb[0].mxu0 %v5166
      %v5461 = vpop.f32.mrb[0].mxu0
      %v5462 = vadd.f32 %v5197, %v5461
      %v5463 = vpop.f32.mrb[0].mxu0
      %v5464 = vpop.f32.mrb[0].mxu0
      %v5465 = vadd.f32 %v5197, %v5464
      %v5466 = vpop.f32.mrb[0].mxu0
      %5467 = vmatprep.mubr.bf16.mxu0 %v5302
      %5468 = vmatmul.mubr.bf16.gmra.mrb[0].mxu0 %v5169
      %v5469 = vpop.f32.mrb[0].mxu0
      %v5470 = vadd.f32 %v5197, %v5469
      %v5471 = vpop.f32.mrb[0].mxu0
      %v5472 = vpop.f32.mrb[0].mxu0
      %v5473 = vadd.f32 %v5197, %v5472
      %v5474 = vpop.f32.mrb[0].mxu0
      %5475 = vmatprep.mubr.bf16.mxu0 %v5305
      %5476 = vmatmul.mubr.bf16.gmra.mrb[0].mxu0 %v5172
      %v5477 = vpop.f32.mrb[0].mxu0
      %v5478 = vadd.f32 %v5197, %v5477
      %v5479 = vpop.f32.mrb[0].mxu0
      %v5480 = vpop.f32.mrb[0].mxu0
      %v5481 = vadd.f32 %v5197, %v5480
      %v5482 = vpop.f32.mrb[0].mxu0
      %5483 = vdwg.mxu0
      %5484 = vst.msk [vmem:[%s278 + $0x13] sm:$0xff] %vm1959, %v5342
      %5485 = vst.msk [vmem:[%s278 + $0x1b] sm:$0xff] %vm1959, %v5345
      %5486 = vst.msk [vmem:[%s278 + $0x23] sm:$0xff] %vm1959, %v5350
      %5487 = vst.msk [vmem:[%s278 + $0x2b] sm:$0xff] %vm1959, %v5353
      %5488 = vst.msk [vmem:[%s278 + $0x33] sm:$0xff] %vm1959, %v5358
      %5489 = vst.msk [vmem:[%s278 + $0x3b] sm:$0xff] %vm1959, %v5361
      %5490 = vst.msk [vmem:[%s278 + $0x43] sm:$0xff] %vm1959, %v5366
      %5491 = vst.msk [vmem:[%s278 + $0x4b] sm:$0xff] %vm1959, %v5369
      %5492 = vst.msk [vmem:[%s278 + $0x53] sm:$0xff] %vm1959, %v5374
      %5493 = vst.msk [vmem:[%s278 + $0x5b] sm:$0xff] %vm1959, %v5377
      %5494 = vst.msk [vmem:[%s278 + $0x63] sm:$0xff] %vm1959, %v5382
      %5495 = vst.msk [vmem:[%s278 + $0x6b] sm:$0xff] %vm1959, %v5385
      %5496 = vst.msk [vmem:[%s278 + $0x73] sm:$0xff] %vm1959, %v5390
      %5497 = vst.msk [vmem:[%s278 + $0x7b] sm:$0xff] %vm1959, %v5393
      %5498 = vst.msk [vmem:[%s278 + $0x83] sm:$0xff] %vm1959, %v5398
      %5499 = vst.msk [vmem:[%s278 + $0x8b] sm:$0xff] %vm1959, %v5401
      %5500 = vst.msk [vmem:[%s278 + $0x93] sm:$0xff] %vm1959, %v5406
      %5501 = vst.msk [vmem:[%s278 + $0x9b] sm:$0xff] %vm1959, %v5409
      %5502 = vst.msk [vmem:[%s278 + $0xa3] sm:$0xff] %vm1959, %v5414
      %5503 = vst.msk [vmem:[%s278 + $0xab] sm:$0xff] %vm1959, %v5417
      %5504 = vst.msk [vmem:[%s278 + $0xb3] sm:$0xff] %vm1959, %v5422
      %5505 = vst.msk [vmem:[%s278 + $0xbb] sm:$0xff] %vm1959, %v5425
      %5506 = vst.msk [vmem:[%s278 + $0xc3] sm:$0xff] %vm1959, %v5430
      %5507 = vst.msk [vmem:[%s278 + $0xcb] sm:$0xff] %vm1959, %v5433
      %5508 = vst.msk [vmem:[%s278 + $0xd3] sm:$0xff] %vm1959, %v5438
      %5509 = vst.msk [vmem:[%s278 + $0xdb] sm:$0xff] %vm1959, %v5441
      %5510 = vst.msk [vmem:[%s278 + $0xe3] sm:$0xff] %vm1959, %v5446
      %5511 = vst.msk [vmem:[%s278 + $0xeb] sm:$0xff] %vm1959, %v5449
      %5512 = vst.msk [vmem:[%s278 + $0xf3] sm:$0xff] %vm1959, %v5454
      %5513 = vst.msk [vmem:[%s278 + $0xfb] sm:$0xff] %vm1959, %v5457
      %5514 = vst.msk [vmem:[%s278 + $0x103] sm:$0xff] %vm1959, %v5462
      %5515 = vst.msk [vmem:[%s278 + $0x10b] sm:$0xff] %vm1959, %v5465
      %5516 = vst.msk [vmem:[%s278 + $0x113] sm:$0xff] %vm1959, %v5470
      %5517 = vst.msk [vmem:[%s278 + $0x11b] sm:$0xff] %vm1959, %v5473
      %5518 = vst.msk [vmem:[%s278 + $0x123] sm:$0xff] %vm1959, %v5478
      %vm5519 = vcmask 29696
      %5520 = vst.msk [vmem:[%s278 + $0x12b] sm:$0x3f] %vm5519, %v5481
      %p5521 = scmp.lt.s32.totalorder %s18, 1
      %s5522 = scalar_select %p5521, %s18, 1
      %s5523 = smul.addr %s5522, 41
      %s5524 = smul.addr %s5523, 8
      %s5525 = scalar_lea.vmem %s7, %s5524
      // Predicated region
      $region49: #{tpu_custom_call.1} parent=47 // pred_check
        %p5526 = pneg %p188
      $region50: #{tpu_custom_call.1} parent=47 // pred_check_branch
        %5528 = sbr.rel (%p5526) target = $region52
      $region51: #{tpu_custom_call.1} parent=47 // pred_region
        _
      $region52: #{tpu_custom_call.1} parent=47 // pred_fallthru
        _
    $region48: #{tpu_custom_call.1} parent=5 // pred_fallthru
      _
    %p5529 = scmp.le.s32.totalorder 2, %s13
    // Predicated region
    $region53: #{tpu_custom_call.1} parent=5 // pred_check
      %p5530 = pneg %p5529
    $region54: #{tpu_custom_call.1} parent=5 // pred_check_branch
      %5532 = sbr.rel (%p5530) target = $region56
    $region55: #{tpu_custom_call.1} parent=5 // pred_region
      %s5533 = ssub.s32 %s13, 2
      // Predicated region
      $region57: #{tpu_custom_call.1} parent=55 // pred_check
        %p5534 = pneg %p194
      $region58: #{tpu_custom_call.1} parent=55 // pred_check_branch
        %5536 = sbr.rel (%p5534) target = $region60
      $region59: #{tpu_custom_call.1} parent=55 // pred_region
        %p5537 = scmp.lt.s32.totalorder %s19, 1
        %s5538 = scalar_select %p5537, %s19, 1
        %s5539 = smul.addr %s5538, 41
        %s5540 = smul.addr %s5539, 8
        %s5541 = scalar_lea.vmem %s7, %s5540
      $region60: #{tpu_custom_call.1} parent=55 // pred_fallthru
        _
    $region56: #{tpu_custom_call.1} parent=5 // pred_fallthru
      _
  $region6: #{tpu_custom_call.1} parent=0 // loop_footer
    %s17 = sadd.s32 1, %s13
  $region7: #{tpu_custom_call.1} parent=0 // loop_footer_branch
    %12 = sbr.rel target = $region3
  $region8: #{tpu_custom_call.1} parent=0 // loop_exit
    _

</llo_original>
